<compile_context>
chip_gen: v6e
topology: v6e:2x2x1
jax: 0.10.0
libtpu: 0.0.40
codegen_flags: <defaults>
</compile_context>

<pallas_src>
import functools

import jax
import jax.numpy as jnp
import numpy as np
from jax.experimental import pallas as pl
from jax.experimental.pallas import tpu as pltpu

EPS = 1e-5
VMEM_LIMIT = 32 * 1024 * 1024  # safe on v5e/v6e (128 MiB) and v7x (64 MiB)


def _round_up(x, m):
    return ((x + m - 1) // m) * m


def _pick_f_tile(f):
    # Prefer >= 2 tiles so the "parallel" axis can shard across v7x's 2 TCs.
    for t in (512, 256, 128):
        if f % t == 0 and f // t >= 2:
            return t
    return f


def _class_layout(global_num_classes, cam_num_classes):
    """Column layout of the fused classifier weight slab.

    Tile width T = round_up(max per-camera classes, 128).  Global classes
    occupy the first n_global_tiles tiles, then one tile per camera.
    """
    ncam = len(cam_num_classes)
    T = _round_up(max(cam_num_classes), 128)
    n_global_tiles = max(1, _round_up(global_num_classes, T) // T)
    n_steps = n_global_tiles + ncam
    return T, n_global_tiles, n_steps


# --------------------------------------------------------------------------
# Kernel A: backbone stand-in projection + bn_neck (batch stats), F-tiled.
# --------------------------------------------------------------------------
def _proj_bn_kernel(pooled_ref, wb_ref, gamma_ref, beta_ref,
                    feat_ref, prob_ref, *, batch):
    """pooled_ref: (Bp, C) f32 (rows >= batch are zero); wb_ref: (C, TF) bf16.

    feat_ref: (Bp, TF) f32 pre-BN features ("x" in the PyTorch module).
    prob_ref: (Bp, TF) bf16 bn_neck output, padded rows zeroed.
    """
    pooled = pooled_ref[...].astype(jnp.bfloat16)
    feats = jnp.dot(pooled, wb_ref[...], preferred_element_type=jnp.float32)
    feat_ref[...] = feats

    # BatchNorm1d, training mode: biased batch stats over the first `batch`
    # rows (padded rows of `feats` are exactly zero).
    inv_b = 1.0 / batch
    row = jax.lax.broadcasted_iota(jnp.int32, feats.shape, 0)
    rowmask = (row < batch).astype(jnp.float32)
    mean = jnp.sum(feats, axis=0, keepdims=True) * inv_b
    centered = (feats - mean) * rowmask
    var = jnp.sum(centered * centered, axis=0, keepdims=True) * inv_b
    prob = centered * jax.lax.rsqrt(var + EPS)
    prob = prob * gamma_ref[...] + beta_ref[...]
    prob_ref[...] = (prob * rowmask).astype(jnp.bfloat16)


# --------------------------------------------------------------------------
# Kernel B+C fused: global classifier tiles + per-camera intra CE loss.
#   One "parallel" grid step == one class tile of w_all:
#     steps [0, nG)          -> global-classifier logits tile
#     steps [nG, nG + ncam)  -> one camera's CE loss partial (broadcast into
#                               that step's unique output tile)
# --------------------------------------------------------------------------
def _cls_loss_kernel(cam_ref, width_ref, count_ref, wblk_ref,
                     camid_ref, pid_ref, prob_ref, w_ref, out_ref,
                     *, n_global_tiles):
    del wblk_ref  # only used by the weight index_map
    s = pl.program_id(0)

    @pl.when(s < n_global_tiles)
    def _():
        out_ref[...] = jnp.dot(prob_ref[...], w_ref[...],
                               preferred_element_type=jnp.float32)

    @pl.when(s >= n_global_tiles)
    def _():
        cam = cam_ref[s]                               # -2 for absent-cam steps
        width = width_ref[s]                           # valid class count
        cnt = count_ref[s].astype(jnp.float32)         # >= 1 (guarded)

        logits = jnp.dot(prob_ref[...], w_ref[...],
                         preferred_element_type=jnp.float32)      # (Bp, T) f32
        cls = jax.lax.broadcasted_iota(jnp.int32, logits.shape, 1)
        logits = jnp.where(cls < width, logits, -1e30)  # mask padded classes

        m = jnp.max(logits, axis=-1, keepdims=True)
        lse = m + jnp.log(jnp.sum(jnp.exp(logits - m), axis=-1, keepdims=True))
        onehot = (cls == pid_ref[...]).astype(jnp.float32)
        tgt = jnp.sum(onehot * logits, axis=-1, keepdims=True)
        ce = lse - tgt                                             # (Bp, 1)

        rowmask = (camid_ref[...] == cam).astype(jnp.float32)      # (Bp, 1)
        loss_c = jnp.sum(rowmask * ce, axis=(0, 1), keepdims=True) / cnt
        out_ref[...] = jnp.broadcast_to(loss_c, out_ref.shape)


# --------------------------------------------------------------------------
# Wrapper mirroring ft_net_both.forward(x, targets, domain_targets, camid).
# --------------------------------------------------------------------------
def ft_net_both_forward(x, targets, domain_targets, camid, params,
                        global_num_classes, cam_num_classes):
    del targets  # accepted but unused, as in the PyTorch module
    B, C, H, W = x.shape
    F = params["wb"].shape[1]
    ncam = len(cam_num_classes)
    G = global_num_classes
    T, nG, n_steps = _class_layout(global_num_classes, cam_num_classes)
    assert F % 128 == 0
    assert params["w_all"].shape == (F, n_steps * T)

    Bp = max(16, _round_up(B, 16))      # bf16 packs 16 rows per sublane group
    TF = _pick_f_tile(F)

    # -------- hoisted global average pool (plain XLA) + batch padding -------
    pooled = jnp.mean(x.reshape(B, C, H * W).astype(jnp.float32), axis=-1)
    pooled_p = jnp.zeros((Bp, C), jnp.float32).at[:B].set(pooled)
    camid_i = camid.astype(jnp.int32)
    camid_p = jnp.full((Bp, 1), -1, jnp.int32).at[:B, 0].set(camid_i)
    pid_p = jnp.zeros((Bp, 1), jnp.int32).at[:B, 0].set(
        domain_targets.astype(jnp.int32))

    # ------------- Kernel A: projection + bn_neck, tiled over F -------------
    cost_a = pl.CostEstimate(
        flops=2 * Bp * C * F + 8 * Bp * F, transcendentals=0,
        bytes_accessed=Bp * C * 4 + C * F * 2 + 2 * F * 4 + Bp * F * 6)
    feats_p, prob_p = pl.pallas_call(
        functools.partial(_proj_bn_kernel, batch=B),
        out_shape=(jax.ShapeDtypeStruct((Bp, F), jnp.float32),
                   jax.ShapeDtypeStruct((Bp, F), jnp.bfloat16)),
        grid_spec=pltpu.PrefetchScalarGridSpec(
            num_scalar_prefetch=0, grid=(F // TF,),
            in_specs=[pl.BlockSpec((Bp, C), lambda f: (0, 0)),
                      pl.BlockSpec((C, TF), lambda f: (0, f)),
                      pl.BlockSpec((1, TF), lambda f: (0, f)),
                      pl.BlockSpec((1, TF), lambda f: (0, f))],
            out_specs=[pl.BlockSpec((Bp, TF), lambda f: (0, f)),
                       pl.BlockSpec((Bp, TF), lambda f: (0, f))]),
        compiler_params=pltpu.CompilerParams(
            dimension_semantics=("parallel",), vmem_limit_bytes=VMEM_LIMIT),
        cost_estimate=cost_a,
    )(pooled_p, params["wb"], params["gamma"], params["beta"])

    # -------- per-step scalar tables for the fused classifier kernel --------
    cam_ids = jnp.arange(ncam, dtype=jnp.int32)
    counts = jnp.sum(camid_i[:, None] == cam_ids[None, :],
                     axis=0).astype(jnp.int32)                      # (ncam,)
    present = counts > 0
    n_present = jnp.sum(present.astype(jnp.int32))
    order = jnp.argsort(jnp.logical_not(present).astype(jnp.int32)).astype(
        jnp.int32)                                                  # present first
    last_present = order[jnp.maximum(n_present - 1, 0)]
    widths = jnp.asarray(cam_num_classes, dtype=jnp.int32)

    steps = jnp.arange(n_steps, dtype=jnp.int32)
    c_idx = jnp.maximum(steps - nG, 0)                  # camera-step ordinal
    cam_raw = order[c_idx]
    valid = (steps >= nG) & (c_idx < n_present)
    cam_s = jnp.where(valid, cam_raw, -2).astype(jnp.int32)
    width_s = jnp.where(valid, widths[cam_raw], 1).astype(jnp.int32)
    count_s = jnp.where(valid, counts[cam_raw], 1).astype(jnp.int32)
    wblk_s = jnp.where(steps < nG, steps,
                       nG + jnp.where(valid, cam_raw, last_present)
                       ).astype(jnp.int32)

    # ----------- fused Kernel B+C: one "parallel" class-tile grid -----------
    cost_bc = pl.CostEstimate(
        flops=2 * Bp * F * n_steps * T + 8 * Bp * T * ncam,
        transcendentals=ncam * Bp * T,
        bytes_accessed=Bp * F * 2 + n_steps * F * T * 2
        + Bp * n_steps * T * 4 + 4 * Bp * 4)
    out_pad = pl.pallas_call(
        functools.partial(_cls_loss_kernel, n_global_tiles=nG),
        out_shape=jax.ShapeDtypeStruct((Bp, n_steps * T), jnp.float32),
        grid_spec=pltpu.PrefetchScalarGridSpec(
            num_scalar_prefetch=4, grid=(n_steps,),
            in_specs=[pl.BlockSpec((Bp, 1), lambda s, c, w, n, b: (0, 0)),
                      pl.BlockSpec((Bp, 1), lambda s, c, w, n, b: (0, 0)),
                      pl.BlockSpec((Bp, F), lambda s, c, w, n, b: (0, 0)),
                      pl.BlockSpec((F, T), lambda s, c, w, n, b: (0, b[s]))],
            out_specs=pl.BlockSpec((Bp, T), lambda s, c, w, n, b: (0, s))),
        compiler_params=pltpu.CompilerParams(
            dimension_semantics=("parallel",), vmem_limit_bytes=VMEM_LIMIT),
        cost_estimate=cost_bc,
    )(cam_s, width_s, count_s, wblk_s, camid_p, pid_p, prob_p, params["w_all"])

    global_prob = out_pad[:B, :G]
    loss_parts = out_pad[0, nG * T::T]                  # (ncam,) per-cam partials
    intra_loss = jnp.sum(loss_parts) / jnp.maximum(n_present, 1).astype(
        jnp.float32)
    return global_prob, feats_p[:B], intra_loss


# --------------------------------------------------------------------------
# Parameter init mirroring the module's __init__, with classifier weights
# pre-padded and pre-cast to bf16 ONCE (per performance review).
# --------------------------------------------------------------------------
def init_params(key, in_channels, feat_dim, global_num_classes,
                cam_num_classes):
    k_wb, k_wg, k_wc = jax.random.split(key, 3)
    T, nG, n_steps = _class_layout(global_num_classes, cam_num_classes)

    wb = jax.random.normal(k_wb, (in_channels, feat_dim), jnp.float32) * 0.05
    wg = jax.random.normal(k_wg, (feat_dim, global_num_classes),
                           jnp.float32) * 0.001
    # w_all columns: [0, nG*T) = global classifier (cols >= G zero);
    #                [nG*T + cam*T, ... + K_cam) = camera `cam` classifier.
    w_all = jnp.zeros((feat_dim, n_steps * T), jnp.bfloat16)
    w_all = w_all.at[:, :global_num_classes].set(wg.astype(jnp.bfloat16))
    for cam, k in enumerate(cam_num_classes):
        k_wc, sub = jax.random.split(k_wc)
        wcam = jax.random.normal(sub, (feat_dim, k), jnp.float32) * 0.001
        col0 = (nG + cam) * T
        w_all = w_all.at[:, col0:col0 + k].set(wcam.astype(jnp.bfloat16))

    return {
        # backbone stand-in projection (C -> feat_dim), bf16 (f32 MXU acc)
        "wb": wb.astype(jnp.bfloat16),
        # bn_neck: weight=1, bias=0 (bias frozen in the PyTorch module)
        "gamma": jnp.ones((1, feat_dim), jnp.float32),
        "beta": jnp.zeros((1, feat_dim), jnp.float32),
        # fused, padded, bf16 classifier slab (global + per-camera)
        "w_all": w_all,
    }


# --------------------------------------------------------------------------
# Pure-JAX reference mirroring the PyTorch control flow (and the kernel's
# bf16-input / f32-accumulate matmul numerics).
# --------------------------------------------------------------------------
def reference_forward(x, domain_targets, camid, params, global_num_classes,
                      cam_num_classes):
    B, C, H, W = x.shape
    T, nG, _ = _class_layout(global_num_classes, cam_num_classes)
    pooled = x.reshape(B, C, -1).mean(-1)
    feats = jnp.dot(pooled.astype(jnp.bfloat16), params["wb"],
                    preferred_element_type=jnp.float32)
    mean = feats.mean(0, keepdims=True)
    var = ((feats - mean) ** 2).mean(0, keepdims=True)
    prob = (feats - mean) * jax.lax.rsqrt(var + EPS)
    prob = prob * params["gamma"] + params["beta"]
    prob_bf = prob.astype(jnp.bfloat16)

    gp = jnp.dot(prob_bf, params["w_all"][:, :global_num_classes],
                 preferred_element_type=jnp.float32)

    camid_np = np.asarray(camid)
    uniq = np.unique(camid_np)
    total = 0.0
    for c in uniq:
        idx = np.nonzero(camid_np == c)[0]
        data = prob_bf[idx]
        pids = domain_targets[idx]
        col0 = (nG + int(c)) * T
        w = params["w_all"][:, col0:col0 + cam_num_classes[int(c)]]
        logits = jnp.dot(data, w, preferred_element_type=jnp.float32)
        logp = jax.nn.log_softmax(logits, axis=-1)
        ce = -logp[jnp.arange(len(idx)), pids].mean()
        total = total + ce
    return gp, feats, total / len(uniq)


if __name__ == "__main__":
    # Small synthetic config consistent with the module structure.
    B, C, H, W = 2, 4, 16, 16
    FEAT_DIM = 2048                        # bn_neck / classifier in_dim
    GLOBAL_NUM_CLASSES = 16
    CAM_NUM_CLASSES = (6, 8, 5)            # per-camera class counts

    key = jax.random.PRNGKey(0)
    k_x, k_p = jax.random.split(key)
    x = jax.random.normal(k_x, (B, C, H, W), jnp.float32)
    targets = jnp.array([1, 3], jnp.int32)            # unused (as in PyTorch)
    camid = jnp.array([0, 1], jnp.int32)
    domain_targets = jnp.array([2, 3], jnp.int32)     # < cam_num_classes[camid]

    params = init_params(k_p, C, FEAT_DIM, GLOBAL_NUM_CLASSES, CAM_NUM_CLASSES)

    fwd = jax.jit(ft_net_both_forward,
                  static_argnames=("global_num_classes", "cam_num_classes"))
    gp, feats, loss = fwd(x, targets, domain_targets, camid, params,
                          global_num_classes=GLOBAL_NUM_CLASSES,
                          cam_num_classes=CAM_NUM_CLASSES)
    jax.block_until_ready((gp, feats, loss))

    gp_r, feats_r, loss_r = reference_forward(x, domain_targets, camid, params,
                                              GLOBAL_NUM_CLASSES,
                                              CAM_NUM_CLASSES)
    np.testing.assert_allclose(np.asarray(feats), np.asarray(feats_r),
                               rtol=1e-3, atol=1e-3)
    np.testing.assert_allclose(np.asarray(gp), np.asarray(gp_r),
                               rtol=1e-3, atol=1e-3)
    np.testing.assert_allclose(float(loss), float(loss_r),
                               rtol=1e-3, atol=1e-3)

    print("KERNEL_OK")
</pallas_src>

<mosaic_0001>
module attributes {stable_mosaic.version = 11 : i64} {
  func.func @_cls_loss_kernel(%arg0: i32, %arg1: memref<4xi32, #tpu.memory_space<smem>>, %arg2: memref<4xi32, #tpu.memory_space<smem>>, %arg3: memref<4xi32, #tpu.memory_space<smem>>, %arg4: memref<4xi32, #tpu.memory_space<smem>>, %arg5: memref<16x1xi32, #tpu.memory_space<vmem>>, %arg6: memref<16x1xi32, #tpu.memory_space<vmem>>, %arg7: memref<16x2048xbf16, #tpu.memory_space<vmem>>, %arg8: memref<2048x128xbf16, #tpu.memory_space<vmem>>, %arg9: memref<16x128xf32, #tpu.memory_space<vmem>>) attributes {dimension_semantics = [#tpu.dimension_semantics<parallel>], iteration_bounds = array<i64: 4>, scalar_prefetch = 4 : i64, scratch_operands = 0 : i64, tpu.core_type = #tpu.core_type<tc>, window_params = [{pipeline_mode = #tpu.pipeline_mode<synchronous>, transform_indices = @transform_0, window_bounds = array<i64: 16, 1>}, {pipeline_mode = #tpu.pipeline_mode<synchronous>, transform_indices = @transform_1, window_bounds = array<i64: 16, 1>}, {pipeline_mode = #tpu.pipeline_mode<synchronous>, transform_indices = @transform_2, window_bounds = array<i64: 16, 2048>}, {transform_indices = @transform_3, window_bounds = array<i64: 2048, 128>}, {transform_indices = @transform_4, window_bounds = array<i64: 16, 128>}]} {
    %c1_i32 = arith.constant 1 : i32
    %0 = arith.cmpi slt, %arg0, %c1_i32 : i32
    %1 = arith.extui %0 : i1 to i32
    %c0_i32 = arith.constant 0 : i32
    %2 = arith.cmpi ne, %1, %c0_i32 : i32
    scf.if %2 {
      %c0 = arith.constant 0 : index
      %c0_2 = arith.constant 0 : index
      %6 = vector.load %arg7[%c0, %c0_2] : memref<16x2048xbf16, #tpu.memory_space<vmem>>, vector<16x2048xbf16>
      %c0_3 = arith.constant 0 : index
      %c0_4 = arith.constant 0 : index
      %7 = vector.load %arg8[%c0_3, %c0_4] : memref<2048x128xbf16, #tpu.memory_space<vmem>>, vector<2048x128xbf16>
      %cst = arith.constant dense<0.000000e+00> : vector<16x128xf32>
      %8 = tpu.matmul %6, %7, %cst {dimension_numbers = #tpu.dot_dimension_numbers<[1], [0], [0], [1], [0, 0, 1, 1], [], []>} : vector<16x2048xbf16>, vector<2048x128xbf16>, vector<16x128xf32> -> vector<16x128xf32>
      %c0_5 = arith.constant 0 : index
      %c0_6 = arith.constant 0 : index
      %9 = vector.load %arg9[%c0_5, %c0_6] : memref<16x128xf32, #tpu.memory_space<vmem>>, vector<16x128xf32>
      tpu.vector_store %arg9[%c0_5, %c0_6], %8 {strides = array<i32>} : memref<16x128xf32, #tpu.memory_space<vmem>>, vector<16x128xf32>,
    } else {
    }
    %c1_i32_0 = arith.constant 1 : i32
    %3 = arith.cmpi sge, %arg0, %c1_i32_0 : i32
    %4 = arith.extui %3 : i1 to i32
    %c0_i32_1 = arith.constant 0 : i32
    %5 = arith.cmpi ne, %4, %c0_i32_1 : i32
    scf.if %5 {
      %6 = arith.index_cast %arg0 : i32 to index
      %7 = memref.load %arg1[%6] : memref<4xi32, #tpu.memory_space<smem>>
      %8 = arith.index_cast %arg0 : i32 to index
      %9 = memref.load %arg2[%8] : memref<4xi32, #tpu.memory_space<smem>>
      %10 = arith.index_cast %arg0 : i32 to index
      %11 = memref.load %arg3[%10] : memref<4xi32, #tpu.memory_space<smem>>
      %12 = arith.sitofp %11 : i32 to f32
      %c0 = arith.constant 0 : index
      %c0_2 = arith.constant 0 : index
      %13 = vector.load %arg7[%c0, %c0_2] : memref<16x2048xbf16, #tpu.memory_space<vmem>>, vector<16x2048xbf16>
      %c0_3 = arith.constant 0 : index
      %c0_4 = arith.constant 0 : index
      %14 = vector.load %arg8[%c0_3, %c0_4] : memref<2048x128xbf16, #tpu.memory_space<vmem>>, vector<2048x128xbf16>
      %cst = arith.constant dense<0.000000e+00> : vector<16x128xf32>
      %15 = tpu.matmul %13, %14, %cst {dimension_numbers = #tpu.dot_dimension_numbers<[1], [0], [0], [1], [0, 0, 1, 1], [], []>} : vector<16x2048xbf16>, vector<2048x128xbf16>, vector<16x128xf32> -> vector<16x128xf32>
      %16 = tpu.iota {dimensions = array<i32: 1>} : vector<16x128xi32>
      %17 = vector.broadcast %9 : i32 to vector<16x128xi32>
      %18 = arith.cmpi slt, %16, %17 : vector<16x128xi32>
      %cst_5 = arith.constant -1.000000e+30 : f32
      %19 = vector.broadcast %cst_5 : f32 to vector<16x128xf32>
      %20 = arith.select %18, %15, %19 : vector<16x128xi1>, vector<16x128xf32>
      %cst_6 = arith.constant dense<0xFF800000> : vector<16xf32>
      %21 = vector.multi_reduction <maximumf>, %20, %cst_6 [1] : vector<16x128xf32> to vector<16xf32>
      %22 = vector.shape_cast %21 : vector<16xf32> to vector<16x1xf32>
      %23 = vector.broadcast %22 : vector<16x1xf32> to vector<16x128xf32>
      %24 = arith.subf %20, %23 : vector<16x128xf32>
      %25 = math.exp %24 : vector<16x128xf32>
      %cst_7 = arith.constant dense<0.000000e+00> : vector<16xf32>
      %26 = vector.multi_reduction <add>, %25, %cst_7 [1] : vector<16x128xf32> to vector<16xf32>
      %27 = vector.shape_cast %26 : vector<16xf32> to vector<16x1xf32>
      %28 = math.log %27 : vector<16x1xf32>
      %29 = arith.addf %22, %28 : vector<16x1xf32>
      %c0_8 = arith.constant 0 : index
      %c0_9 = arith.constant 0 : index
      %30 = vector.load %arg6[%c0_8, %c0_9] : memref<16x1xi32, #tpu.memory_space<vmem>>, vector<16x1xi32>
      %31 = vector.broadcast %30 : vector<16x1xi32> to vector<16x128xi32>
      %32 = arith.cmpi eq, %16, %31 : vector<16x128xi32>
      %33 = arith.extui %32 : vector<16x128xi1> to vector<16x128xi32>
      %34 = arith.sitofp %33 : vector<16x128xi32> to vector<16x128xf32>
      %35 = arith.mulf %34, %20 : vector<16x128xf32>
      %cst_10 = arith.constant dense<0.000000e+00> : vector<16xf32>
      %36 = vector.multi_reduction <add>, %35, %cst_10 [1] : vector<16x128xf32> to vector<16xf32>
      %37 = vector.shape_cast %36 : vector<16xf32> to vector<16x1xf32>
      %38 = arith.subf %29, %37 : vector<16x1xf32>
      %c0_11 = arith.constant 0 : index
      %c0_12 = arith.constant 0 : index
      %39 = vector.load %arg5[%c0_11, %c0_12] : memref<16x1xi32, #tpu.memory_space<vmem>>, vector<16x1xi32>
      %40 = vector.broadcast %7 : i32 to vector<16x1xi32>
      %41 = arith.cmpi eq, %39, %40 : vector<16x1xi32>
      %42 = arith.extui %41 : vector<16x1xi1> to vector<16x1xi32>
      %43 = arith.sitofp %42 : vector<16x1xi32> to vector<16x1xf32>
      %44 = arith.mulf %43, %38 : vector<16x1xf32>
      %45 = vector.shape_cast %44 : vector<16x1xf32> to vector<1x16x1xf32>
      %cst_13 = arith.constant dense<0.000000e+00> : vector<1xf32>
      %46 = vector.multi_reduction <add>, %45, %cst_13 [1, 2] : vector<1x16x1xf32> to vector<1xf32>
      %47 = vector.shape_cast %46 : vector<1xf32> to vector<1x1x1xf32>
      %48 = vector.extract %47[0, 0, 0] : f32 from vector<1x1x1xf32>
      %49 = vector.broadcast %48 : f32 to vector<1x1xf32>
      %50 = vector.broadcast %12 : f32 to vector<1x1xf32>
      %51 = arith.divf %49, %50 : vector<1x1xf32>
      %52 = vector.shape_cast %51 : vector<1x1xf32> to vector<1x1xf32>
      %53 = vector.broadcast %52 : vector<1x1xf32> to vector<16x128xf32>
      %c0_14 = arith.constant 0 : index
      %c0_15 = arith.constant 0 : index
      %54 = vector.load %arg9[%c0_14, %c0_15] : memref<16x128xf32, #tpu.memory_space<vmem>>, vector<16x128xf32>
      tpu.vector_store %arg9[%c0_14, %c0_15], %53 {strides = array<i32>} : memref<16x128xf32, #tpu.memory_space<vmem>>, vector<16x128xf32>,
    } else {
    }
    return
  }
  func.func @transform_0(%arg0: i32, %arg1: memref<4xi32, #tpu.memory_space<smem>>, %arg2: memref<4xi32, #tpu.memory_space<smem>>, %arg3: memref<4xi32, #tpu.memory_space<smem>>, %arg4: memref<4xi32, #tpu.memory_space<smem>>) -> (i32, i32) {
    %c0_i32 = arith.constant 0 : i32
    %c0_i32_0 = arith.constant 0 : i32
    %c0_i32_1 = arith.constant 0 : i32
    return %c0_i32, %c0_i32_0 : i32, i32
  }
  func.func @transform_1(%arg0: i32, %arg1: memref<4xi32, #tpu.memory_space<smem>>, %arg2: memref<4xi32, #tpu.memory_space<smem>>, %arg3: memref<4xi32, #tpu.memory_space<smem>>, %arg4: memref<4xi32, #tpu.memory_space<smem>>) -> (i32, i32) {
    %c0_i32 = arith.constant 0 : i32
    %c0_i32_0 = arith.constant 0 : i32
    %c0_i32_1 = arith.constant 0 : i32
    return %c0_i32, %c0_i32_0 : i32, i32
  }
  func.func @transform_2(%arg0: i32, %arg1: memref<4xi32, #tpu.memory_space<smem>>, %arg2: memref<4xi32, #tpu.memory_space<smem>>, %arg3: memref<4xi32, #tpu.memory_space<smem>>, %arg4: memref<4xi32, #tpu.memory_space<smem>>) -> (i32, i32) {
    %c0_i32 = arith.constant 0 : i32
    %c0_i32_0 = arith.constant 0 : i32
    %c0_i32_1 = arith.constant 0 : i32
    return %c0_i32, %c0_i32_0 : i32, i32
  }
  func.func @transform_3(%arg0: i32, %arg1: memref<4xi32, #tpu.memory_space<smem>>, %arg2: memref<4xi32, #tpu.memory_space<smem>>, %arg3: memref<4xi32, #tpu.memory_space<smem>>, %arg4: memref<4xi32, #tpu.memory_space<smem>>) -> (i32, i32) {
    %0 = arith.index_cast %arg0 : i32 to index
    %1 = memref.load %arg4[%0] : memref<4xi32, #tpu.memory_space<smem>>
    %c0_i32 = arith.constant 0 : i32
    %c0_i32_0 = arith.constant 0 : i32
    return %c0_i32, %1 : i32, i32
  }
  func.func @transform_4(%arg0: i32, %arg1: memref<4xi32, #tpu.memory_space<smem>>, %arg2: memref<4xi32, #tpu.memory_space<smem>>, %arg3: memref<4xi32, #tpu.memory_space<smem>>, %arg4: memref<4xi32, #tpu.memory_space<smem>>) -> (i32, i32) {
    %c0_i32 = arith.constant 0 : i32
    %c0_i32_0 = arith.constant 0 : i32
    return %c0_i32, %arg0 : i32, i32
  }
}

module attributes {stable_mosaic.version = 11 : i64} {
  func.func @_proj_bn_kernel(%arg0: i32, %arg1: memref<16x4xf32, #tpu.memory_space<vmem>>, %arg2: memref<4x512xbf16, #tpu.memory_space<vmem>>, %arg3: memref<1x512xf32, #tpu.memory_space<vmem>>, %arg4: memref<1x512xf32, #tpu.memory_space<vmem>>, %arg5: memref<16x512xf32, #tpu.memory_space<vmem>>, %arg6: memref<16x512xbf16, #tpu.memory_space<vmem>>) attributes {dimension_semantics = [#tpu.dimension_semantics<parallel>], iteration_bounds = array<i64: 4>, scalar_prefetch = 0 : i64, scratch_operands = 0 : i64, tpu.core_type = #tpu.core_type<tc>, window_params = [{pipeline_mode = #tpu.pipeline_mode<synchronous>, transform_indices = @transform_0, window_bounds = array<i64: 16, 4>}, {transform_indices = @transform_1, window_bounds = array<i64: 4, 512>}, {transform_indices = @transform_2, window_bounds = array<i64: 1, 512>}, {transform_indices = @transform_3, window_bounds = array<i64: 1, 512>}, {transform_indices = @transform_4, window_bounds = array<i64: 16, 512>}, {transform_indices = @transform_5, window_bounds = array<i64: 16, 512>}]} {
    %c0 = arith.constant 0 : index
    %c0_0 = arith.constant 0 : index
    %0 = vector.load %arg1[%c0, %c0_0] : memref<16x4xf32, #tpu.memory_space<vmem>>, vector<16x4xf32>
    %1 = arith.truncf %0 : vector<16x4xf32> to vector<16x4xbf16>
    %c0_1 = arith.constant 0 : index
    %c0_2 = arith.constant 0 : index
    %2 = vector.load %arg2[%c0_1, %c0_2] : memref<4x512xbf16, #tpu.memory_space<vmem>>, vector<4x512xbf16>
    %cst = arith.constant dense<0.000000e+00> : vector<16x512xf32>
    %3 = tpu.matmul %1, %2, %cst {dimension_numbers = #tpu.dot_dimension_numbers<[1], [0], [0], [1], [0, 0, 1, 1], [], []>} : vector<16x4xbf16>, vector<4x512xbf16>, vector<16x512xf32> -> vector<16x512xf32>
    %c0_3 = arith.constant 0 : index
    %c0_4 = arith.constant 0 : index
    %4 = vector.load %arg5[%c0_3, %c0_4] : memref<16x512xf32, #tpu.memory_space<vmem>>, vector<16x512xf32>
    tpu.vector_store %arg5[%c0_3, %c0_4], %3 {strides = array<i32>} : memref<16x512xf32, #tpu.memory_space<vmem>>, vector<16x512xf32>,
    %5 = tpu.iota {dimensions = array<i32: 0>} : vector<16x512xi32>
    %c2_i32 = arith.constant 2 : i32
    %6 = vector.broadcast %c2_i32 : i32 to vector<16x512xi32>
    %7 = arith.cmpi slt, %5, %6 : vector<16x512xi32>
    %8 = arith.extui %7 : vector<16x512xi1> to vector<16x512xi32>
    %9 = arith.sitofp %8 : vector<16x512xi32> to vector<16x512xf32>
    %cst_5 = arith.constant dense<0.000000e+00> : vector<512xf32>
    %10 = vector.multi_reduction <add>, %3, %cst_5 [0] : vector<16x512xf32> to vector<512xf32>
    %11 = vector.shape_cast %10 : vector<512xf32> to vector<1x512xf32>
    %cst_6 = arith.constant 5.000000e-01 : f32
    %12 = vector.broadcast %cst_6 : f32 to vector<1x512xf32>
    %13 = arith.mulf %11, %12 : vector<1x512xf32>
    %14 = vector.broadcast %13 : vector<1x512xf32> to vector<16x512xf32>
    %15 = arith.subf %3, %14 : vector<16x512xf32>
    %16 = arith.mulf %15, %9 : vector<16x512xf32>
    %17 = arith.mulf %16, %16 : vector<16x512xf32>
    %cst_7 = arith.constant dense<0.000000e+00> : vector<512xf32>
    %18 = vector.multi_reduction <add>, %17, %cst_7 [0] : vector<16x512xf32> to vector<512xf32>
    %19 = vector.shape_cast %18 : vector<512xf32> to vector<1x512xf32>
    %cst_8 = arith.constant 5.000000e-01 : f32
    %20 = vector.broadcast %cst_8 : f32 to vector<1x512xf32>
    %21 = arith.mulf %19, %20 : vector<1x512xf32>
    %cst_9 = arith.constant 9.99999974E-6 : f32
    %22 = vector.broadcast %cst_9 : f32 to vector<1x512xf32>
    %23 = arith.addf %21, %22 : vector<1x512xf32>
    %24 = math.rsqrt %23 : vector<1x512xf32>
    %25 = vector.broadcast %24 : vector<1x512xf32> to vector<16x512xf32>
    %26 = arith.mulf %16, %25 : vector<16x512xf32>
    %c0_10 = arith.constant 0 : index
    %c0_11 = arith.constant 0 : index
    %27 = vector.load %arg3[%c0_10, %c0_11] : memref<1x512xf32, #tpu.memory_space<vmem>>, vector<1x512xf32>
    %28 = vector.broadcast %27 : vector<1x512xf32> to vector<16x512xf32>
    %29 = arith.mulf %26, %28 : vector<16x512xf32>
    %c0_12 = arith.constant 0 : index
    %c0_13 = arith.constant 0 : index
    %30 = vector.load %arg4[%c0_12, %c0_13] : memref<1x512xf32, #tpu.memory_space<vmem>>, vector<1x512xf32>
    %31 = vector.broadcast %30 : vector<1x512xf32> to vector<16x512xf32>
    %32 = arith.addf %29, %31 : vector<16x512xf32>
    %33 = arith.mulf %32, %9 : vector<16x512xf32>
    %34 = arith.truncf %33 : vector<16x512xf32> to vector<16x512xbf16>
    %c0_14 = arith.constant 0 : index
    %c0_15 = arith.constant 0 : index
    %35 = vector.load %arg6[%c0_14, %c0_15] : memref<16x512xbf16, #tpu.memory_space<vmem>>, vector<16x512xbf16>
    tpu.vector_store %arg6[%c0_14, %c0_15], %34 {strides = array<i32>} : memref<16x512xbf16, #tpu.memory_space<vmem>>, vector<16x512xbf16>,
    return
  }
  func.func @transform_0(%arg0: i32) -> (i32, i32) {
    %c0_i32 = arith.constant 0 : i32
    %c0_i32_0 = arith.constant 0 : i32
    %c0_i32_1 = arith.constant 0 : i32
    return %c0_i32, %c0_i32_0 : i32, i32
  }
  func.func @transform_1(%arg0: i32) -> (i32, i32) {
    %c0_i32 = arith.constant 0 : i32
    %c0_i32_0 = arith.constant 0 : i32
    return %c0_i32, %arg0 : i32, i32
  }
  func.func @transform_2(%arg0: i32) -> (i32, i32) {
    %c0_i32 = arith.constant 0 : i32
    %c0_i32_0 = arith.constant 0 : i32
    return %c0_i32, %arg0 : i32, i32
  }
  func.func @transform_3(%arg0: i32) -> (i32, i32) {
    %c0_i32 = arith.constant 0 : i32
    %c0_i32_0 = arith.constant 0 : i32
    return %c0_i32, %arg0 : i32, i32
  }
  func.func @transform_4(%arg0: i32) -> (i32, i32) {
    %c0_i32 = arith.constant 0 : i32
    %c0_i32_0 = arith.constant 0 : i32
    return %c0_i32, %arg0 : i32, i32
  }
  func.func @transform_5(%arg0: i32) -> (i32, i32) {
    %c0_i32 = arith.constant 0 : i32
    %c0_i32_0 = arith.constant 0 : i32
    return %c0_i32, %arg0 : i32, i32
  }
}

</mosaic_0001>

<llo_original>
// kernel: ft_net_both_forward.2
$region0: #{ft_net_both_forward.2}
  #allocation0 [shape = 'u32[]', space=smem, size = 0x4, offset = 0x4, fixed_abs, tag = 'smem constant byte address 0x4 - core index']
  #allocation1 [shape = 'u32[144,128]{1,0:T(1,128)}', space=vmem, size = 0x12000, scoped, tag = 'internal scratch']
  %s0 = inlined_call_operand.vmem [shape: f32[16,4], index: 0, kind: input, shape index: {}]
  %s1 = inlined_call_operand.hbm [shape: bf16[4,2048], index: 1, kind: input, shape index: {}]
  %s2 = inlined_call_operand.hbm [shape: f32[1,2048], index: 2, kind: input, shape index: {}]
  %s3 = inlined_call_operand.hbm [shape: f32[1,2048], index: 3, kind: input, shape index: {}]
  %s4 = inlined_call_operand.vmem [shape: f32[16,2048], index: 4, kind: output, shape index: {0}]
  %s5 = inlined_call_operand.vmem [shape: bf16[16,2048], index: 5, kind: output, shape index: {1}]
  %6 = xla_tuple %s4, %s5
  %s7 = sld [smem:[#allocation0]]
  $region107: #{ft_net_both_forward.2} parent=0
    _
  %s9 = ssub.s32 1, %s7
  %s10 = scalar_select 0, %s9, %s7
  $region1: #{ft_net_both_forward.2} parent=0
    #allocation2 [shape = 'u8[8192]{0}', space=vmem, size = 0x2000, scoped, tag = 'input window, operand 1']
    #allocation3 [shape = 's32[2]{0}', space=sflag, size = 0x8, scoped, tag = 'scoped memory for ft_net_both_forward.2']
    #allocation4 [shape = 'u8[4096]{0}', space=vmem, size = 0x1000, scoped, tag = 'input window, operand 2']
    #allocation5 [shape = 's32[2]{0}', space=sflag, size = 0x8, scoped, tag = 'scoped memory for ft_net_both_forward.2']
    #allocation6 [shape = 'u8[4096]{0}', space=vmem, size = 0x1000, scoped, tag = 'input window, operand 3']
    #allocation7 [shape = 'u8[65536]{0}', space=vmem, size = 0x10000, scoped, tag = 'output window, operand 0']
    #allocation8 [shape = 'u8[32768]{0}', space=vmem, size = 0x8000, scoped, tag = 'output window, operand 1']
    %11 = vsyncpa [#allocation3], 0
    %s12 = scalar_lea.sflag [#allocation3], 1
    %13 = vsyncpa %s12, 0
    %14 = vsyncpa [#allocation5], 0
    %s15 = scalar_lea.sflag [#allocation5], 1
    %16 = vsyncpa %s15, 0
    loop: start=0, step=1, limit=6
    $region2: #{ft_net_both_forward.2} parent=1 // loop_pre_header
      _
    $region3: #{ft_net_both_forward.2} parent=1 // loop_header
      %s18 = sphi 0, %s22
      %p19 = scmp.ge.s32.totalorder %s18, 6
      %s26 = sphi 0, %s26
      %s28 = sphi 0, %s26
      %s29 = sphi 0, %s28
      %s43 = sphi 0, %s29
      %s49 = sphi 0, %s51
      %s52 = sphi 0, %s49
      %s53 = sphi 0, %s52
      %s69 = sphi 0, %s53
      %s75 = sphi 0, %s77
      %s78 = sphi 0, %s75
      %s79 = sphi 0, %s78
      %s95 = sphi 0, %s79
      %s101 = sphi 0, %s103
      %s104 = sphi 0, %s101
      %s105 = sphi 0, %s104
      %s121 = sphi 0, %s105
      %s127 = sphi 0, %s129
      %s130 = sphi 0, %s127
      %s131 = sphi 0, %s130
      %s147 = sphi 0, %s131
      %s153 = sphi 0, %s155
      %s156 = sphi 0, %s153
      %s157 = sphi 0, %s156
      %s173 = sphi 0, %s157
    $region4: #{ft_net_both_forward.2} parent=1 // loop_header_branch
      %21 = sbr.rel (%p19) target = $region8
    $region5: #{ft_net_both_forward.2} parent=1 // loop_body
      %s23 = ssub.s32 %s18, 1
      %s24 = ssub.s32 %s18, 2
      %s25 = sadd.s32 %s18, 1
      %s27 = sadd.s32 %s26, 1
      %p30 = scmp.eq.s32.totalorder %s18, 3
      %p31 = scmp.ne.s32.totalorder %s26, %s28
      %p32 = scmp.eq.s32.totalorder %s18, 0
      %p33 = por %p31, %p32
      %p34 = scmp.ne.s32.totalorder %s26, %s28
      %p35 = scmp.eq.s32.totalorder %s23, 3
      %p36 = por %p34, %p35
      %p37 = scmp.ne.s32.totalorder %s28, %s29
      %p38 = scmp.eq.s32.totalorder %s23, 0
      %p39 = por %p37, %p38
      %p40 = scmp.ne.s32.totalorder %s28, %s29
      %p41 = scmp.eq.s32.totalorder %s24, 3
      %p42 = por %p40, %p41
      %p44 = scmp.ne.s32.totalorder %s29, %s43
      %p45 = scmp.eq.s32.totalorder %s24, 0
      %p46 = por %p44, %p45
      %s47 = ssub.s32 %s18, %s25
      %p48 = scmp.eq.s32.totalorder %s47, 0
      %s50 = sadd.s32 %s49, 1
      %s51 = scalar_select %p48, %s49, %s50
      %p54 = pneg %p48
      %p55 = scmp.eq.s32.totalorder %s18, 3
      %p56 = por %p54, %p55
      %p57 = scmp.ne.s32.totalorder %s49, %s52
      %p58 = scmp.eq.s32.totalorder %s18, 0
      %p59 = por %p57, %p58
      %p60 = scmp.ne.s32.totalorder %s49, %s52
      %p61 = scmp.eq.s32.totalorder %s23, 3
      %p62 = por %p60, %p61
      %p63 = scmp.ne.s32.totalorder %s52, %s53
      %p64 = scmp.eq.s32.totalorder %s23, 0
      %p65 = por %p63, %p64
      %p66 = scmp.ne.s32.totalorder %s52, %s53
      %p67 = scmp.eq.s32.totalorder %s24, 3
      %p68 = por %p66, %p67
      %p70 = scmp.ne.s32.totalorder %s53, %s69
      %p71 = scmp.eq.s32.totalorder %s24, 0
      %p72 = por %p70, %p71
      %s73 = ssub.s32 %s18, %s25
      %p74 = scmp.eq.s32.totalorder %s73, 0
      %s76 = sadd.s32 %s75, 1
      %s77 = scalar_select %p74, %s75, %s76
      %p80 = pneg %p74
      %p81 = scmp.eq.s32.totalorder %s18, 3
      %p82 = por %p80, %p81
      %p83 = scmp.ne.s32.totalorder %s75, %s78
      %p84 = scmp.eq.s32.totalorder %s18, 0
      %p85 = por %p83, %p84
      %p86 = scmp.ne.s32.totalorder %s75, %s78
      %p87 = scmp.eq.s32.totalorder %s23, 3
      %p88 = por %p86, %p87
      %p89 = scmp.ne.s32.totalorder %s78, %s79
      %p90 = scmp.eq.s32.totalorder %s23, 0
      %p91 = por %p89, %p90
      %p92 = scmp.ne.s32.totalorder %s78, %s79
      %p93 = scmp.eq.s32.totalorder %s24, 3
      %p94 = por %p92, %p93
      %p96 = scmp.ne.s32.totalorder %s79, %s95
      %p97 = scmp.eq.s32.totalorder %s24, 0
      %p98 = por %p96, %p97
      %s99 = ssub.s32 %s18, %s25
      %p100 = scmp.eq.s32.totalorder %s99, 0
      %s102 = sadd.s32 %s101, 1
      %s103 = scalar_select %p100, %s101, %s102
      %p106 = pneg %p100
      %p107 = scmp.eq.s32.totalorder %s18, 3
      %p108 = por %p106, %p107
      %p109 = scmp.ne.s32.totalorder %s101, %s104
      %p110 = scmp.eq.s32.totalorder %s18, 0
      %p111 = por %p109, %p110
      %p112 = scmp.ne.s32.totalorder %s101, %s104
      %p113 = scmp.eq.s32.totalorder %s23, 3
      %p114 = por %p112, %p113
      %p115 = scmp.ne.s32.totalorder %s104, %s105
      %p116 = scmp.eq.s32.totalorder %s23, 0
      %p117 = por %p115, %p116
      %p118 = scmp.ne.s32.totalorder %s104, %s105
      %p119 = scmp.eq.s32.totalorder %s24, 3
      %p120 = por %p118, %p119
      %p122 = scmp.ne.s32.totalorder %s105, %s121
      %p123 = scmp.eq.s32.totalorder %s24, 0
      %p124 = por %p122, %p123
      %s125 = ssub.s32 %s18, %s25
      %p126 = scmp.eq.s32.totalorder %s125, 0
      %s128 = sadd.s32 %s127, 1
      %s129 = scalar_select %p126, %s127, %s128
      %p132 = pneg %p126
      %p133 = scmp.eq.s32.totalorder %s18, 3
      %p134 = por %p132, %p133
      %p135 = scmp.ne.s32.totalorder %s127, %s130
      %p136 = scmp.eq.s32.totalorder %s18, 0
      %p137 = por %p135, %p136
      %p138 = scmp.ne.s32.totalorder %s127, %s130
      %p139 = scmp.eq.s32.totalorder %s23, 3
      %p140 = por %p138, %p139
      %p141 = scmp.ne.s32.totalorder %s130, %s131
      %p142 = scmp.eq.s32.totalorder %s23, 0
      %p143 = por %p141, %p142
      %p144 = scmp.ne.s32.totalorder %s130, %s131
      %p145 = scmp.eq.s32.totalorder %s24, 3
      %p146 = por %p144, %p145
      %p148 = scmp.ne.s32.totalorder %s131, %s147
      %p149 = scmp.eq.s32.totalorder %s24, 0
      %p150 = por %p148, %p149
      %s151 = ssub.s32 %s18, %s25
      %p152 = scmp.eq.s32.totalorder %s151, 0
      %s154 = sadd.s32 %s153, 1
      %s155 = scalar_select %p152, %s153, %s154
      %p158 = pneg %p152
      %p159 = scmp.eq.s32.totalorder %s18, 3
      %p160 = por %p158, %p159
      %p161 = scmp.ne.s32.totalorder %s153, %s156
      %p162 = scmp.eq.s32.totalorder %s18, 0
      %p163 = por %p161, %p162
      %p164 = scmp.ne.s32.totalorder %s153, %s156
      %p165 = scmp.eq.s32.totalorder %s23, 3
      %p166 = por %p164, %p165
      %p167 = scmp.ne.s32.totalorder %s156, %s157
      %p168 = scmp.eq.s32.totalorder %s23, 0
      %p169 = por %p167, %p168
      %p170 = scmp.ne.s32.totalorder %s156, %s157
      %p171 = scmp.eq.s32.totalorder %s24, 3
      %p172 = por %p170, %p171
      %p174 = scmp.ne.s32.totalorder %s157, %s173
      %p175 = scmp.eq.s32.totalorder %s24, 0
      %p176 = por %p174, %p175
      %p177 = scmp.le.s32.totalorder 1, %s18
      %p178 = scmp.lt.s32.totalorder %s18, 5
      %p179 = pnand %p177, %p178
      %p180 = pneg %p179
      // Predicated region
      $region9: #{ft_net_both_forward.2} parent=5 // pred_check
        _
      $region10: #{ft_net_both_forward.2} parent=5 // pred_check_branch
        %182 = sbr.rel (%p179) target = $region12
      $region11: #{ft_net_both_forward.2} parent=5 // pred_region
        %s183 = ssub.s32 %s18, 1
        // Predicated region
        $region13: #{ft_net_both_forward.2} parent=11 // pred_check
          %p184 = pneg %p39
        $region14: #{ft_net_both_forward.2} parent=11 // pred_check_branch
          %186 = sbr.rel (%p184) target = $region16
        $region15: #{ft_net_both_forward.2} parent=11 // pred_region
          _
        $region16: #{ft_net_both_forward.2} parent=11 // pred_fallthru
          _
      $region12: #{ft_net_both_forward.2} parent=5 // pred_fallthru
        _
      %p187 = scmp.lt.s32.totalorder %s18, 4
      // Predicated region
      $region17: #{ft_net_both_forward.2} parent=5 // pred_check
        %p188 = pneg %p187
      $region18: #{ft_net_both_forward.2} parent=5 // pred_check_branch
        %190 = sbr.rel (%p188) target = $region20
      $region19: #{ft_net_both_forward.2} parent=5 // pred_region
        // Predicated region
        $region21: #{ft_net_both_forward.2} parent=19 // pred_check
          %p191 = pneg %p59
        $region22: #{ft_net_both_forward.2} parent=19 // pred_check_branch
          %193 = sbr.rel (%p191) target = $region24
        $region23: #{ft_net_both_forward.2} parent=19 // pred_region
          %s194 = sand.u32 %s49, 1
          %s195 = scalar_lea.sflag [#allocation3], %s194
          %s196 = sand.u32 %s49, 1
          %s197 = smul.addr %s196, 8
          %s198 = scalar_lea.vmem [#allocation2], %s197
          %s199 = smul.u32 4, %s18
          %s201 = ssub.s32 128, 128
          %202 = vsyncadd %s195, %s201
          %s203 = smul.addr %s199, 32
          %s204 = scalar_lea.hbm %s1, %s203
          %s206 = sshll.u32 %s198, 4
          %s207 = int_to_ptr.vmem [resolvable:$true] %s206
          %209 = dma.hbm_to_vmem [thread:$0]  %s204, 128, %s207, %s195
        $region24: #{ft_net_both_forward.2} parent=19 // pred_fallthru
          _
        // Predicated region
        $region25: #{ft_net_both_forward.2} parent=19 // pred_check
          %p210 = pneg %p85
        $region26: #{ft_net_both_forward.2} parent=19 // pred_check_branch
          %212 = sbr.rel (%p210) target = $region28
        $region27: #{ft_net_both_forward.2} parent=19 // pred_region
          %s213 = sand.u32 %s18, 1
          %s214 = scalar_lea.sflag [#allocation5], %s213
          %s215 = sand.u32 %s75, 1
          %s216 = smul.addr %s215, 4
          %s217 = scalar_lea.vmem [#allocation4], %s216
          %s218 = smul.u32 4, %s18
          %s220 = ssub.s32 64, 64
          %221 = vsyncadd %s214, %s220
          %s222 = smul.addr %s218, 16
          %s223 = scalar_lea.hbm %s2, %s222
          %s225 = sshll.u32 %s217, 4
          %s226 = int_to_ptr.vmem [resolvable:$true] %s225
          %228 = dma.hbm_to_vmem [thread:$0]  %s223, 64, %s226, %s214
        $region28: #{ft_net_both_forward.2} parent=19 // pred_fallthru
          _
        // Predicated region
        $region29: #{ft_net_both_forward.2} parent=19 // pred_check
          %p229 = pneg %p111
        $region30: #{ft_net_both_forward.2} parent=19 // pred_check_branch
          %231 = sbr.rel (%p229) target = $region32
        $region31: #{ft_net_both_forward.2} parent=19 // pred_region
          %s232 = sand.u32 %s18, 1
          %s233 = scalar_lea.sflag [#allocation5], %s232
          %s234 = sand.u32 %s101, 1
          %s235 = smul.addr %s234, 4
          %s236 = scalar_lea.vmem [#allocation6], %s235
          %s237 = smul.u32 4, %s18
          %s239 = ssub.s32 64, 64
          %240 = vsyncadd %s233, %s239
          %s241 = smul.addr %s237, 16
          %s242 = scalar_lea.hbm %s3, %s241
          %s244 = sshll.u32 %s236, 4
          %s245 = int_to_ptr.vmem [resolvable:$true] %s244
          %247 = dma.hbm_to_vmem [thread:$0]  %s242, 64, %s245, %s233
        $region32: #{ft_net_both_forward.2} parent=19 // pred_fallthru
          _
      $region20: #{ft_net_both_forward.2} parent=5 // pred_fallthru
        _
      %p248 = scmp.le.s32.totalorder 1, %s18
      %p249 = scmp.lt.s32.totalorder %s18, 5
      %p250 = pnand %p248, %p249
      %p251 = pneg %p250
      // Predicated region
      $region33: #{ft_net_both_forward.2} parent=5 // pred_check
        _
      $region34: #{ft_net_both_forward.2} parent=5 // pred_check_branch
        %253 = sbr.rel (%p250) target = $region36
      $region35: #{ft_net_both_forward.2} parent=5 // pred_region
        %s254 = ssub.s32 %s18, 1
        %s255 = sand.u32 %s52, 1
        %s256 = scalar_lea.sflag [#allocation3], %s255
        %s257 = sand.u32 %s52, 1
        %s258 = smul.addr %s257, 8
        %s259 = scalar_lea.vmem [#allocation2], %s258
        // Predicated region
        $region37: #{ft_net_both_forward.2} parent=35 // pred_check
          %p260 = pneg %p65
        $region38: #{ft_net_both_forward.2} parent=35 // pred_check_branch
          %262 = sbr.rel (%p260) target = $region40
        $region39: #{ft_net_both_forward.2} parent=35 // pred_region
          %263 = dma.done %s256, 128
        $region40: #{ft_net_both_forward.2} parent=35 // pred_fallthru
          _
        %s264 = sand.u32 %s23, 1
        %s265 = scalar_lea.sflag [#allocation5], %s264
        %s266 = sand.u32 %s78, 1
        %s267 = smul.addr %s266, 4
        %s268 = scalar_lea.vmem [#allocation4], %s267
        // Predicated region
        $region41: #{ft_net_both_forward.2} parent=35 // pred_check
          %p269 = pneg %p91
        $region42: #{ft_net_both_forward.2} parent=35 // pred_check_branch
          %271 = sbr.rel (%p269) target = $region44
        $region43: #{ft_net_both_forward.2} parent=35 // pred_region
          %272 = dma.done %s265, 64
        $region44: #{ft_net_both_forward.2} parent=35 // pred_fallthru
          _
        %s273 = sand.u32 %s23, 1
        %s274 = scalar_lea.sflag [#allocation5], %s273
        %s275 = sand.u32 %s104, 1
        %s276 = smul.addr %s275, 4
        %s277 = scalar_lea.vmem [#allocation6], %s276
        // Predicated region
        $region45: #{ft_net_both_forward.2} parent=35 // pred_check
          %p278 = pneg %p117
        $region46: #{ft_net_both_forward.2} parent=35 // pred_check_branch
          %280 = sbr.rel (%p278) target = $region48
        $region47: #{ft_net_both_forward.2} parent=35 // pred_region
          %281 = dma.done %s274, 64
        $region48: #{ft_net_both_forward.2} parent=35 // pred_fallthru
          _
        %p282 = pneg %p39
        %p283 = pneg %p36
        %s284 = sand.u32 %s52, 1
        %s285 = scalar_lea.sflag [#allocation3], %s284
        %s286 = sand.u32 %s52, 1
        %s287 = smul.addr %s286, 8
        %s288 = scalar_lea.vmem [#allocation2], %s287
        %p289 = pneg %p65
        %p290 = pneg %p62
        %s291 = sand.u32 %s23, 1
        %s292 = scalar_lea.sflag [#allocation5], %s291
        %s293 = sand.u32 %s78, 1
        %s294 = smul.addr %s293, 4
        %s295 = scalar_lea.vmem [#allocation4], %s294
        %p296 = pneg %p91
        %p297 = pneg %p88
        %s298 = sand.u32 %s23, 1
        %s299 = scalar_lea.sflag [#allocation5], %s298
        %s300 = sand.u32 %s104, 1
        %s301 = smul.addr %s300, 4
        %s302 = scalar_lea.vmem [#allocation6], %s301
        %p303 = pneg %p117
        %p304 = pneg %p114
        %p305 = pneg %p143
        %p306 = pneg %p140
        %s307 = sand.u32 %s130, 1
        %s308 = sand.u32 %s130, 1
        %s309 = smul.addr %s308, 64
        %s310 = scalar_lea.vmem [#allocation7], %s309
        %p311 = pneg %p169
        %p312 = pneg %p166
        %s313 = sand.u32 %s156, 1
        %s314 = sand.u32 %s156, 1
        %s315 = smul.addr %s314, 32
        %s316 = scalar_lea.vmem [#allocation8], %s315
        %s317 = smul.u32 4, %s23
        %s318 = smul.u32 4, %s23
        %s319 = smul.u32 4, %s23
        %s320 = smul.u32 4, %s23
        %s321 = smul.u32 4, %s23
        %v323 = vld [vmem:[%s0] sm:$0xff]
        %v324 = vld [vmem:[%s0 + $0x8] sm:$0xff]
        %v325 = vpack.c.bf16 %v324, %v323
        %v326 = vld [vmem:[%s259] sm:$0xff]
        %v328 = vcombine.high %v326, %v326
        %v330 = vunpack.c.l.s4 1983009808
        %v331 = vunpack.c.0.s8 %v330
        %v332 = vlaneseq
        %v333 = vshrl.u32 %v332, 7
        %v334 = vsub.s32 %v331, %v333
        %v335 = vrot.slane %v326, %v334
        %v337 = vunpack.c.l.s4 1983009808
        %v338 = vunpack.c.0.s8 %v337
        %v339 = vlaneseq
        %v340 = vshrl.u32 %v339, 7
        %v341 = vsub.s32 %v338, %v340
        %v342 = vrot.slane %v328, %v341
        %v343 = vcombine.high %v335, %v335
        %v344 = vcombine.high %v342, %v342
        %vm345 = vcmask 31744
        %v347 = vsel %vm345, %v325, 0
        %vm349 = vcmask 1041408
        %v351 = vsel %vm349, %v335, 0
        %v354 = vsel %vm349, %v343, 0
        %v357 = vsel %vm349, %v342, 0
        %v360 = vsel %vm349, %v344, 0
        %362 = vmatprep.subr.bf16.mxu0 0
        %363 = vmatpush1.bf16.msra.mxu0 0
        %364 = vmatprep.subr.bf16.mxu0 0
        %365 = vmatpush1.bf16.msra.mxu0 0
        %366 = vmatprep.subr.bf16.mxu0 0
        %367 = vmatpush1.bf16.msra.mxu0 0
        %368 = vmatprep.subr.bf16.mxu0 0
        %369 = vmatpush1.bf16.msra.mxu0 0
        %370 = vmatprep.subr.bf16.mxu0 0
        %371 = vmatpush1.bf16.msra.mxu0 0
        %372 = vmatprep.subr.bf16.mxu0 0
        %373 = vmatpush1.bf16.msra.mxu0 0
        %374 = vmatprep.subr.bf16.mxu0 0
        %375 = vmatpush1.bf16.msra.mxu0 0
        %376 = vmatprep.subr.bf16.mxu0 %v354
        %377 = vmatpush1.bf16.msra.mxu0 %v351
        %378 = vmatprep.subr.bf16.mxu0 0
        %379 = vmatpush2.bf16.msra.mxu0 0
        %380 = vmatprep.subr.bf16.mxu0 0
        %381 = vmatpush2.bf16.msra.mxu0 0
        %382 = vmatprep.subr.bf16.mxu0 0
        %383 = vmatpush2.bf16.msra.mxu0 0
        %384 = vmatprep.subr.bf16.mxu0 0
        %385 = vmatpush2.bf16.msra.mxu0 0
        %386 = vmatprep.subr.bf16.mxu0 0
        %387 = vmatpush2.bf16.msra.mxu0 0
        %388 = vmatprep.subr.bf16.mxu0 0
        %389 = vmatpush2.bf16.msra.mxu0 0
        %390 = vmatprep.subr.bf16.mxu0 0
        %391 = vmatpush2.bf16.msra.mxu0 0
        %392 = vmatprep.subr.bf16.mxu0 0
        %393 = vmatpush2.bf16.msra.mxu0 0
        %394 = vmatprep.mubr.bf16.mxu0 0
        %395 = vmatmul.mubr.bf16.gmra.mxu0 %v347
        %v396 = vpop.f32.mrf.mxu0
        %v397 = vadd.f32 0.0, %v396
        %v398 = vpop.f32.mrf.mxu0
        %v399 = vadd.f32 0.0, %v398
        %v400 = vpop.f32.mrf.mxu0
        %v401 = vadd.f32 0.0, %v400
        %v402 = vpop.f32.mrf.mxu0
        %v403 = vadd.f32 0.0, %v402
        %404 = vdwg.mxu0
        %405 = vmatprep.subr.bf16.mxu0 0
        %406 = vmatpush1.bf16.msra.mxu0 0
        %407 = vmatprep.subr.bf16.mxu0 0
        %408 = vmatpush1.bf16.msra.mxu0 0
        %409 = vmatprep.subr.bf16.mxu0 0
        %410 = vmatpush1.bf16.msra.mxu0 0
        %411 = vmatprep.subr.bf16.mxu0 0
        %412 = vmatpush1.bf16.msra.mxu0 0
        %413 = vmatprep.subr.bf16.mxu0 0
        %414 = vmatpush1.bf16.msra.mxu0 0
        %415 = vmatprep.subr.bf16.mxu0 0
        %416 = vmatpush1.bf16.msra.mxu0 0
        %417 = vmatprep.subr.bf16.mxu0 0
        %418 = vmatpush1.bf16.msra.mxu0 0
        %419 = vmatprep.subr.bf16.mxu0 %v360
        %420 = vmatpush1.bf16.msra.mxu0 %v357
        %421 = vmatprep.subr.bf16.mxu0 0
        %422 = vmatpush2.bf16.msra.mxu0 0
        %423 = vmatprep.subr.bf16.mxu0 0
        %424 = vmatpush2.bf16.msra.mxu0 0
        %425 = vmatprep.subr.bf16.mxu0 0
        %426 = vmatpush2.bf16.msra.mxu0 0
        %427 = vmatprep.subr.bf16.mxu0 0
        %428 = vmatpush2.bf16.msra.mxu0 0
        %429 = vmatprep.subr.bf16.mxu0 0
        %430 = vmatpush2.bf16.msra.mxu0 0
        %431 = vmatprep.subr.bf16.mxu0 0
        %432 = vmatpush2.bf16.msra.mxu0 0
        %433 = vmatprep.subr.bf16.mxu0 0
        %434 = vmatpush2.bf16.msra.mxu0 0
        %435 = vmatprep.subr.bf16.mxu0 0
        %436 = vmatpush2.bf16.msra.mxu0 0
        %437 = vmatprep.mubr.bf16.mxu0 0
        %438 = vmatmul.mubr.bf16.gmra.mxu0 %v347
        %v439 = vpop.f32.mrf.mxu0
        %v440 = vadd.f32 0.0, %v439
        %v441 = vpop.f32.mrf.mxu0
        %v442 = vadd.f32 0.0, %v441
        %v443 = vpop.f32.mrf.mxu0
        %v444 = vadd.f32 0.0, %v443
        %v445 = vpop.f32.mrf.mxu0
        %v446 = vadd.f32 0.0, %v445
        %447 = vdwg.mxu0
        %448 = vst [vmem:[%s310] sm:$0xff] %v397
        %449 = vst [vmem:[%s310 + $0x8] sm:$0xff] %v399
        %450 = vst [vmem:[%s310 + $0x10] sm:$0xff] %v440
        %451 = vst [vmem:[%s310 + $0x18] sm:$0xff] %v442
        %452 = vst [vmem:[%s310 + $0x20] sm:$0xff] %v401
        %453 = vst [vmem:[%s310 + $0x28] sm:$0xff] %v403
        %454 = vst [vmem:[%s310 + $0x30] sm:$0xff] %v444
        %455 = vst [vmem:[%s310 + $0x38] sm:$0xff] %v446
        %v456 = vlaneseq
        %v457 = vshrl.u32 %v456, 7
        %v458 = vadd.s32 %v457, 8
        %vm459 = vcmp.lt.s32.totalorder %v457, 2
        %vm460 = vcmp.lt.s32.totalorder %v458, 2
        %v461 = vsel %vm459, 1, 0
        %v462 = vsel %vm460, 1, 0
        %v463 = vcvt.s32.f32 %v461
        %v464 = vcvt.s32.f32 %v462
        %v465 = vadd.f32 %v397, %v401
        %v466 = vrot.slane %v465, 4
        %v467 = vadd.f32 %v465, %v466
        %v468 = vrot.slane %v467, 2
        %v469 = vadd.f32 %v467, %v468
        %v470 = vrot.slane %v469, 1
        %v471 = vadd.f32 %v469, %v470
        %v472 = vadd.f32 %v399, %v403
        %v473 = vrot.slane %v472, 4
        %v474 = vadd.f32 %v472, %v473
        %v475 = vrot.slane %v474, 2
        %v476 = vadd.f32 %v474, %v475
        %v477 = vrot.slane %v476, 1
        %v478 = vadd.f32 %v476, %v477
        %v479 = vadd.f32 %v440, %v444
        %v480 = vrot.slane %v479, 4
        %v481 = vadd.f32 %v479, %v480
        %v482 = vrot.slane %v481, 2
        %v483 = vadd.f32 %v481, %v482
        %v484 = vrot.slane %v483, 1
        %v485 = vadd.f32 %v483, %v484
        %v486 = vadd.f32 %v442, %v446
        %v487 = vrot.slane %v486, 4
        %v488 = vadd.f32 %v486, %v487
        %v489 = vrot.slane %v488, 2
        %v490 = vadd.f32 %v488, %v489
        %v491 = vrot.slane %v490, 1
        %v492 = vadd.f32 %v490, %v491
        %v493 = vmul.f32 %v471, 0.5
        %v494 = vmul.f32 %v478, 0.5
        %v495 = vmul.f32 %v485, 0.5
        %v496 = vmul.f32 %v492, 0.5
        %v497 = vsub.f32 %v397, %v493
        %v498 = vsub.f32 %v399, %v494
        %v499 = vsub.f32 %v440, %v495
        %v500 = vsub.f32 %v442, %v496
        %v501 = vsub.f32 %v401, %v493
        %v502 = vsub.f32 %v403, %v494
        %v503 = vsub.f32 %v444, %v495
        %v504 = vsub.f32 %v446, %v496
        %v505 = vmul.f32 %v497, %v463
        %v506 = vmul.f32 %v498, %v463
        %v507 = vmul.f32 %v499, %v463
        %v508 = vmul.f32 %v500, %v463
        %v509 = vmul.f32 %v501, %v464
        %v510 = vmul.f32 %v502, %v464
        %v511 = vmul.f32 %v503, %v464
        %v512 = vmul.f32 %v504, %v464
        %v513 = vmul.f32 %v505, %v505
        %v514 = vmul.f32 %v506, %v506
        %v515 = vmul.f32 %v507, %v507
        %v516 = vmul.f32 %v508, %v508
        %v517 = vmul.f32 %v509, %v509
        %v518 = vmul.f32 %v510, %v510
        %v519 = vmul.f32 %v511, %v511
        %v520 = vmul.f32 %v512, %v512
        %v521 = vadd.f32 %v513, %v517
        %v522 = vrot.slane %v521, 4
        %v523 = vadd.f32 %v521, %v522
        %v524 = vrot.slane %v523, 2
        %v525 = vadd.f32 %v523, %v524
        %v526 = vrot.slane %v525, 1
        %v527 = vadd.f32 %v525, %v526
        %v528 = vadd.f32 %v514, %v518
        %v529 = vrot.slane %v528, 4
        %v530 = vadd.f32 %v528, %v529
        %v531 = vrot.slane %v530, 2
        %v532 = vadd.f32 %v530, %v531
        %v533 = vrot.slane %v532, 1
        %v534 = vadd.f32 %v532, %v533
        %v535 = vadd.f32 %v515, %v519
        %v536 = vrot.slane %v535, 4
        %v537 = vadd.f32 %v535, %v536
        %v538 = vrot.slane %v537, 2
        %v539 = vadd.f32 %v537, %v538
        %v540 = vrot.slane %v539, 1
        %v541 = vadd.f32 %v539, %v540
        %v542 = vadd.f32 %v516, %v520
        %v543 = vrot.slane %v542, 4
        %v544 = vadd.f32 %v542, %v543
        %v545 = vrot.slane %v544, 2
        %v546 = vadd.f32 %v544, %v545
        %v547 = vrot.slane %v546, 1
        %v548 = vadd.f32 %v546, %v547
        %v549 = vmul.f32 %v527, 0.5
        %v550 = vmul.f32 %v534, 0.5
        %v551 = vmul.f32 %v541, 0.5
        %v552 = vmul.f32 %v548, 0.5
        %v553 = vadd.f32 %v549, 1e-05
        %v554 = vadd.f32 %v550, 1e-05
        %v555 = vadd.f32 %v551, 1e-05
        %v556 = vadd.f32 %v552, 1e-05
        %v557 = vrsqrt.pop %v553
        %v558 = vrsqrt.pop %v554
        %v559 = vrsqrt.pop %v555
        %v560 = vrsqrt.pop %v556
        %v561 = vmul.f32 %v505, %v557
        %v562 = vmul.f32 %v506, %v558
        %v563 = vmul.f32 %v507, %v559
        %v564 = vmul.f32 %v508, %v560
        %v565 = vmul.f32 %v509, %v557
        %v566 = vmul.f32 %v510, %v558
        %v567 = vmul.f32 %v511, %v559
        %v568 = vmul.f32 %v512, %v560
        %v569 = vld [vmem:[%s268] sm:$0xf]
        %v571 = vlaneseq
        %v572 = vshrl.u32 %v571, 7
        %v573 = vsub.s32 0, %v572
        %v574 = vrot.slane %v569, %v573
        %v575 = vlaneseq
        %v576 = vshrl.u32 %v575, 7
        %v577 = vsub.s32 1, %v576
        %v578 = vrot.slane %v569, %v577
        %v579 = vlaneseq
        %v580 = vshrl.u32 %v579, 7
        %v581 = vsub.s32 2, %v580
        %v582 = vrot.slane %v569, %v581
        %v583 = vlaneseq
        %v584 = vshrl.u32 %v583, 7
        %v585 = vsub.s32 3, %v584
        %v586 = vrot.slane %v569, %v585
        %v591 = vmul.f32 %v561, %v574
        %v592 = vmul.f32 %v562, %v578
        %v593 = vmul.f32 %v563, %v582
        %v594 = vmul.f32 %v564, %v586
        %v595 = vmul.f32 %v565, %v574
        %v596 = vmul.f32 %v566, %v578
        %v597 = vmul.f32 %v567, %v582
        %v598 = vmul.f32 %v568, %v586
        %v599 = vld [vmem:[%s277] sm:$0xf]
        %v601 = vlaneseq
        %v602 = vshrl.u32 %v601, 7
        %v603 = vsub.s32 0, %v602
        %v604 = vrot.slane %v599, %v603
        %v605 = vlaneseq
        %v606 = vshrl.u32 %v605, 7
        %v607 = vsub.s32 1, %v606
        %v608 = vrot.slane %v599, %v607
        %v609 = vlaneseq
        %v610 = vshrl.u32 %v609, 7
        %v611 = vsub.s32 2, %v610
        %v612 = vrot.slane %v599, %v611
        %v613 = vlaneseq
        %v614 = vshrl.u32 %v613, 7
        %v615 = vsub.s32 3, %v614
        %v616 = vrot.slane %v599, %v615
        %v621 = vadd.f32 %v591, %v604
        %v622 = vadd.f32 %v592, %v608
        %v623 = vadd.f32 %v593, %v612
        %v624 = vadd.f32 %v594, %v616
        %v625 = vadd.f32 %v595, %v604
        %v626 = vadd.f32 %v596, %v608
        %v627 = vadd.f32 %v597, %v612
        %v628 = vadd.f32 %v598, %v616
        %v629 = vmul.f32 %v621, %v463
        %v630 = vmul.f32 %v622, %v463
        %v631 = vmul.f32 %v623, %v463
        %v632 = vmul.f32 %v624, %v463
        %v633 = vmul.f32 %v625, %v464
        %v634 = vmul.f32 %v626, %v464
        %v635 = vmul.f32 %v627, %v464
        %v636 = vmul.f32 %v628, %v464
        %v637 = vpack.c.bf16 %v633, %v629
        %v638 = vpack.c.bf16 %v634, %v630
        %v639 = vpack.c.bf16 %v635, %v631
        %v640 = vpack.c.bf16 %v636, %v632
        %v645 = vunpack.c.l.b16 %v637
        %v646 = vunpack.c.l.b16 %v638
        %v647 = vunpack.c.l.b16 %v639
        %v648 = vunpack.c.l.b16 %v640
        %v649 = vunpack.c.h.b16 %v637
        %v650 = vunpack.c.h.b16 %v638
        %v651 = vunpack.c.h.b16 %v639
        %v652 = vunpack.c.h.b16 %v640
        %v653 = vpack.c.b16 %v646, %v645
        %v654 = vpack.c.b16 %v648, %v647
        %v655 = vpack.c.b16 %v650, %v649
        %v656 = vpack.c.b16 %v652, %v651
        %661 = vst [vmem:[%s316] sm:$0xff] %v653
        %662 = vst [vmem:[%s316 + $0x8] sm:$0xff] %v654
        %663 = vst [vmem:[%s316 + $0x10] sm:$0xff] %v655
        %664 = vst [vmem:[%s316 + $0x18] sm:$0xff] %v656
        %s665 = sand.u32 %s130, 1
        %s666 = sand.u32 %s130, 1
        %s667 = smul.addr %s666, 64
        %s668 = scalar_lea.vmem [#allocation7], %s667
        %s669 = sand.u32 %s156, 1
        %s670 = sand.u32 %s156, 1
        %s671 = smul.addr %s670, 32
        %s672 = scalar_lea.vmem [#allocation8], %s671
        // Predicated region
        $region49: #{ft_net_both_forward.2} parent=35 // pred_check
          %p673 = pneg %p140
        $region50: #{ft_net_both_forward.2} parent=35 // pred_check_branch
          %675 = sbr.rel (%p673) target = $region52
        $region51: #{ft_net_both_forward.2} parent=35 // pred_region
          %s676 = smul.u32 4, %s23
          %s677 = smul.addr %s676, 8
          %s678 = scalar_lea.vmem %s4, %s677
          // Predicated region
          $region53: #{ft_net_both_forward.2} parent=51 // pred_check
            _
          $region54: #{ft_net_both_forward.2} parent=51 // pred_check_branch
            %680 = sbr.rel (0) target = $region56
          $region55: #{ft_net_both_forward.2} parent=51 // pred_region
            // Predicated region
            $region57: #{ft_net_both_forward.2} parent=55 // pred_check
              _
            $region58: #{ft_net_both_forward.2} parent=55 // pred_check_branch
              %682 = sbr.rel (0) target = $region60
            $region59: #{ft_net_both_forward.2} parent=55 // pred_region
              loop: start=0, step=1, limit=1
              $region61: #{ft_net_both_forward.2} parent=59 // loop_pre_header
                _
              $region62: #{ft_net_both_forward.2} parent=59 // loop_header
                %s684 = sphi 0, %s688
                %p685 = scmp.ge.s32.totalorder %s684, 1
                %s689 = sphi %s668, %s668
                %s690 = sphi %s678, %s678
              $region63: #{ft_net_both_forward.2} parent=59 // loop_header_branch
                %687 = sbr.rel (%p685) target = $region67
              $region64: #{ft_net_both_forward.2} parent=59 // loop_body
                %v691 = vld [vmem:[%s689] sm:$0xff]
                %692 = vst [vmem:[%s690] sm:$0xff] %v691
                %v693 = vld [vmem:[%s689 + $0x8] sm:$0xff]
                %694 = vst [vmem:[%s690 + $0x8] sm:$0xff] %v693
                %v695 = vld [vmem:[%s689 + $0x10] sm:$0xff]
                %696 = vst [vmem:[%s690 + $0x10] sm:$0xff] %v695
                %v697 = vld [vmem:[%s689 + $0x18] sm:$0xff]
                %698 = vst [vmem:[%s690 + $0x18] sm:$0xff] %v697
                %v699 = vld [vmem:[%s689 + $0x20] sm:$0xff]
                %700 = vst [vmem:[%s690 + $0x80] sm:$0xff] %v699
                %v701 = vld [vmem:[%s689 + $0x28] sm:$0xff]
                %702 = vst [vmem:[%s690 + $0x88] sm:$0xff] %v701
                %v703 = vld [vmem:[%s689 + $0x30] sm:$0xff]
                %704 = vst [vmem:[%s690 + $0x90] sm:$0xff] %v703
                %v705 = vld [vmem:[%s689 + $0x38] sm:$0xff]
                %706 = vst [vmem:[%s690 + $0x98] sm:$0xff] %v705
              $region65: #{ft_net_both_forward.2} parent=59 // loop_footer
                %s688 = sadd.s32 1, %s684
              $region66: #{ft_net_both_forward.2} parent=59 // loop_footer_branch
                %683 = sbr.rel target = $region62
              $region67: #{ft_net_both_forward.2} parent=59 // loop_exit
                _
            $region60: #{ft_net_both_forward.2} parent=55 // pred_fallthru
              _
            // Predicated region
            $region68: #{ft_net_both_forward.2} parent=55 // pred_check
              _
            $region69: #{ft_net_both_forward.2} parent=55 // pred_check_branch
              %708 = sbr.rel target = $region71
            $region70: #{ft_net_both_forward.2} parent=55 // pred_region
              _
            $region71: #{ft_net_both_forward.2} parent=55 // pred_fallthru
              _
          $region56: #{ft_net_both_forward.2} parent=51 // pred_fallthru
            _
          %709 = vnop
        $region52: #{ft_net_both_forward.2} parent=35 // pred_fallthru
          _
        // Predicated region
        $region72: #{ft_net_both_forward.2} parent=35 // pred_check
          %p710 = pneg %p166
        $region73: #{ft_net_both_forward.2} parent=35 // pred_check_branch
          %712 = sbr.rel (%p710) target = $region75
        $region74: #{ft_net_both_forward.2} parent=35 // pred_region
          %s713 = smul.u32 4, %s23
          %s714 = smul.addr %s713, 4
          %s715 = scalar_lea.vmem %s5, %s714
          // Predicated region
          $region76: #{ft_net_both_forward.2} parent=74 // pred_check
            _
          $region77: #{ft_net_both_forward.2} parent=74 // pred_check_branch
            %717 = sbr.rel (0) target = $region79
          $region78: #{ft_net_both_forward.2} parent=74 // pred_region
            // Predicated region
            $region80: #{ft_net_both_forward.2} parent=78 // pred_check
              _
            $region81: #{ft_net_both_forward.2} parent=78 // pred_check_branch
              %719 = sbr.rel (0) target = $region83
            $region82: #{ft_net_both_forward.2} parent=78 // pred_region
              loop: start=0, step=1, limit=1
              $region84: #{ft_net_both_forward.2} parent=82 // loop_pre_header
                _
              $region85: #{ft_net_both_forward.2} parent=82 // loop_header
                %s721 = sphi 0, %s725
                %p722 = scmp.ge.s32.totalorder %s721, 1
                %s726 = sphi %s672, %s672
                %s727 = sphi %s715, %s715
              $region86: #{ft_net_both_forward.2} parent=82 // loop_header_branch
                %724 = sbr.rel (%p722) target = $region90
              $region87: #{ft_net_both_forward.2} parent=82 // loop_body
                %v728 = vld [vmem:[%s726] sm:$0xff]
                %729 = vst [vmem:[%s727] sm:$0xff] %v728
                %v730 = vld [vmem:[%s726 + $0x8] sm:$0xff]
                %731 = vst [vmem:[%s727 + $0x8] sm:$0xff] %v730
                %v732 = vld [vmem:[%s726 + $0x10] sm:$0xff]
                %733 = vst [vmem:[%s727 + $0x40] sm:$0xff] %v732
                %v734 = vld [vmem:[%s726 + $0x18] sm:$0xff]
                %735 = vst [vmem:[%s727 + $0x48] sm:$0xff] %v734
              $region88: #{ft_net_both_forward.2} parent=82 // loop_footer
                %s725 = sadd.s32 1, %s721
              $region89: #{ft_net_both_forward.2} parent=82 // loop_footer_branch
                %720 = sbr.rel target = $region85
              $region90: #{ft_net_both_forward.2} parent=82 // loop_exit
                _
            $region83: #{ft_net_both_forward.2} parent=78 // pred_fallthru
              _
            // Predicated region
            $region91: #{ft_net_both_forward.2} parent=78 // pred_check
              _
            $region92: #{ft_net_both_forward.2} parent=78 // pred_check_branch
              %737 = sbr.rel target = $region94
            $region93: #{ft_net_both_forward.2} parent=78 // pred_region
              _
            $region94: #{ft_net_both_forward.2} parent=78 // pred_fallthru
              _
          $region79: #{ft_net_both_forward.2} parent=74 // pred_fallthru
            _
          %738 = vnop
        $region75: #{ft_net_both_forward.2} parent=35 // pred_fallthru
          _
      $region36: #{ft_net_both_forward.2} parent=5 // pred_fallthru
        _
      %p739 = scmp.le.s32.totalorder 2, %s18
      // Predicated region
      $region95: #{ft_net_both_forward.2} parent=5 // pred_check
        %p740 = pneg %p739
      $region96: #{ft_net_both_forward.2} parent=5 // pred_check_branch
        %742 = sbr.rel (%p740) target = $region98
      $region97: #{ft_net_both_forward.2} parent=5 // pred_region
        %s743 = ssub.s32 %s18, 2
        // Predicated region
        $region99: #{ft_net_both_forward.2} parent=97 // pred_check
          %p744 = pneg %p146
        $region100: #{ft_net_both_forward.2} parent=97 // pred_check_branch
          %746 = sbr.rel (%p744) target = $region102
        $region101: #{ft_net_both_forward.2} parent=97 // pred_region
          %s747 = sand.u32 %s131, 1
          %s748 = sand.u32 %s131, 1
          %s749 = smul.addr %s748, 64
          %s750 = scalar_lea.vmem [#allocation7], %s749
        $region102: #{ft_net_both_forward.2} parent=97 // pred_fallthru
          _
        // Predicated region
        $region103: #{ft_net_both_forward.2} parent=97 // pred_check
          %p751 = pneg %p172
        $region104: #{ft_net_both_forward.2} parent=97 // pred_check_branch
          %753 = sbr.rel (%p751) target = $region106
        $region105: #{ft_net_both_forward.2} parent=97 // pred_region
          %s754 = sand.u32 %s157, 1
          %s755 = sand.u32 %s157, 1
          %s756 = smul.addr %s755, 32
          %s757 = scalar_lea.vmem [#allocation8], %s756
        $region106: #{ft_net_both_forward.2} parent=97 // pred_fallthru
          _
      $region98: #{ft_net_both_forward.2} parent=5 // pred_fallthru
        _
    $region6: #{ft_net_both_forward.2} parent=1 // loop_footer
      %s22 = sadd.s32 1, %s18
    $region7: #{ft_net_both_forward.2} parent=1 // loop_footer_branch
      %17 = sbr.rel target = $region3
    $region8: #{ft_net_both_forward.2} parent=1 // loop_exit
      _
    %758 = vsyncpa [#allocation3], 1
    %s759 = scalar_lea.sflag [#allocation3], 1
    %760 = vsyncpa %s759, 1
    %761 = vsyncpa [#allocation5], 1
    %s762 = scalar_lea.sflag [#allocation5], 1
    %763 = vsyncpa %s762, 1

// kernel: ft_net_both_forward.3
$region0: #{ft_net_both_forward.3}
  #allocation0 [shape = 'u32[]', space=smem, size = 0x4, offset = 0x4, fixed_abs, tag = 'smem constant byte address 0x4 - core index']
  #allocation1 [shape = 'u32[144,128]{1,0:T(1,128)}', space=vmem, size = 0x12000, scoped, tag = 'internal scratch']
  #allocation2 [shape = 's32[1]{0}', space=sflag, size = 0x4, scoped, tag = 'scoped memory for ft_net_both_forward.3']
  #allocation3 [shape = 'u8[512]{0}', space=smem, size = 0x200, scoped, tag = 'prefetched SMEM operand 0']
  #allocation4 [shape = 'u8[512]{0}', space=smem, size = 0x200, scoped, tag = 'prefetched SMEM operand 1']
  #allocation5 [shape = 'u8[512]{0}', space=smem, size = 0x200, scoped, tag = 'prefetched SMEM operand 2']
  #allocation6 [shape = 'u8[512]{0}', space=smem, size = 0x200, scoped, tag = 'prefetched SMEM operand 3']
  %s0 = inlined_call_operand.vmem [shape: s32[4], index: 0, kind: input, shape index: {}]
  %s1 = inlined_call_operand.vmem [shape: s32[4], index: 1, kind: input, shape index: {}]
  %s2 = inlined_call_operand.vmem [shape: s32[4], index: 2, kind: input, shape index: {}]
  %s3 = inlined_call_operand.vmem [shape: s32[4], index: 3, kind: input, shape index: {}]
  %s4 = inlined_call_operand.vmem [shape: s32[16,1], index: 4, kind: input, shape index: {}]
  %s5 = inlined_call_operand.vmem [shape: s32[16,1], index: 5, kind: input, shape index: {}]
  %s6 = inlined_call_operand.vmem [shape: bf16[16,2048], index: 6, kind: input, shape index: {}]
  %s7 = inlined_call_operand.hbm [shape: bf16[2048,512], index: 7, kind: input, shape index: {}]
  %s8 = inlined_call_operand.vmem [shape: f32[16,512], index: 8, kind: output, shape index: {}]
  %s9 = sld [smem:[#allocation0]]
  $region95: #{ft_net_both_forward.3} parent=0
    _
  %s11 = ssub.s32 1, %s9
  %s12 = scalar_select 0, %s11, %s9
  %s13 = sshll.u32 %s0, 4
  %s14 = int_to_ptr.vmem [resolvable:$true] %s13
  %16 = dma.vmem_to_smem %s14, 16, [#allocation3], [#allocation2]
  %s17 = sshll.u32 %s1, 4
  %s18 = int_to_ptr.vmem [resolvable:$true] %s17
  %20 = dma.vmem_to_smem %s18, 16, [#allocation4], [#allocation2]
  %s21 = sshll.u32 %s2, 4
  %s22 = int_to_ptr.vmem [resolvable:$true] %s21
  %24 = dma.vmem_to_smem %s22, 16, [#allocation5], [#allocation2]
  %s25 = sshll.u32 %s3, 4
  %s26 = int_to_ptr.vmem [resolvable:$true] %s25
  %28 = dma.vmem_to_smem %s26, 16, [#allocation6], [#allocation2]
  %29 = dma.done [#allocation2], 64
  %30 = sfence
  $region1: #{ft_net_both_forward.3} parent=0
    #allocation7 [shape = 'u8[1048576]{0}', space=vmem, size = 0x100000, scoped, tag = 'input window, operand 7']
    #allocation8 [shape = 's32[2]{0}', space=sflag, size = 0x8, scoped, tag = 'scoped memory for ft_net_both_forward.3']
    #allocation9 [shape = 'u8[16384]{0}', space=vmem, size = 0x4000, scoped, tag = 'output window, operand 0']
    %31 = vsyncpa [#allocation8], 0
    %s32 = scalar_lea.sflag [#allocation8], 1
    %33 = vsyncpa %s32, 0
    loop: start=0, step=1, limit=6
    $region2: #{ft_net_both_forward.3} parent=1 // loop_pre_header
      _
    $region3: #{ft_net_both_forward.3} parent=1 // loop_header
      %s35 = sphi 0, %s39
      %p36 = scmp.ge.s32.totalorder %s35, 6
      %s43 = sphi 0, %s43
      %s45 = sphi 0, %s43
      %s46 = sphi 0, %s45
      %s60 = sphi 0, %s46
      %s64 = sphi 0, %s64
      %s66 = sphi 0, %s64
      %s67 = sphi 0, %s66
      %s81 = sphi 0, %s67
      %s85 = sphi 0, %s85
      %s87 = sphi 0, %s85
      %s88 = sphi 0, %s87
      %s102 = sphi 0, %s88
      %s110 = sphi 0, %s112
      %s113 = sphi 0, %s110
      %s114 = sphi 0, %s113
      %s130 = sphi 0, %s114
      %s136 = sphi 0, %s138
      %s139 = sphi 0, %s136
      %s140 = sphi 0, %s139
      %s156 = sphi 0, %s140
    $region4: #{ft_net_both_forward.3} parent=1 // loop_header_branch
      %38 = sbr.rel (%p36) target = $region8
    $region5: #{ft_net_both_forward.3} parent=1 // loop_body
      %s40 = ssub.s32 %s35, 1
      %s41 = ssub.s32 %s35, 2
      %s42 = sadd.s32 %s35, 1
      %s44 = sadd.s32 %s43, 1
      %p47 = scmp.eq.s32.totalorder %s35, 3
      %p48 = scmp.ne.s32.totalorder %s43, %s45
      %p49 = scmp.eq.s32.totalorder %s35, 0
      %p50 = por %p48, %p49
      %p51 = scmp.ne.s32.totalorder %s43, %s45
      %p52 = scmp.eq.s32.totalorder %s40, 3
      %p53 = por %p51, %p52
      %p54 = scmp.ne.s32.totalorder %s45, %s46
      %p55 = scmp.eq.s32.totalorder %s40, 0
      %p56 = por %p54, %p55
      %p57 = scmp.ne.s32.totalorder %s45, %s46
      %p58 = scmp.eq.s32.totalorder %s41, 3
      %p59 = por %p57, %p58
      %p61 = scmp.ne.s32.totalorder %s46, %s60
      %p62 = scmp.eq.s32.totalorder %s41, 0
      %p63 = por %p61, %p62
      %s65 = sadd.s32 %s64, 1
      %p68 = scmp.eq.s32.totalorder %s35, 3
      %p69 = scmp.ne.s32.totalorder %s64, %s66
      %p70 = scmp.eq.s32.totalorder %s35, 0
      %p71 = por %p69, %p70
      %p72 = scmp.ne.s32.totalorder %s64, %s66
      %p73 = scmp.eq.s32.totalorder %s40, 3
      %p74 = por %p72, %p73
      %p75 = scmp.ne.s32.totalorder %s66, %s67
      %p76 = scmp.eq.s32.totalorder %s40, 0
      %p77 = por %p75, %p76
      %p78 = scmp.ne.s32.totalorder %s66, %s67
      %p79 = scmp.eq.s32.totalorder %s41, 3
      %p80 = por %p78, %p79
      %p82 = scmp.ne.s32.totalorder %s67, %s81
      %p83 = scmp.eq.s32.totalorder %s41, 0
      %p84 = por %p82, %p83
      %s86 = sadd.s32 %s85, 1
      %p89 = scmp.eq.s32.totalorder %s35, 3
      %p90 = scmp.ne.s32.totalorder %s85, %s87
      %p91 = scmp.eq.s32.totalorder %s35, 0
      %p92 = por %p90, %p91
      %p93 = scmp.ne.s32.totalorder %s85, %s87
      %p94 = scmp.eq.s32.totalorder %s40, 3
      %p95 = por %p93, %p94
      %p96 = scmp.ne.s32.totalorder %s87, %s88
      %p97 = scmp.eq.s32.totalorder %s40, 0
      %p98 = por %p96, %p97
      %p99 = scmp.ne.s32.totalorder %s87, %s88
      %p100 = scmp.eq.s32.totalorder %s41, 3
      %p101 = por %p99, %p100
      %p103 = scmp.ne.s32.totalorder %s88, %s102
      %p104 = scmp.eq.s32.totalorder %s41, 0
      %p105 = por %p103, %p104
      %s106 = sld [smem:[#allocation6 + %s35]]
      %s107 = sld [smem:[#allocation6 + %s42]]
      %s108 = ssub.s32 %s106, %s107
      %p109 = scmp.eq.s32.totalorder %s108, 0
      %s111 = sadd.s32 %s110, 1
      %s112 = scalar_select %p109, %s110, %s111
      %p115 = pneg %p109
      %p116 = scmp.eq.s32.totalorder %s35, 3
      %p117 = por %p115, %p116
      %p118 = scmp.ne.s32.totalorder %s110, %s113
      %p119 = scmp.eq.s32.totalorder %s35, 0
      %p120 = por %p118, %p119
      %p121 = scmp.ne.s32.totalorder %s110, %s113
      %p122 = scmp.eq.s32.totalorder %s40, 3
      %p123 = por %p121, %p122
      %p124 = scmp.ne.s32.totalorder %s113, %s114
      %p125 = scmp.eq.s32.totalorder %s40, 0
      %p126 = por %p124, %p125
      %p127 = scmp.ne.s32.totalorder %s113, %s114
      %p128 = scmp.eq.s32.totalorder %s41, 3
      %p129 = por %p127, %p128
      %p131 = scmp.ne.s32.totalorder %s114, %s130
      %p132 = scmp.eq.s32.totalorder %s41, 0
      %p133 = por %p131, %p132
      %s134 = ssub.s32 %s35, %s42
      %p135 = scmp.eq.s32.totalorder %s134, 0
      %s137 = sadd.s32 %s136, 1
      %s138 = scalar_select %p135, %s136, %s137
      %p141 = pneg %p135
      %p142 = scmp.eq.s32.totalorder %s35, 3
      %p143 = por %p141, %p142
      %p144 = scmp.ne.s32.totalorder %s136, %s139
      %p145 = scmp.eq.s32.totalorder %s35, 0
      %p146 = por %p144, %p145
      %p147 = scmp.ne.s32.totalorder %s136, %s139
      %p148 = scmp.eq.s32.totalorder %s40, 3
      %p149 = por %p147, %p148
      %p150 = scmp.ne.s32.totalorder %s139, %s140
      %p151 = scmp.eq.s32.totalorder %s40, 0
      %p152 = por %p150, %p151
      %p153 = scmp.ne.s32.totalorder %s139, %s140
      %p154 = scmp.eq.s32.totalorder %s41, 3
      %p155 = por %p153, %p154
      %p157 = scmp.ne.s32.totalorder %s140, %s156
      %p158 = scmp.eq.s32.totalorder %s41, 0
      %p159 = por %p157, %p158
      %p160 = scmp.le.s32.totalorder 1, %s35
      %p161 = scmp.lt.s32.totalorder %s35, 5
      %p162 = pnand %p160, %p161
      %p163 = pneg %p162
      // Predicated region
      $region9: #{ft_net_both_forward.3} parent=5 // pred_check
        _
      $region10: #{ft_net_both_forward.3} parent=5 // pred_check_branch
        %165 = sbr.rel (%p162) target = $region12
      $region11: #{ft_net_both_forward.3} parent=5 // pred_region
        %s166 = ssub.s32 %s35, 1
        // Predicated region
        $region13: #{ft_net_both_forward.3} parent=11 // pred_check
          %p167 = pneg %p56
        $region14: #{ft_net_both_forward.3} parent=11 // pred_check_branch
          %169 = sbr.rel (%p167) target = $region16
        $region15: #{ft_net_both_forward.3} parent=11 // pred_region
          _
        $region16: #{ft_net_both_forward.3} parent=11 // pred_fallthru
          _
        // Predicated region
        $region17: #{ft_net_both_forward.3} parent=11 // pred_check
          %p170 = pneg %p77
        $region18: #{ft_net_both_forward.3} parent=11 // pred_check_branch
          %172 = sbr.rel (%p170) target = $region20
        $region19: #{ft_net_both_forward.3} parent=11 // pred_region
          _
        $region20: #{ft_net_both_forward.3} parent=11 // pred_fallthru
          _
        // Predicated region
        $region21: #{ft_net_both_forward.3} parent=11 // pred_check
          %p173 = pneg %p98
        $region22: #{ft_net_both_forward.3} parent=11 // pred_check_branch
          %175 = sbr.rel (%p173) target = $region24
        $region23: #{ft_net_both_forward.3} parent=11 // pred_region
          _
        $region24: #{ft_net_both_forward.3} parent=11 // pred_fallthru
          _
      $region12: #{ft_net_both_forward.3} parent=5 // pred_fallthru
        _
      %p176 = scmp.lt.s32.totalorder %s35, 4
      // Predicated region
      $region25: #{ft_net_both_forward.3} parent=5 // pred_check
        %p177 = pneg %p176
      $region26: #{ft_net_both_forward.3} parent=5 // pred_check_branch
        %179 = sbr.rel (%p177) target = $region28
      $region27: #{ft_net_both_forward.3} parent=5 // pred_region
        // Predicated region
        $region29: #{ft_net_both_forward.3} parent=27 // pred_check
          %p180 = pneg %p120
        $region30: #{ft_net_both_forward.3} parent=27 // pred_check_branch
          %182 = sbr.rel (%p180) target = $region32
        $region31: #{ft_net_both_forward.3} parent=27 // pred_region
          %s183 = sand.u32 %s110, 1
          %s184 = scalar_lea.sflag [#allocation8], %s183
          %s185 = sand.u32 %s110, 1
          %s186 = smul.addr %s185, 1024
          %s187 = scalar_lea.vmem [#allocation7], %s186
          %s188 = sld [smem:[#allocation6 + %s35]]
          %s190 = ssub.s32 16384, 16384
          %191 = vsyncadd %s184, %s190
          %s192 = smul.addr %s188, 64
          %s193 = scalar_lea.hbm %s7, %s192
          %s194 = sshll.u32 %s187, 4
          %s195 = int_to_ptr.vmem [resolvable:$true] %s194
          %200 = dma.hbm_to_vmem [thread:$0]  %s193, 16384, %s195, %s184, 256, 64, 4
        $region32: #{ft_net_both_forward.3} parent=27 // pred_fallthru
          _
      $region28: #{ft_net_both_forward.3} parent=5 // pred_fallthru
        _
      %p201 = scmp.le.s32.totalorder 1, %s35
      %p202 = scmp.lt.s32.totalorder %s35, 5
      %p203 = pnand %p201, %p202
      %p204 = pneg %p203
      // Predicated region
      $region33: #{ft_net_both_forward.3} parent=5 // pred_check
        _
      $region34: #{ft_net_both_forward.3} parent=5 // pred_check_branch
        %206 = sbr.rel (%p203) target = $region36
      $region35: #{ft_net_both_forward.3} parent=5 // pred_region
        %s207 = ssub.s32 %s35, 1
        %s208 = sand.u32 %s113, 1
        %s209 = scalar_lea.sflag [#allocation8], %s208
        %s210 = sand.u32 %s113, 1
        %s211 = smul.addr %s210, 1024
        %s212 = scalar_lea.vmem [#allocation7], %s211
        // Predicated region
        $region37: #{ft_net_both_forward.3} parent=35 // pred_check
          %p213 = pneg %p126
        $region38: #{ft_net_both_forward.3} parent=35 // pred_check_branch
          %215 = sbr.rel (%p213) target = $region40
        $region39: #{ft_net_both_forward.3} parent=35 // pred_region
          %216 = dma.done %s209, 16384
        $region40: #{ft_net_both_forward.3} parent=35 // pred_fallthru
          _
        %p217 = pneg %p56
        %p218 = pneg %p53
        %p219 = pneg %p77
        %p220 = pneg %p74
        %p221 = pneg %p98
        %p222 = pneg %p95
        %s223 = sand.u32 %s113, 1
        %s224 = scalar_lea.sflag [#allocation8], %s223
        %s225 = sand.u32 %s113, 1
        %s226 = smul.addr %s225, 1024
        %s227 = scalar_lea.vmem [#allocation7], %s226
        %p228 = pneg %p126
        %p229 = pneg %p123
        %p230 = pneg %p152
        %p231 = pneg %p149
        %s232 = sand.u32 %s139, 1
        %s233 = sand.u32 %s139, 1
        %s234 = smul.addr %s233, 16
        %s235 = scalar_lea.vmem [#allocation9], %s234
        %s236 = sld [smem:[#allocation6 + %s40]]
        %p238 = scmp.lt.s32.totalorder %s40, 1
        // Predicated region
        $region41: #{ft_net_both_forward.3} parent=35 // pred_check
          %p239 = pneg %p238
        $region42: #{ft_net_both_forward.3} parent=35 // pred_check_branch
          %241 = sbr.rel (%p239) target = $region44
        $region43: #{ft_net_both_forward.3} parent=35 // pred_region
          %v242 = vld [vmem:[%s6] sm:$0xff]
          %v243 = vld [vmem:[%s6 + $0x8] sm:$0xff]
          %v244 = vld [vmem:[%s6 + $0x10] sm:$0xff]
          %v245 = vld [vmem:[%s6 + $0x18] sm:$0xff]
          %v246 = vld [vmem:[%s6 + $0x20] sm:$0xff]
          %v247 = vld [vmem:[%s6 + $0x28] sm:$0xff]
          %v248 = vld [vmem:[%s6 + $0x30] sm:$0xff]
          %v249 = vld [vmem:[%s6 + $0x38] sm:$0xff]
          %v250 = vld [vmem:[%s6 + $0x40] sm:$0xff]
          %v251 = vld [vmem:[%s6 + $0x48] sm:$0xff]
          %v252 = vld [vmem:[%s6 + $0x50] sm:$0xff]
          %v253 = vld [vmem:[%s6 + $0x58] sm:$0xff]
          %v254 = vld [vmem:[%s6 + $0x60] sm:$0xff]
          %v255 = vld [vmem:[%s6 + $0x68] sm:$0xff]
          %v256 = vld [vmem:[%s6 + $0x70] sm:$0xff]
          %v257 = vld [vmem:[%s6 + $0x78] sm:$0xff]
          %v258 = vld [vmem:[%s212] sm:$0xf]
          %v259 = vld [vmem:[%s212 + $0x4] sm:$0xf]
          %v260 = vld [vmem:[%s212 + $0x8] sm:$0xf]
          %v261 = vld [vmem:[%s212 + $0xc] sm:$0xf]
          %v262 = vld [vmem:[%s212 + $0x10] sm:$0xf]
          %v263 = vld [vmem:[%s212 + $0x14] sm:$0xf]
          %v264 = vld [vmem:[%s212 + $0x18] sm:$0xf]
          %v265 = vld [vmem:[%s212 + $0x1c] sm:$0xf]
          %v266 = vld [vmem:[%s212 + $0x20] sm:$0xf]
          %v267 = vld [vmem:[%s212 + $0x24] sm:$0xf]
          %v268 = vld [vmem:[%s212 + $0x28] sm:$0xf]
          %v269 = vld [vmem:[%s212 + $0x2c] sm:$0xf]
          %v270 = vld [vmem:[%s212 + $0x30] sm:$0xf]
          %v271 = vld [vmem:[%s212 + $0x34] sm:$0xf]
          %v272 = vld [vmem:[%s212 + $0x38] sm:$0xf]
          %v273 = vld [vmem:[%s212 + $0x3c] sm:$0xf]
          %v274 = vld [vmem:[%s212 + $0x40] sm:$0xf]
          %v275 = vld [vmem:[%s212 + $0x44] sm:$0xf]
          %v276 = vld [vmem:[%s212 + $0x48] sm:$0xf]
          %v277 = vld [vmem:[%s212 + $0x4c] sm:$0xf]
          %v278 = vld [vmem:[%s212 + $0x50] sm:$0xf]
          %v279 = vld [vmem:[%s212 + $0x54] sm:$0xf]
          %v280 = vld [vmem:[%s212 + $0x58] sm:$0xf]
          %v281 = vld [vmem:[%s212 + $0x5c] sm:$0xf]
          %v282 = vld [vmem:[%s212 + $0x60] sm:$0xf]
          %v283 = vld [vmem:[%s212 + $0x64] sm:$0xf]
          %v284 = vld [vmem:[%s212 + $0x68] sm:$0xf]
          %v285 = vld [vmem:[%s212 + $0x6c] sm:$0xf]
          %v286 = vld [vmem:[%s212 + $0x70] sm:$0xf]
          %v287 = vld [vmem:[%s212 + $0x74] sm:$0xf]
          %v288 = vld [vmem:[%s212 + $0x78] sm:$0xf]
          %v289 = vld [vmem:[%s212 + $0x7c] sm:$0xf]
          %v290 = vld [vmem:[%s212 + $0x80] sm:$0xf]
          %v291 = vld [vmem:[%s212 + $0x84] sm:$0xf]
          %v292 = vld [vmem:[%s212 + $0x88] sm:$0xf]
          %v293 = vld [vmem:[%s212 + $0x8c] sm:$0xf]
          %v294 = vld [vmem:[%s212 + $0x90] sm:$0xf]
          %v295 = vld [vmem:[%s212 + $0x94] sm:$0xf]
          %v296 = vld [vmem:[%s212 + $0x98] sm:$0xf]
          %v297 = vld [vmem:[%s212 + $0x9c] sm:$0xf]
          %v298 = vld [vmem:[%s212 + $0xa0] sm:$0xf]
          %v299 = vld [vmem:[%s212 + $0xa4] sm:$0xf]
          %v300 = vld [vmem:[%s212 + $0xa8] sm:$0xf]
          %v301 = vld [vmem:[%s212 + $0xac] sm:$0xf]
          %v302 = vld [vmem:[%s212 + $0xb0] sm:$0xf]
          %v303 = vld [vmem:[%s212 + $0xb4] sm:$0xf]
          %v304 = vld [vmem:[%s212 + $0xb8] sm:$0xf]
          %v305 = vld [vmem:[%s212 + $0xbc] sm:$0xf]
          %v306 = vld [vmem:[%s212 + $0xc0] sm:$0xf]
          %v307 = vld [vmem:[%s212 + $0xc4] sm:$0xf]
          %v308 = vld [vmem:[%s212 + $0xc8] sm:$0xf]
          %v309 = vld [vmem:[%s212 + $0xcc] sm:$0xf]
          %v310 = vld [vmem:[%s212 + $0xd0] sm:$0xf]
          %v311 = vld [vmem:[%s212 + $0xd4] sm:$0xf]
          %v312 = vld [vmem:[%s212 + $0xd8] sm:$0xf]
          %v313 = vld [vmem:[%s212 + $0xdc] sm:$0xf]
          %v314 = vld [vmem:[%s212 + $0xe0] sm:$0xf]
          %v315 = vld [vmem:[%s212 + $0xe4] sm:$0xf]
          %v316 = vld [vmem:[%s212 + $0xe8] sm:$0xf]
          %v317 = vld [vmem:[%s212 + $0xec] sm:$0xf]
          %v318 = vld [vmem:[%s212 + $0xf0] sm:$0xf]
          %v319 = vld [vmem:[%s212 + $0xf4] sm:$0xf]
          %v320 = vld [vmem:[%s212 + $0xf8] sm:$0xf]
          %v321 = vld [vmem:[%s212 + $0xfc] sm:$0xf]
          %v322 = vld [vmem:[%s212 + $0x100] sm:$0xf]
          %v323 = vld [vmem:[%s212 + $0x104] sm:$0xf]
          %v324 = vld [vmem:[%s212 + $0x108] sm:$0xf]
          %v325 = vld [vmem:[%s212 + $0x10c] sm:$0xf]
          %v326 = vld [vmem:[%s212 + $0x110] sm:$0xf]
          %v327 = vld [vmem:[%s212 + $0x114] sm:$0xf]
          %v328 = vld [vmem:[%s212 + $0x118] sm:$0xf]
          %v329 = vld [vmem:[%s212 + $0x11c] sm:$0xf]
          %v330 = vld [vmem:[%s212 + $0x120] sm:$0xf]
          %v331 = vld [vmem:[%s212 + $0x124] sm:$0xf]
          %v332 = vld [vmem:[%s212 + $0x128] sm:$0xf]
          %v333 = vld [vmem:[%s212 + $0x12c] sm:$0xf]
          %v334 = vld [vmem:[%s212 + $0x130] sm:$0xf]
          %v335 = vld [vmem:[%s212 + $0x134] sm:$0xf]
          %v336 = vld [vmem:[%s212 + $0x138] sm:$0xf]
          %v337 = vld [vmem:[%s212 + $0x13c] sm:$0xf]
          %v338 = vld [vmem:[%s212 + $0x140] sm:$0xf]
          %v339 = vld [vmem:[%s212 + $0x144] sm:$0xf]
          %v340 = vld [vmem:[%s212 + $0x148] sm:$0xf]
          %v341 = vld [vmem:[%s212 + $0x14c] sm:$0xf]
          %v342 = vld [vmem:[%s212 + $0x150] sm:$0xf]
          %v343 = vld [vmem:[%s212 + $0x154] sm:$0xf]
          %v344 = vld [vmem:[%s212 + $0x158] sm:$0xf]
          %v345 = vld [vmem:[%s212 + $0x15c] sm:$0xf]
          %v346 = vld [vmem:[%s212 + $0x160] sm:$0xf]
          %v347 = vld [vmem:[%s212 + $0x164] sm:$0xf]
          %v348 = vld [vmem:[%s212 + $0x168] sm:$0xf]
          %v349 = vld [vmem:[%s212 + $0x16c] sm:$0xf]
          %v350 = vld [vmem:[%s212 + $0x170] sm:$0xf]
          %v351 = vld [vmem:[%s212 + $0x174] sm:$0xf]
          %v352 = vld [vmem:[%s212 + $0x178] sm:$0xf]
          %v353 = vld [vmem:[%s212 + $0x17c] sm:$0xf]
          %v354 = vld [vmem:[%s212 + $0x180] sm:$0xf]
          %v355 = vld [vmem:[%s212 + $0x184] sm:$0xf]
          %v356 = vld [vmem:[%s212 + $0x188] sm:$0xf]
          %v357 = vld [vmem:[%s212 + $0x18c] sm:$0xf]
          %v358 = vld [vmem:[%s212 + $0x190] sm:$0xf]
          %v359 = vld [vmem:[%s212 + $0x194] sm:$0xf]
          %v360 = vld [vmem:[%s212 + $0x198] sm:$0xf]
          %v361 = vld [vmem:[%s212 + $0x19c] sm:$0xf]
          %v362 = vld [vmem:[%s212 + $0x1a0] sm:$0xf]
          %v363 = vld [vmem:[%s212 + $0x1a4] sm:$0xf]
          %v364 = vld [vmem:[%s212 + $0x1a8] sm:$0xf]
          %v365 = vld [vmem:[%s212 + $0x1ac] sm:$0xf]
          %v366 = vld [vmem:[%s212 + $0x1b0] sm:$0xf]
          %v367 = vld [vmem:[%s212 + $0x1b4] sm:$0xf]
          %v368 = vld [vmem:[%s212 + $0x1b8] sm:$0xf]
          %v369 = vld [vmem:[%s212 + $0x1bc] sm:$0xf]
          %v370 = vld [vmem:[%s212 + $0x1c0] sm:$0xf]
          %v371 = vld [vmem:[%s212 + $0x1c4] sm:$0xf]
          %v372 = vld [vmem:[%s212 + $0x1c8] sm:$0xf]
          %v373 = vld [vmem:[%s212 + $0x1cc] sm:$0xf]
          %v374 = vld [vmem:[%s212 + $0x1d0] sm:$0xf]
          %v375 = vld [vmem:[%s212 + $0x1d4] sm:$0xf]
          %v376 = vld [vmem:[%s212 + $0x1d8] sm:$0xf]
          %v377 = vld [vmem:[%s212 + $0x1dc] sm:$0xf]
          %v378 = vld [vmem:[%s212 + $0x1e0] sm:$0xf]
          %v379 = vld [vmem:[%s212 + $0x1e4] sm:$0xf]
          %v380 = vld [vmem:[%s212 + $0x1e8] sm:$0xf]
          %v381 = vld [vmem:[%s212 + $0x1ec] sm:$0xf]
          %v382 = vld [vmem:[%s212 + $0x1f0] sm:$0xf]
          %v383 = vld [vmem:[%s212 + $0x1f4] sm:$0xf]
          %v384 = vld [vmem:[%s212 + $0x1f8] sm:$0xf]
          %v385 = vld [vmem:[%s212 + $0x1fc] sm:$0xf]
          %v386 = vld [vmem:[%s212 + $0x200] sm:$0xf]
          %v387 = vld [vmem:[%s212 + $0x204] sm:$0xf]
          %v388 = vld [vmem:[%s212 + $0x208] sm:$0xf]
          %v389 = vld [vmem:[%s212 + $0x20c] sm:$0xf]
          %v390 = vld [vmem:[%s212 + $0x210] sm:$0xf]
          %v391 = vld [vmem:[%s212 + $0x214] sm:$0xf]
          %v392 = vld [vmem:[%s212 + $0x218] sm:$0xf]
          %v393 = vld [vmem:[%s212 + $0x21c] sm:$0xf]
          %v394 = vld [vmem:[%s212 + $0x220] sm:$0xf]
          %v395 = vld [vmem:[%s212 + $0x224] sm:$0xf]
          %v396 = vld [vmem:[%s212 + $0x228] sm:$0xf]
          %v397 = vld [vmem:[%s212 + $0x22c] sm:$0xf]
          %v398 = vld [vmem:[%s212 + $0x230] sm:$0xf]
          %v399 = vld [vmem:[%s212 + $0x234] sm:$0xf]
          %v400 = vld [vmem:[%s212 + $0x238] sm:$0xf]
          %v401 = vld [vmem:[%s212 + $0x23c] sm:$0xf]
          %v402 = vld [vmem:[%s212 + $0x240] sm:$0xf]
          %v403 = vld [vmem:[%s212 + $0x244] sm:$0xf]
          %v404 = vld [vmem:[%s212 + $0x248] sm:$0xf]
          %v405 = vld [vmem:[%s212 + $0x24c] sm:$0xf]
          %v406 = vld [vmem:[%s212 + $0x250] sm:$0xf]
          %v407 = vld [vmem:[%s212 + $0x254] sm:$0xf]
          %v408 = vld [vmem:[%s212 + $0x258] sm:$0xf]
          %v409 = vld [vmem:[%s212 + $0x25c] sm:$0xf]
          %v410 = vld [vmem:[%s212 + $0x260] sm:$0xf]
          %v411 = vld [vmem:[%s212 + $0x264] sm:$0xf]
          %v412 = vld [vmem:[%s212 + $0x268] sm:$0xf]
          %v413 = vld [vmem:[%s212 + $0x26c] sm:$0xf]
          %v414 = vld [vmem:[%s212 + $0x270] sm:$0xf]
          %v415 = vld [vmem:[%s212 + $0x274] sm:$0xf]
          %v416 = vld [vmem:[%s212 + $0x278] sm:$0xf]
          %v417 = vld [vmem:[%s212 + $0x27c] sm:$0xf]
          %v418 = vld [vmem:[%s212 + $0x280] sm:$0xf]
          %v419 = vld [vmem:[%s212 + $0x284] sm:$0xf]
          %v420 = vld [vmem:[%s212 + $0x288] sm:$0xf]
          %v421 = vld [vmem:[%s212 + $0x28c] sm:$0xf]
          %v422 = vld [vmem:[%s212 + $0x290] sm:$0xf]
          %v423 = vld [vmem:[%s212 + $0x294] sm:$0xf]
          %v424 = vld [vmem:[%s212 + $0x298] sm:$0xf]
          %v425 = vld [vmem:[%s212 + $0x29c] sm:$0xf]
          %v426 = vld [vmem:[%s212 + $0x2a0] sm:$0xf]
          %v427 = vld [vmem:[%s212 + $0x2a4] sm:$0xf]
          %v428 = vld [vmem:[%s212 + $0x2a8] sm:$0xf]
          %v429 = vld [vmem:[%s212 + $0x2ac] sm:$0xf]
          %v430 = vld [vmem:[%s212 + $0x2b0] sm:$0xf]
          %v431 = vld [vmem:[%s212 + $0x2b4] sm:$0xf]
          %v432 = vld [vmem:[%s212 + $0x2b8] sm:$0xf]
          %v433 = vld [vmem:[%s212 + $0x2bc] sm:$0xf]
          %v434 = vld [vmem:[%s212 + $0x2c0] sm:$0xf]
          %v435 = vld [vmem:[%s212 + $0x2c4] sm:$0xf]
          %v436 = vld [vmem:[%s212 + $0x2c8] sm:$0xf]
          %v437 = vld [vmem:[%s212 + $0x2cc] sm:$0xf]
          %v438 = vld [vmem:[%s212 + $0x2d0] sm:$0xf]
          %v439 = vld [vmem:[%s212 + $0x2d4] sm:$0xf]
          %v440 = vld [vmem:[%s212 + $0x2d8] sm:$0xf]
          %v441 = vld [vmem:[%s212 + $0x2dc] sm:$0xf]
          %v442 = vld [vmem:[%s212 + $0x2e0] sm:$0xf]
          %v443 = vld [vmem:[%s212 + $0x2e4] sm:$0xf]
          %v444 = vld [vmem:[%s212 + $0x2e8] sm:$0xf]
          %v445 = vld [vmem:[%s212 + $0x2ec] sm:$0xf]
          %v446 = vld [vmem:[%s212 + $0x2f0] sm:$0xf]
          %v447 = vld [vmem:[%s212 + $0x2f4] sm:$0xf]
          %v448 = vld [vmem:[%s212 + $0x2f8] sm:$0xf]
          %v449 = vld [vmem:[%s212 + $0x2fc] sm:$0xf]
          %v450 = vld [vmem:[%s212 + $0x300] sm:$0xf]
          %v451 = vld [vmem:[%s212 + $0x304] sm:$0xf]
          %v452 = vld [vmem:[%s212 + $0x308] sm:$0xf]
          %v453 = vld [vmem:[%s212 + $0x30c] sm:$0xf]
          %v454 = vld [vmem:[%s212 + $0x310] sm:$0xf]
          %v455 = vld [vmem:[%s212 + $0x314] sm:$0xf]
          %v456 = vld [vmem:[%s212 + $0x318] sm:$0xf]
          %v457 = vld [vmem:[%s212 + $0x31c] sm:$0xf]
          %v458 = vld [vmem:[%s212 + $0x320] sm:$0xf]
          %v459 = vld [vmem:[%s212 + $0x324] sm:$0xf]
          %v460 = vld [vmem:[%s212 + $0x328] sm:$0xf]
          %v461 = vld [vmem:[%s212 + $0x32c] sm:$0xf]
          %v462 = vld [vmem:[%s212 + $0x330] sm:$0xf]
          %v463 = vld [vmem:[%s212 + $0x334] sm:$0xf]
          %v464 = vld [vmem:[%s212 + $0x338] sm:$0xf]
          %v465 = vld [vmem:[%s212 + $0x33c] sm:$0xf]
          %v466 = vld [vmem:[%s212 + $0x340] sm:$0xf]
          %v467 = vld [vmem:[%s212 + $0x344] sm:$0xf]
          %v468 = vld [vmem:[%s212 + $0x348] sm:$0xf]
          %v469 = vld [vmem:[%s212 + $0x34c] sm:$0xf]
          %v470 = vld [vmem:[%s212 + $0x350] sm:$0xf]
          %v471 = vld [vmem:[%s212 + $0x354] sm:$0xf]
          %v472 = vld [vmem:[%s212 + $0x358] sm:$0xf]
          %v473 = vld [vmem:[%s212 + $0x35c] sm:$0xf]
          %v474 = vld [vmem:[%s212 + $0x360] sm:$0xf]
          %v475 = vld [vmem:[%s212 + $0x364] sm:$0xf]
          %v476 = vld [vmem:[%s212 + $0x368] sm:$0xf]
          %v477 = vld [vmem:[%s212 + $0x36c] sm:$0xf]
          %v478 = vld [vmem:[%s212 + $0x370] sm:$0xf]
          %v479 = vld [vmem:[%s212 + $0x374] sm:$0xf]
          %v480 = vld [vmem:[%s212 + $0x378] sm:$0xf]
          %v481 = vld [vmem:[%s212 + $0x37c] sm:$0xf]
          %v482 = vld [vmem:[%s212 + $0x380] sm:$0xf]
          %v483 = vld [vmem:[%s212 + $0x384] sm:$0xf]
          %v484 = vld [vmem:[%s212 + $0x388] sm:$0xf]
          %v485 = vld [vmem:[%s212 + $0x38c] sm:$0xf]
          %v486 = vld [vmem:[%s212 + $0x390] sm:$0xf]
          %v487 = vld [vmem:[%s212 + $0x394] sm:$0xf]
          %v488 = vld [vmem:[%s212 + $0x398] sm:$0xf]
          %v489 = vld [vmem:[%s212 + $0x39c] sm:$0xf]
          %v490 = vld [vmem:[%s212 + $0x3a0] sm:$0xf]
          %v491 = vld [vmem:[%s212 + $0x3a4] sm:$0xf]
          %v492 = vld [vmem:[%s212 + $0x3a8] sm:$0xf]
          %v493 = vld [vmem:[%s212 + $0x3ac] sm:$0xf]
          %v494 = vld [vmem:[%s212 + $0x3b0] sm:$0xf]
          %v495 = vld [vmem:[%s212 + $0x3b4] sm:$0xf]
          %v496 = vld [vmem:[%s212 + $0x3b8] sm:$0xf]
          %v497 = vld [vmem:[%s212 + $0x3bc] sm:$0xf]
          %v498 = vld [vmem:[%s212 + $0x3c0] sm:$0xf]
          %v499 = vld [vmem:[%s212 + $0x3c4] sm:$0xf]
          %v500 = vld [vmem:[%s212 + $0x3c8] sm:$0xf]
          %v501 = vld [vmem:[%s212 + $0x3cc] sm:$0xf]
          %v502 = vld [vmem:[%s212 + $0x3d0] sm:$0xf]
          %v503 = vld [vmem:[%s212 + $0x3d4] sm:$0xf]
          %v504 = vld [vmem:[%s212 + $0x3d8] sm:$0xf]
          %v505 = vld [vmem:[%s212 + $0x3dc] sm:$0xf]
          %v506 = vld [vmem:[%s212 + $0x3e0] sm:$0xf]
          %v507 = vld [vmem:[%s212 + $0x3e4] sm:$0xf]
          %v508 = vld [vmem:[%s212 + $0x3e8] sm:$0xf]
          %v509 = vld [vmem:[%s212 + $0x3ec] sm:$0xf]
          %v510 = vld [vmem:[%s212 + $0x3f0] sm:$0xf]
          %v511 = vld [vmem:[%s212 + $0x3f4] sm:$0xf]
          %v512 = vld [vmem:[%s212 + $0x3f8] sm:$0xf]
          %v513 = vld [vmem:[%s212 + $0x3fc] sm:$0xf]
          %v530 = vunpack.c.l.b16 %v242
          %v531 = vunpack.c.h.b16 %v242
          %v532 = vunpack.c.l.b16 %v243
          %v533 = vunpack.c.h.b16 %v243
          %v534 = vunpack.c.l.b16 %v244
          %v535 = vunpack.c.h.b16 %v244
          %v536 = vunpack.c.l.b16 %v245
          %v537 = vunpack.c.h.b16 %v245
          %v538 = vunpack.c.l.b16 %v246
          %v539 = vunpack.c.h.b16 %v246
          %v540 = vunpack.c.l.b16 %v247
          %v541 = vunpack.c.h.b16 %v247
          %v542 = vunpack.c.l.b16 %v248
          %v543 = vunpack.c.h.b16 %v248
          %v544 = vunpack.c.l.b16 %v249
          %v545 = vunpack.c.h.b16 %v249
          %v546 = vunpack.c.l.b16 %v250
          %v547 = vunpack.c.h.b16 %v250
          %v548 = vunpack.c.l.b16 %v251
          %v549 = vunpack.c.h.b16 %v251
          %v550 = vunpack.c.l.b16 %v252
          %v551 = vunpack.c.h.b16 %v252
          %v552 = vunpack.c.l.b16 %v253
          %v553 = vunpack.c.h.b16 %v253
          %v554 = vunpack.c.l.b16 %v254
          %v555 = vunpack.c.h.b16 %v254
          %v556 = vunpack.c.l.b16 %v255
          %v557 = vunpack.c.h.b16 %v255
          %v558 = vunpack.c.l.b16 %v256
          %v559 = vunpack.c.h.b16 %v256
          %v560 = vunpack.c.l.b16 %v257
          %v561 = vunpack.c.h.b16 %v257
          %v562 = vpack.c.b16 %v546, %v530
          %v563 = vpack.c.b16 %v547, %v531
          %v564 = vpack.c.b16 %v548, %v532
          %v565 = vpack.c.b16 %v549, %v533
          %v566 = vpack.c.b16 %v550, %v534
          %v567 = vpack.c.b16 %v551, %v535
          %v568 = vpack.c.b16 %v552, %v536
          %v569 = vpack.c.b16 %v553, %v537
          %v570 = vpack.c.b16 %v554, %v538
          %v571 = vpack.c.b16 %v555, %v539
          %v572 = vpack.c.b16 %v556, %v540
          %v573 = vpack.c.b16 %v557, %v541
          %v574 = vpack.c.b16 %v558, %v542
          %v575 = vpack.c.b16 %v559, %v543
          %v576 = vpack.c.b16 %v560, %v544
          %v577 = vpack.c.b16 %v561, %v545
          %v850 = vunpack.c.l.b16 %v258
          %v851 = vunpack.c.l.b16 %v259
          %v852 = vunpack.c.l.b16 %v260
          %v853 = vunpack.c.l.b16 %v261
          %v854 = vunpack.c.l.b16 %v262
          %v855 = vunpack.c.l.b16 %v263
          %v856 = vunpack.c.l.b16 %v264
          %v857 = vunpack.c.l.b16 %v265
          %v858 = vunpack.c.l.b16 %v266
          %v859 = vunpack.c.l.b16 %v267
          %v860 = vunpack.c.l.b16 %v268
          %v861 = vunpack.c.l.b16 %v269
          %v862 = vunpack.c.l.b16 %v270
          %v863 = vunpack.c.l.b16 %v271
          %v864 = vunpack.c.l.b16 %v272
          %v865 = vunpack.c.l.b16 %v273
          %v866 = vunpack.c.l.b16 %v274
          %v867 = vunpack.c.l.b16 %v275
          %v868 = vunpack.c.l.b16 %v276
          %v869 = vunpack.c.l.b16 %v277
          %v870 = vunpack.c.l.b16 %v278
          %v871 = vunpack.c.l.b16 %v279
          %v872 = vunpack.c.l.b16 %v280
          %v873 = vunpack.c.l.b16 %v281
          %v874 = vunpack.c.l.b16 %v282
          %v875 = vunpack.c.l.b16 %v283
          %v876 = vunpack.c.l.b16 %v284
          %v877 = vunpack.c.l.b16 %v285
          %v878 = vunpack.c.l.b16 %v286
          %v879 = vunpack.c.l.b16 %v287
          %v880 = vunpack.c.l.b16 %v288
          %v881 = vunpack.c.l.b16 %v289
          %v882 = vunpack.c.l.b16 %v290
          %v883 = vunpack.c.l.b16 %v291
          %v884 = vunpack.c.l.b16 %v292
          %v885 = vunpack.c.l.b16 %v293
          %v886 = vunpack.c.l.b16 %v294
          %v887 = vunpack.c.l.b16 %v295
          %v888 = vunpack.c.l.b16 %v296
          %v889 = vunpack.c.l.b16 %v297
          %v890 = vunpack.c.l.b16 %v298
          %v891 = vunpack.c.l.b16 %v299
          %v892 = vunpack.c.l.b16 %v300
          %v893 = vunpack.c.l.b16 %v301
          %v894 = vunpack.c.l.b16 %v302
          %v895 = vunpack.c.l.b16 %v303
          %v896 = vunpack.c.l.b16 %v304
          %v897 = vunpack.c.l.b16 %v305
          %v898 = vunpack.c.l.b16 %v306
          %v899 = vunpack.c.l.b16 %v307
          %v900 = vunpack.c.l.b16 %v308
          %v901 = vunpack.c.l.b16 %v309
          %v902 = vunpack.c.l.b16 %v310
          %v903 = vunpack.c.l.b16 %v311
          %v904 = vunpack.c.l.b16 %v312
          %v905 = vunpack.c.l.b16 %v313
          %v906 = vunpack.c.l.b16 %v314
          %v907 = vunpack.c.l.b16 %v315
          %v908 = vunpack.c.l.b16 %v316
          %v909 = vunpack.c.l.b16 %v317
          %v910 = vunpack.c.l.b16 %v318
          %v911 = vunpack.c.l.b16 %v319
          %v912 = vunpack.c.l.b16 %v320
          %v913 = vunpack.c.l.b16 %v321
          %v914 = vunpack.c.l.b16 %v322
          %v915 = vunpack.c.l.b16 %v323
          %v916 = vunpack.c.l.b16 %v324
          %v917 = vunpack.c.l.b16 %v325
          %v918 = vunpack.c.l.b16 %v326
          %v919 = vunpack.c.l.b16 %v327
          %v920 = vunpack.c.l.b16 %v328
          %v921 = vunpack.c.l.b16 %v329
          %v922 = vunpack.c.l.b16 %v330
          %v923 = vunpack.c.l.b16 %v331
          %v924 = vunpack.c.l.b16 %v332
          %v925 = vunpack.c.l.b16 %v333
          %v926 = vunpack.c.l.b16 %v334
          %v927 = vunpack.c.l.b16 %v335
          %v928 = vunpack.c.l.b16 %v336
          %v929 = vunpack.c.l.b16 %v337
          %v930 = vunpack.c.l.b16 %v338
          %v931 = vunpack.c.l.b16 %v339
          %v932 = vunpack.c.l.b16 %v340
          %v933 = vunpack.c.l.b16 %v341
          %v934 = vunpack.c.l.b16 %v342
          %v935 = vunpack.c.l.b16 %v343
          %v936 = vunpack.c.l.b16 %v344
          %v937 = vunpack.c.l.b16 %v345
          %v938 = vunpack.c.l.b16 %v346
          %v939 = vunpack.c.l.b16 %v347
          %v940 = vunpack.c.l.b16 %v348
          %v941 = vunpack.c.l.b16 %v349
          %v942 = vunpack.c.l.b16 %v350
          %v943 = vunpack.c.l.b16 %v351
          %v944 = vunpack.c.l.b16 %v352
          %v945 = vunpack.c.l.b16 %v353
          %v946 = vunpack.c.l.b16 %v354
          %v947 = vunpack.c.l.b16 %v355
          %v948 = vunpack.c.l.b16 %v356
          %v949 = vunpack.c.l.b16 %v357
          %v950 = vunpack.c.l.b16 %v358
          %v951 = vunpack.c.l.b16 %v359
          %v952 = vunpack.c.l.b16 %v360
          %v953 = vunpack.c.l.b16 %v361
          %v954 = vunpack.c.l.b16 %v362
          %v955 = vunpack.c.l.b16 %v363
          %v956 = vunpack.c.l.b16 %v364
          %v957 = vunpack.c.l.b16 %v365
          %v958 = vunpack.c.l.b16 %v366
          %v959 = vunpack.c.l.b16 %v367
          %v960 = vunpack.c.l.b16 %v368
          %v961 = vunpack.c.l.b16 %v369
          %v962 = vunpack.c.l.b16 %v370
          %v963 = vunpack.c.l.b16 %v371
          %v964 = vunpack.c.l.b16 %v372
          %v965 = vunpack.c.l.b16 %v373
          %v966 = vunpack.c.l.b16 %v374
          %v967 = vunpack.c.l.b16 %v375
          %v968 = vunpack.c.l.b16 %v376
          %v969 = vunpack.c.l.b16 %v377
          %v970 = vunpack.c.l.b16 %v378
          %v971 = vunpack.c.l.b16 %v379
          %v972 = vunpack.c.l.b16 %v380
          %v973 = vunpack.c.l.b16 %v381
          %v974 = vunpack.c.l.b16 %v382
          %v975 = vunpack.c.l.b16 %v383
          %v976 = vunpack.c.l.b16 %v384
          %v977 = vunpack.c.l.b16 %v385
          %v978 = vunpack.c.l.b16 %v386
          %v979 = vunpack.c.l.b16 %v387
          %v980 = vunpack.c.l.b16 %v388
          %v981 = vunpack.c.l.b16 %v389
          %v982 = vunpack.c.l.b16 %v390
          %v983 = vunpack.c.l.b16 %v391
          %v984 = vunpack.c.l.b16 %v392
          %v985 = vunpack.c.l.b16 %v393
          %v986 = vunpack.c.l.b16 %v394
          %v987 = vunpack.c.l.b16 %v395
          %v988 = vunpack.c.l.b16 %v396
          %v989 = vunpack.c.l.b16 %v397
          %v990 = vunpack.c.l.b16 %v398
          %v991 = vunpack.c.l.b16 %v399
          %v992 = vunpack.c.l.b16 %v400
          %v993 = vunpack.c.l.b16 %v401
          %v994 = vunpack.c.l.b16 %v402
          %v995 = vunpack.c.l.b16 %v403
          %v996 = vunpack.c.l.b16 %v404
          %v997 = vunpack.c.l.b16 %v405
          %v998 = vunpack.c.l.b16 %v406
          %v999 = vunpack.c.l.b16 %v407
          %v1000 = vunpack.c.l.b16 %v408
          %v1001 = vunpack.c.l.b16 %v409
          %v1002 = vunpack.c.l.b16 %v410
          %v1003 = vunpack.c.l.b16 %v411
          %v1004 = vunpack.c.l.b16 %v412
          %v1005 = vunpack.c.l.b16 %v413
          %v1006 = vunpack.c.l.b16 %v414
          %v1007 = vunpack.c.l.b16 %v415
          %v1008 = vunpack.c.l.b16 %v416
          %v1009 = vunpack.c.l.b16 %v417
          %v1010 = vunpack.c.l.b16 %v418
          %v1011 = vunpack.c.l.b16 %v419
          %v1012 = vunpack.c.l.b16 %v420
          %v1013 = vunpack.c.l.b16 %v421
          %v1014 = vunpack.c.l.b16 %v422
          %v1015 = vunpack.c.l.b16 %v423
          %v1016 = vunpack.c.l.b16 %v424
          %v1017 = vunpack.c.l.b16 %v425
          %v1018 = vunpack.c.l.b16 %v426
          %v1019 = vunpack.c.l.b16 %v427
          %v1020 = vunpack.c.l.b16 %v428
          %v1021 = vunpack.c.l.b16 %v429
          %v1022 = vunpack.c.l.b16 %v430
          %v1023 = vunpack.c.l.b16 %v431
          %v1024 = vunpack.c.l.b16 %v432
          %v1025 = vunpack.c.l.b16 %v433
          %v1026 = vunpack.c.l.b16 %v434
          %v1027 = vunpack.c.l.b16 %v435
          %v1028 = vunpack.c.l.b16 %v436
          %v1029 = vunpack.c.l.b16 %v437
          %v1030 = vunpack.c.l.b16 %v438
          %v1031 = vunpack.c.l.b16 %v439
          %v1032 = vunpack.c.l.b16 %v440
          %v1033 = vunpack.c.l.b16 %v441
          %v1034 = vunpack.c.l.b16 %v442
          %v1035 = vunpack.c.l.b16 %v443
          %v1036 = vunpack.c.l.b16 %v444
          %v1037 = vunpack.c.l.b16 %v445
          %v1038 = vunpack.c.l.b16 %v446
          %v1039 = vunpack.c.l.b16 %v447
          %v1040 = vunpack.c.l.b16 %v448
          %v1041 = vunpack.c.l.b16 %v449
          %v1042 = vunpack.c.l.b16 %v450
          %v1043 = vunpack.c.l.b16 %v451
          %v1044 = vunpack.c.l.b16 %v452
          %v1045 = vunpack.c.l.b16 %v453
          %v1046 = vunpack.c.l.b16 %v454
          %v1047 = vunpack.c.l.b16 %v455
          %v1048 = vunpack.c.l.b16 %v456
          %v1049 = vunpack.c.l.b16 %v457
          %v1050 = vunpack.c.l.b16 %v458
          %v1051 = vunpack.c.l.b16 %v459
          %v1052 = vunpack.c.l.b16 %v460
          %v1053 = vunpack.c.l.b16 %v461
          %v1054 = vunpack.c.l.b16 %v462
          %v1055 = vunpack.c.l.b16 %v463
          %v1056 = vunpack.c.l.b16 %v464
          %v1057 = vunpack.c.l.b16 %v465
          %v1058 = vunpack.c.l.b16 %v466
          %v1059 = vunpack.c.l.b16 %v467
          %v1060 = vunpack.c.l.b16 %v468
          %v1061 = vunpack.c.l.b16 %v469
          %v1062 = vunpack.c.l.b16 %v470
          %v1063 = vunpack.c.l.b16 %v471
          %v1064 = vunpack.c.l.b16 %v472
          %v1065 = vunpack.c.l.b16 %v473
          %v1066 = vunpack.c.l.b16 %v474
          %v1067 = vunpack.c.l.b16 %v475
          %v1068 = vunpack.c.l.b16 %v476
          %v1069 = vunpack.c.l.b16 %v477
          %v1070 = vunpack.c.l.b16 %v478
          %v1071 = vunpack.c.l.b16 %v479
          %v1072 = vunpack.c.l.b16 %v480
          %v1073 = vunpack.c.l.b16 %v481
          %v1074 = vunpack.c.l.b16 %v482
          %v1075 = vunpack.c.l.b16 %v483
          %v1076 = vunpack.c.l.b16 %v484
          %v1077 = vunpack.c.l.b16 %v485
          %v1078 = vunpack.c.l.b16 %v486
          %v1079 = vunpack.c.l.b16 %v487
          %v1080 = vunpack.c.l.b16 %v488
          %v1081 = vunpack.c.l.b16 %v489
          %v1082 = vunpack.c.l.b16 %v490
          %v1083 = vunpack.c.l.b16 %v491
          %v1084 = vunpack.c.l.b16 %v492
          %v1085 = vunpack.c.l.b16 %v493
          %v1086 = vunpack.c.l.b16 %v494
          %v1087 = vunpack.c.l.b16 %v495
          %v1088 = vunpack.c.l.b16 %v496
          %v1089 = vunpack.c.l.b16 %v497
          %v1090 = vunpack.c.l.b16 %v498
          %v1091 = vunpack.c.l.b16 %v499
          %v1092 = vunpack.c.l.b16 %v500
          %v1093 = vunpack.c.l.b16 %v501
          %v1094 = vunpack.c.l.b16 %v502
          %v1095 = vunpack.c.l.b16 %v503
          %v1096 = vunpack.c.l.b16 %v504
          %v1097 = vunpack.c.l.b16 %v505
          %v1098 = vunpack.c.l.b16 %v506
          %v1099 = vunpack.c.l.b16 %v507
          %v1100 = vunpack.c.l.b16 %v508
          %v1101 = vunpack.c.l.b16 %v509
          %v1102 = vunpack.c.l.b16 %v510
          %v1103 = vunpack.c.l.b16 %v511
          %v1104 = vunpack.c.l.b16 %v512
          %v1105 = vunpack.c.l.b16 %v513
          %v1106 = vpack.c.b16 %v851, %v850
          %v1107 = vpack.c.b16 %v853, %v852
          %v1108 = vpack.c.b16 %v855, %v854
          %v1109 = vpack.c.b16 %v857, %v856
          %v1110 = vpack.c.b16 %v859, %v858
          %v1111 = vpack.c.b16 %v861, %v860
          %v1112 = vpack.c.b16 %v863, %v862
          %v1113 = vpack.c.b16 %v865, %v864
          %v1114 = vpack.c.b16 %v867, %v866
          %v1115 = vpack.c.b16 %v869, %v868
          %v1116 = vpack.c.b16 %v871, %v870
          %v1117 = vpack.c.b16 %v873, %v872
          %v1118 = vpack.c.b16 %v875, %v874
          %v1119 = vpack.c.b16 %v877, %v876
          %v1120 = vpack.c.b16 %v879, %v878
          %v1121 = vpack.c.b16 %v881, %v880
          %v1122 = vpack.c.b16 %v883, %v882
          %v1123 = vpack.c.b16 %v885, %v884
          %v1124 = vpack.c.b16 %v887, %v886
          %v1125 = vpack.c.b16 %v889, %v888
          %v1126 = vpack.c.b16 %v891, %v890
          %v1127 = vpack.c.b16 %v893, %v892
          %v1128 = vpack.c.b16 %v895, %v894
          %v1129 = vpack.c.b16 %v897, %v896
          %v1130 = vpack.c.b16 %v899, %v898
          %v1131 = vpack.c.b16 %v901, %v900
          %v1132 = vpack.c.b16 %v903, %v902
          %v1133 = vpack.c.b16 %v905, %v904
          %v1134 = vpack.c.b16 %v907, %v906
          %v1135 = vpack.c.b16 %v909, %v908
          %v1136 = vpack.c.b16 %v911, %v910
          %v1137 = vpack.c.b16 %v913, %v912
          %v1138 = vpack.c.b16 %v915, %v914
          %v1139 = vpack.c.b16 %v917, %v916
          %v1140 = vpack.c.b16 %v919, %v918
          %v1141 = vpack.c.b16 %v921, %v920
          %v1142 = vpack.c.b16 %v923, %v922
          %v1143 = vpack.c.b16 %v925, %v924
          %v1144 = vpack.c.b16 %v927, %v926
          %v1145 = vpack.c.b16 %v929, %v928
          %v1146 = vpack.c.b16 %v931, %v930
          %v1147 = vpack.c.b16 %v933, %v932
          %v1148 = vpack.c.b16 %v935, %v934
          %v1149 = vpack.c.b16 %v937, %v936
          %v1150 = vpack.c.b16 %v939, %v938
          %v1151 = vpack.c.b16 %v941, %v940
          %v1152 = vpack.c.b16 %v943, %v942
          %v1153 = vpack.c.b16 %v945, %v944
          %v1154 = vpack.c.b16 %v947, %v946
          %v1155 = vpack.c.b16 %v949, %v948
          %v1156 = vpack.c.b16 %v951, %v950
          %v1157 = vpack.c.b16 %v953, %v952
          %v1158 = vpack.c.b16 %v955, %v954
          %v1159 = vpack.c.b16 %v957, %v956
          %v1160 = vpack.c.b16 %v959, %v958
          %v1161 = vpack.c.b16 %v961, %v960
          %v1162 = vpack.c.b16 %v963, %v962
          %v1163 = vpack.c.b16 %v965, %v964
          %v1164 = vpack.c.b16 %v967, %v966
          %v1165 = vpack.c.b16 %v969, %v968
          %v1166 = vpack.c.b16 %v971, %v970
          %v1167 = vpack.c.b16 %v973, %v972
          %v1168 = vpack.c.b16 %v975, %v974
          %v1169 = vpack.c.b16 %v977, %v976
          %v1170 = vpack.c.b16 %v979, %v978
          %v1171 = vpack.c.b16 %v981, %v980
          %v1172 = vpack.c.b16 %v983, %v982
          %v1173 = vpack.c.b16 %v985, %v984
          %v1174 = vpack.c.b16 %v987, %v986
          %v1175 = vpack.c.b16 %v989, %v988
          %v1176 = vpack.c.b16 %v991, %v990
          %v1177 = vpack.c.b16 %v993, %v992
          %v1178 = vpack.c.b16 %v995, %v994
          %v1179 = vpack.c.b16 %v997, %v996
          %v1180 = vpack.c.b16 %v999, %v998
          %v1181 = vpack.c.b16 %v1001, %v1000
          %v1182 = vpack.c.b16 %v1003, %v1002
          %v1183 = vpack.c.b16 %v1005, %v1004
          %v1184 = vpack.c.b16 %v1007, %v1006
          %v1185 = vpack.c.b16 %v1009, %v1008
          %v1186 = vpack.c.b16 %v1011, %v1010
          %v1187 = vpack.c.b16 %v1013, %v1012
          %v1188 = vpack.c.b16 %v1015, %v1014
          %v1189 = vpack.c.b16 %v1017, %v1016
          %v1190 = vpack.c.b16 %v1019, %v1018
          %v1191 = vpack.c.b16 %v1021, %v1020
          %v1192 = vpack.c.b16 %v1023, %v1022
          %v1193 = vpack.c.b16 %v1025, %v1024
          %v1194 = vpack.c.b16 %v1027, %v1026
          %v1195 = vpack.c.b16 %v1029, %v1028
          %v1196 = vpack.c.b16 %v1031, %v1030
          %v1197 = vpack.c.b16 %v1033, %v1032
          %v1198 = vpack.c.b16 %v1035, %v1034
          %v1199 = vpack.c.b16 %v1037, %v1036
          %v1200 = vpack.c.b16 %v1039, %v1038
          %v1201 = vpack.c.b16 %v1041, %v1040
          %v1202 = vpack.c.b16 %v1043, %v1042
          %v1203 = vpack.c.b16 %v1045, %v1044
          %v1204 = vpack.c.b16 %v1047, %v1046
          %v1205 = vpack.c.b16 %v1049, %v1048
          %v1206 = vpack.c.b16 %v1051, %v1050
          %v1207 = vpack.c.b16 %v1053, %v1052
          %v1208 = vpack.c.b16 %v1055, %v1054
          %v1209 = vpack.c.b16 %v1057, %v1056
          %v1210 = vpack.c.b16 %v1059, %v1058
          %v1211 = vpack.c.b16 %v1061, %v1060
          %v1212 = vpack.c.b16 %v1063, %v1062
          %v1213 = vpack.c.b16 %v1065, %v1064
          %v1214 = vpack.c.b16 %v1067, %v1066
          %v1215 = vpack.c.b16 %v1069, %v1068
          %v1216 = vpack.c.b16 %v1071, %v1070
          %v1217 = vpack.c.b16 %v1073, %v1072
          %v1218 = vpack.c.b16 %v1075, %v1074
          %v1219 = vpack.c.b16 %v1077, %v1076
          %v1220 = vpack.c.b16 %v1079, %v1078
          %v1221 = vpack.c.b16 %v1081, %v1080
          %v1222 = vpack.c.b16 %v1083, %v1082
          %v1223 = vpack.c.b16 %v1085, %v1084
          %v1224 = vpack.c.b16 %v1087, %v1086
          %v1225 = vpack.c.b16 %v1089, %v1088
          %v1226 = vpack.c.b16 %v1091, %v1090
          %v1227 = vpack.c.b16 %v1093, %v1092
          %v1228 = vpack.c.b16 %v1095, %v1094
          %v1229 = vpack.c.b16 %v1097, %v1096
          %v1230 = vpack.c.b16 %v1099, %v1098
          %v1231 = vpack.c.b16 %v1101, %v1100
          %v1232 = vpack.c.b16 %v1103, %v1102
          %v1233 = vpack.c.b16 %v1105, %v1104
          %1362 = vmatprep.subr.bf16.mxu0 0
          %1363 = vmatpush1.bf16.msra.mxu0 %v1113
          %1364 = vmatprep.subr.bf16.mxu0 0
          %1365 = vmatpush1.bf16.msra.mxu0 %v1112
          %1366 = vmatprep.subr.bf16.mxu0 0
          %1367 = vmatpush1.bf16.msra.mxu0 %v1111
          %1368 = vmatprep.subr.bf16.mxu0 0
          %1369 = vmatpush1.bf16.msra.mxu0 %v1110
          %1370 = vmatprep.subr.bf16.mxu0 0
          %1371 = vmatpush1.bf16.msra.mxu0 %v1109
          %1372 = vmatprep.subr.bf16.mxu0 0
          %1373 = vmatpush1.bf16.msra.mxu0 %v1108
          %1374 = vmatprep.subr.bf16.mxu0 0
          %1375 = vmatpush1.bf16.msra.mxu0 %v1107
          %1376 = vmatprep.subr.bf16.mxu0 0
          %1377 = vmatpush1.bf16.msra.mxu0 %v1106
          %1378 = vmatprep.subr.bf16.mxu0 0
          %1379 = vmatpush2.bf16.msra.mxu0 %v1121
          %1380 = vmatprep.subr.bf16.mxu0 0
          %1381 = vmatpush2.bf16.msra.mxu0 %v1120
          %1382 = vmatprep.subr.bf16.mxu0 0
          %1383 = vmatpush2.bf16.msra.mxu0 %v1119
          %1384 = vmatprep.subr.bf16.mxu0 0
          %1385 = vmatpush2.bf16.msra.mxu0 %v1118
          %1386 = vmatprep.subr.bf16.mxu0 0
          %1387 = vmatpush2.bf16.msra.mxu0 %v1117
          %1388 = vmatprep.subr.bf16.mxu0 0
          %1389 = vmatpush2.bf16.msra.mxu0 %v1116
          %1390 = vmatprep.subr.bf16.mxu0 0
          %1391 = vmatpush2.bf16.msra.mxu0 %v1115
          %1392 = vmatprep.subr.bf16.mxu0 0
          %1393 = vmatpush2.bf16.msra.mxu0 %v1114
          %1394 = vmatprep.mubr.bf16.mxu0 %v563
          %1395 = vmatmul.mubr.bf16.gmra.mxu0 %v562
          %v1396 = vpop.f32.mrf.mxu0
          %v1397 = vadd.f32 0.0, %v1396
          %v1398 = vpop.f32.mrf.mxu0
          %v1399 = vpop.f32.mrf.mxu0
          %v1400 = vadd.f32 0.0, %v1399
          %v1401 = vpop.f32.mrf.mxu0
          %1402 = vdwg.mxu0
          %1403 = vmatprep.subr.bf16.mxu0 0
          %1404 = vmatpush1.bf16.msra.mxu0 %v1129
          %1405 = vmatprep.subr.bf16.mxu0 0
          %1406 = vmatpush1.bf16.msra.mxu0 %v1128
          %1407 = vmatprep.subr.bf16.mxu0 0
          %1408 = vmatpush1.bf16.msra.mxu0 %v1127
          %1409 = vmatprep.subr.bf16.mxu0 0
          %1410 = vmatpush1.bf16.msra.mxu0 %v1126
          %1411 = vmatprep.subr.bf16.mxu0 0
          %1412 = vmatpush1.bf16.msra.mxu0 %v1125
          %1413 = vmatprep.subr.bf16.mxu0 0
          %1414 = vmatpush1.bf16.msra.mxu0 %v1124
          %1415 = vmatprep.subr.bf16.mxu0 0
          %1416 = vmatpush1.bf16.msra.mxu0 %v1123
          %1417 = vmatprep.subr.bf16.mxu0 0
          %1418 = vmatpush1.bf16.msra.mxu0 %v1122
          %1419 = vmatprep.subr.bf16.mxu0 0
          %1420 = vmatpush2.bf16.msra.mxu0 %v1137
          %1421 = vmatprep.subr.bf16.mxu0 0
          %1422 = vmatpush2.bf16.msra.mxu0 %v1136
          %1423 = vmatprep.subr.bf16.mxu0 0
          %1424 = vmatpush2.bf16.msra.mxu0 %v1135
          %1425 = vmatprep.subr.bf16.mxu0 0
          %1426 = vmatpush2.bf16.msra.mxu0 %v1134
          %1427 = vmatprep.subr.bf16.mxu0 0
          %1428 = vmatpush2.bf16.msra.mxu0 %v1133
          %1429 = vmatprep.subr.bf16.mxu0 0
          %1430 = vmatpush2.bf16.msra.mxu0 %v1132
          %1431 = vmatprep.subr.bf16.mxu0 0
          %1432 = vmatpush2.bf16.msra.mxu0 %v1131
          %1433 = vmatprep.subr.bf16.mxu0 0
          %1434 = vmatpush2.bf16.msra.mxu0 %v1130
          %1435 = vmatprep.mubr.bf16.mxu0 %v565
          %1436 = vmatmul.mubr.bf16.gmra.mxu0 %v564
          %v1437 = vpop.f32.mrf.mxu0
          %v1438 = vadd.f32 %v1397, %v1437
          %v1439 = vpop.f32.mrf.mxu0
          %v1440 = vpop.f32.mrf.mxu0
          %v1441 = vadd.f32 %v1400, %v1440
          %v1442 = vpop.f32.mrf.mxu0
          %1443 = vdwg.mxu0
          %1444 = vmatprep.subr.bf16.mxu0 0
          %1445 = vmatpush1.bf16.msra.mxu0 %v1145
          %1446 = vmatprep.subr.bf16.mxu0 0
          %1447 = vmatpush1.bf16.msra.mxu0 %v1144
          %1448 = vmatprep.subr.bf16.mxu0 0
          %1449 = vmatpush1.bf16.msra.mxu0 %v1143
          %1450 = vmatprep.subr.bf16.mxu0 0
          %1451 = vmatpush1.bf16.msra.mxu0 %v1142
          %1452 = vmatprep.subr.bf16.mxu0 0
          %1453 = vmatpush1.bf16.msra.mxu0 %v1141
          %1454 = vmatprep.subr.bf16.mxu0 0
          %1455 = vmatpush1.bf16.msra.mxu0 %v1140
          %1456 = vmatprep.subr.bf16.mxu0 0
          %1457 = vmatpush1.bf16.msra.mxu0 %v1139
          %1458 = vmatprep.subr.bf16.mxu0 0
          %1459 = vmatpush1.bf16.msra.mxu0 %v1138
          %1460 = vmatprep.subr.bf16.mxu0 0
          %1461 = vmatpush2.bf16.msra.mxu0 %v1153
          %1462 = vmatprep.subr.bf16.mxu0 0
          %1463 = vmatpush2.bf16.msra.mxu0 %v1152
          %1464 = vmatprep.subr.bf16.mxu0 0
          %1465 = vmatpush2.bf16.msra.mxu0 %v1151
          %1466 = vmatprep.subr.bf16.mxu0 0
          %1467 = vmatpush2.bf16.msra.mxu0 %v1150
          %1468 = vmatprep.subr.bf16.mxu0 0
          %1469 = vmatpush2.bf16.msra.mxu0 %v1149
          %1470 = vmatprep.subr.bf16.mxu0 0
          %1471 = vmatpush2.bf16.msra.mxu0 %v1148
          %1472 = vmatprep.subr.bf16.mxu0 0
          %1473 = vmatpush2.bf16.msra.mxu0 %v1147
          %1474 = vmatprep.subr.bf16.mxu0 0
          %1475 = vmatpush2.bf16.msra.mxu0 %v1146
          %1476 = vmatprep.mubr.bf16.mxu0 %v567
          %1477 = vmatmul.mubr.bf16.gmra.mxu0 %v566
          %v1478 = vpop.f32.mrf.mxu0
          %v1479 = vadd.f32 %v1438, %v1478
          %v1480 = vpop.f32.mrf.mxu0
          %v1481 = vpop.f32.mrf.mxu0
          %v1482 = vadd.f32 %v1441, %v1481
          %v1483 = vpop.f32.mrf.mxu0
          %1484 = vdwg.mxu0
          %1485 = vmatprep.subr.bf16.mxu0 0
          %1486 = vmatpush1.bf16.msra.mxu0 %v1161
          %1487 = vmatprep.subr.bf16.mxu0 0
          %1488 = vmatpush1.bf16.msra.mxu0 %v1160
          %1489 = vmatprep.subr.bf16.mxu0 0
          %1490 = vmatpush1.bf16.msra.mxu0 %v1159
          %1491 = vmatprep.subr.bf16.mxu0 0
          %1492 = vmatpush1.bf16.msra.mxu0 %v1158
          %1493 = vmatprep.subr.bf16.mxu0 0
          %1494 = vmatpush1.bf16.msra.mxu0 %v1157
          %1495 = vmatprep.subr.bf16.mxu0 0
          %1496 = vmatpush1.bf16.msra.mxu0 %v1156
          %1497 = vmatprep.subr.bf16.mxu0 0
          %1498 = vmatpush1.bf16.msra.mxu0 %v1155
          %1499 = vmatprep.subr.bf16.mxu0 0
          %1500 = vmatpush1.bf16.msra.mxu0 %v1154
          %1501 = vmatprep.subr.bf16.mxu0 0
          %1502 = vmatpush2.bf16.msra.mxu0 %v1169
          %1503 = vmatprep.subr.bf16.mxu0 0
          %1504 = vmatpush2.bf16.msra.mxu0 %v1168
          %1505 = vmatprep.subr.bf16.mxu0 0
          %1506 = vmatpush2.bf16.msra.mxu0 %v1167
          %1507 = vmatprep.subr.bf16.mxu0 0
          %1508 = vmatpush2.bf16.msra.mxu0 %v1166
          %1509 = vmatprep.subr.bf16.mxu0 0
          %1510 = vmatpush2.bf16.msra.mxu0 %v1165
          %1511 = vmatprep.subr.bf16.mxu0 0
          %1512 = vmatpush2.bf16.msra.mxu0 %v1164
          %1513 = vmatprep.subr.bf16.mxu0 0
          %1514 = vmatpush2.bf16.msra.mxu0 %v1163
          %1515 = vmatprep.subr.bf16.mxu0 0
          %1516 = vmatpush2.bf16.msra.mxu0 %v1162
          %1517 = vmatprep.mubr.bf16.mxu0 %v569
          %1518 = vmatmul.mubr.bf16.gmra.mxu0 %v568
          %v1519 = vpop.f32.mrf.mxu0
          %v1520 = vadd.f32 %v1479, %v1519
          %v1521 = vpop.f32.mrf.mxu0
          %v1522 = vpop.f32.mrf.mxu0
          %v1523 = vadd.f32 %v1482, %v1522
          %v1524 = vpop.f32.mrf.mxu0
          %1525 = vdwg.mxu0
          %1526 = vmatprep.subr.bf16.mxu0 0
          %1527 = vmatpush1.bf16.msra.mxu0 %v1177
          %1528 = vmatprep.subr.bf16.mxu0 0
          %1529 = vmatpush1.bf16.msra.mxu0 %v1176
          %1530 = vmatprep.subr.bf16.mxu0 0
          %1531 = vmatpush1.bf16.msra.mxu0 %v1175
          %1532 = vmatprep.subr.bf16.mxu0 0
          %1533 = vmatpush1.bf16.msra.mxu0 %v1174
          %1534 = vmatprep.subr.bf16.mxu0 0
          %1535 = vmatpush1.bf16.msra.mxu0 %v1173
          %1536 = vmatprep.subr.bf16.mxu0 0
          %1537 = vmatpush1.bf16.msra.mxu0 %v1172
          %1538 = vmatprep.subr.bf16.mxu0 0
          %1539 = vmatpush1.bf16.msra.mxu0 %v1171
          %1540 = vmatprep.subr.bf16.mxu0 0
          %1541 = vmatpush1.bf16.msra.mxu0 %v1170
          %1542 = vmatprep.subr.bf16.mxu0 0
          %1543 = vmatpush2.bf16.msra.mxu0 %v1185
          %1544 = vmatprep.subr.bf16.mxu0 0
          %1545 = vmatpush2.bf16.msra.mxu0 %v1184
          %1546 = vmatprep.subr.bf16.mxu0 0
          %1547 = vmatpush2.bf16.msra.mxu0 %v1183
          %1548 = vmatprep.subr.bf16.mxu0 0
          %1549 = vmatpush2.bf16.msra.mxu0 %v1182
          %1550 = vmatprep.subr.bf16.mxu0 0
          %1551 = vmatpush2.bf16.msra.mxu0 %v1181
          %1552 = vmatprep.subr.bf16.mxu0 0
          %1553 = vmatpush2.bf16.msra.mxu0 %v1180
          %1554 = vmatprep.subr.bf16.mxu0 0
          %1555 = vmatpush2.bf16.msra.mxu0 %v1179
          %1556 = vmatprep.subr.bf16.mxu0 0
          %1557 = vmatpush2.bf16.msra.mxu0 %v1178
          %1558 = vmatprep.mubr.bf16.mxu0 %v571
          %1559 = vmatmul.mubr.bf16.gmra.mxu0 %v570
          %v1560 = vpop.f32.mrf.mxu0
          %v1561 = vadd.f32 %v1520, %v1560
          %v1562 = vpop.f32.mrf.mxu0
          %v1563 = vpop.f32.mrf.mxu0
          %v1564 = vadd.f32 %v1523, %v1563
          %v1565 = vpop.f32.mrf.mxu0
          %1566 = vdwg.mxu0
          %1567 = vmatprep.subr.bf16.mxu0 0
          %1568 = vmatpush1.bf16.msra.mxu0 %v1193
          %1569 = vmatprep.subr.bf16.mxu0 0
          %1570 = vmatpush1.bf16.msra.mxu0 %v1192
          %1571 = vmatprep.subr.bf16.mxu0 0
          %1572 = vmatpush1.bf16.msra.mxu0 %v1191
          %1573 = vmatprep.subr.bf16.mxu0 0
          %1574 = vmatpush1.bf16.msra.mxu0 %v1190
          %1575 = vmatprep.subr.bf16.mxu0 0
          %1576 = vmatpush1.bf16.msra.mxu0 %v1189
          %1577 = vmatprep.subr.bf16.mxu0 0
          %1578 = vmatpush1.bf16.msra.mxu0 %v1188
          %1579 = vmatprep.subr.bf16.mxu0 0
          %1580 = vmatpush1.bf16.msra.mxu0 %v1187
          %1581 = vmatprep.subr.bf16.mxu0 0
          %1582 = vmatpush1.bf16.msra.mxu0 %v1186
          %1583 = vmatprep.subr.bf16.mxu0 0
          %1584 = vmatpush2.bf16.msra.mxu0 %v1201
          %1585 = vmatprep.subr.bf16.mxu0 0
          %1586 = vmatpush2.bf16.msra.mxu0 %v1200
          %1587 = vmatprep.subr.bf16.mxu0 0
          %1588 = vmatpush2.bf16.msra.mxu0 %v1199
          %1589 = vmatprep.subr.bf16.mxu0 0
          %1590 = vmatpush2.bf16.msra.mxu0 %v1198
          %1591 = vmatprep.subr.bf16.mxu0 0
          %1592 = vmatpush2.bf16.msra.mxu0 %v1197
          %1593 = vmatprep.subr.bf16.mxu0 0
          %1594 = vmatpush2.bf16.msra.mxu0 %v1196
          %1595 = vmatprep.subr.bf16.mxu0 0
          %1596 = vmatpush2.bf16.msra.mxu0 %v1195
          %1597 = vmatprep.subr.bf16.mxu0 0
          %1598 = vmatpush2.bf16.msra.mxu0 %v1194
          %1599 = vmatprep.mubr.bf16.mxu0 %v573
          %1600 = vmatmul.mubr.bf16.gmra.mxu0 %v572
          %v1601 = vpop.f32.mrf.mxu0
          %v1602 = vadd.f32 %v1561, %v1601
          %v1603 = vpop.f32.mrf.mxu0
          %v1604 = vpop.f32.mrf.mxu0
          %v1605 = vadd.f32 %v1564, %v1604
          %v1606 = vpop.f32.mrf.mxu0
          %1607 = vdwg.mxu0
          %1608 = vmatprep.subr.bf16.mxu0 0
          %1609 = vmatpush1.bf16.msra.mxu0 %v1209
          %1610 = vmatprep.subr.bf16.mxu0 0
          %1611 = vmatpush1.bf16.msra.mxu0 %v1208
          %1612 = vmatprep.subr.bf16.mxu0 0
          %1613 = vmatpush1.bf16.msra.mxu0 %v1207
          %1614 = vmatprep.subr.bf16.mxu0 0
          %1615 = vmatpush1.bf16.msra.mxu0 %v1206
          %1616 = vmatprep.subr.bf16.mxu0 0
          %1617 = vmatpush1.bf16.msra.mxu0 %v1205
          %1618 = vmatprep.subr.bf16.mxu0 0
          %1619 = vmatpush1.bf16.msra.mxu0 %v1204
          %1620 = vmatprep.subr.bf16.mxu0 0
          %1621 = vmatpush1.bf16.msra.mxu0 %v1203
          %1622 = vmatprep.subr.bf16.mxu0 0
          %1623 = vmatpush1.bf16.msra.mxu0 %v1202
          %1624 = vmatprep.subr.bf16.mxu0 0
          %1625 = vmatpush2.bf16.msra.mxu0 %v1217
          %1626 = vmatprep.subr.bf16.mxu0 0
          %1627 = vmatpush2.bf16.msra.mxu0 %v1216
          %1628 = vmatprep.subr.bf16.mxu0 0
          %1629 = vmatpush2.bf16.msra.mxu0 %v1215
          %1630 = vmatprep.subr.bf16.mxu0 0
          %1631 = vmatpush2.bf16.msra.mxu0 %v1214
          %1632 = vmatprep.subr.bf16.mxu0 0
          %1633 = vmatpush2.bf16.msra.mxu0 %v1213
          %1634 = vmatprep.subr.bf16.mxu0 0
          %1635 = vmatpush2.bf16.msra.mxu0 %v1212
          %1636 = vmatprep.subr.bf16.mxu0 0
          %1637 = vmatpush2.bf16.msra.mxu0 %v1211
          %1638 = vmatprep.subr.bf16.mxu0 0
          %1639 = vmatpush2.bf16.msra.mxu0 %v1210
          %1640 = vmatprep.mubr.bf16.mxu0 %v575
          %1641 = vmatmul.mubr.bf16.gmra.mxu0 %v574
          %v1642 = vpop.f32.mrf.mxu0
          %v1643 = vadd.f32 %v1602, %v1642
          %v1644 = vpop.f32.mrf.mxu0
          %v1645 = vpop.f32.mrf.mxu0
          %v1646 = vadd.f32 %v1605, %v1645
          %v1647 = vpop.f32.mrf.mxu0
          %1648 = vdwg.mxu0
          %1649 = vmatprep.subr.bf16.mxu0 0
          %1650 = vmatpush1.bf16.msra.mxu0 %v1225
          %1651 = vmatprep.subr.bf16.mxu0 0
          %1652 = vmatpush1.bf16.msra.mxu0 %v1224
          %1653 = vmatprep.subr.bf16.mxu0 0
          %1654 = vmatpush1.bf16.msra.mxu0 %v1223
          %1655 = vmatprep.subr.bf16.mxu0 0
          %1656 = vmatpush1.bf16.msra.mxu0 %v1222
          %1657 = vmatprep.subr.bf16.mxu0 0
          %1658 = vmatpush1.bf16.msra.mxu0 %v1221
          %1659 = vmatprep.subr.bf16.mxu0 0
          %1660 = vmatpush1.bf16.msra.mxu0 %v1220
          %1661 = vmatprep.subr.bf16.mxu0 0
          %1662 = vmatpush1.bf16.msra.mxu0 %v1219
          %1663 = vmatprep.subr.bf16.mxu0 0
          %1664 = vmatpush1.bf16.msra.mxu0 %v1218
          %1665 = vmatprep.subr.bf16.mxu0 0
          %1666 = vmatpush2.bf16.msra.mxu0 %v1233
          %1667 = vmatprep.subr.bf16.mxu0 0
          %1668 = vmatpush2.bf16.msra.mxu0 %v1232
          %1669 = vmatprep.subr.bf16.mxu0 0
          %1670 = vmatpush2.bf16.msra.mxu0 %v1231
          %1671 = vmatprep.subr.bf16.mxu0 0
          %1672 = vmatpush2.bf16.msra.mxu0 %v1230
          %1673 = vmatprep.subr.bf16.mxu0 0
          %1674 = vmatpush2.bf16.msra.mxu0 %v1229
          %1675 = vmatprep.subr.bf16.mxu0 0
          %1676 = vmatpush2.bf16.msra.mxu0 %v1228
          %1677 = vmatprep.subr.bf16.mxu0 0
          %1678 = vmatpush2.bf16.msra.mxu0 %v1227
          %1679 = vmatprep.subr.bf16.mxu0 0
          %1680 = vmatpush2.bf16.msra.mxu0 %v1226
          %1681 = vmatprep.mubr.bf16.mxu0 %v577
          %1682 = vmatmul.mubr.bf16.gmra.mxu0 %v576
          %v1683 = vpop.f32.mrf.mxu0
          %v1684 = vadd.f32 %v1643, %v1683
          %v1685 = vpop.f32.mrf.mxu0
          %v1686 = vpop.f32.mrf.mxu0
          %v1687 = vadd.f32 %v1646, %v1686
          %v1688 = vpop.f32.mrf.mxu0
          %1689 = vdwg.mxu0
          %1690 = vst [vmem:[%s235] sm:$0xff] %v1684
          %1691 = vst [vmem:[%s235 + $0x8] sm:$0xff] %v1687
        $region44: #{ft_net_both_forward.3} parent=35 // pred_fallthru
          _
        %p1692 = scmp.ge.s32.totalorder %s40, 1
        // Predicated region
        $region45: #{ft_net_both_forward.3} parent=35 // pred_check
          %p1693 = pneg %p1692
        $region46: #{ft_net_both_forward.3} parent=35 // pred_check_branch
          %1695 = sbr.rel (%p1693) target = $region48
        $region47: #{ft_net_both_forward.3} parent=35 // pred_region
          %s1696 = sld [smem:[#allocation3 + %s40]]
          %s1697 = sld [smem:[#allocation4 + %s40]]
          %s1698 = sld [smem:[#allocation5 + %s40]]
          %s1699 = scvt.s32.f32 %s1698
          %v1700 = vld [vmem:[%s6] sm:$0xff]
          %v1701 = vld [vmem:[%s6 + $0x8] sm:$0xff]
          %v1702 = vld [vmem:[%s6 + $0x10] sm:$0xff]
          %v1703 = vld [vmem:[%s6 + $0x18] sm:$0xff]
          %v1704 = vld [vmem:[%s6 + $0x20] sm:$0xff]
          %v1705 = vld [vmem:[%s6 + $0x28] sm:$0xff]
          %v1706 = vld [vmem:[%s6 + $0x30] sm:$0xff]
          %v1707 = vld [vmem:[%s6 + $0x38] sm:$0xff]
          %v1708 = vld [vmem:[%s6 + $0x40] sm:$0xff]
          %v1709 = vld [vmem:[%s6 + $0x48] sm:$0xff]
          %v1710 = vld [vmem:[%s6 + $0x50] sm:$0xff]
          %v1711 = vld [vmem:[%s6 + $0x58] sm:$0xff]
          %v1712 = vld [vmem:[%s6 + $0x60] sm:$0xff]
          %v1713 = vld [vmem:[%s6 + $0x68] sm:$0xff]
          %v1714 = vld [vmem:[%s6 + $0x70] sm:$0xff]
          %v1715 = vld [vmem:[%s6 + $0x78] sm:$0xff]
          %v1716 = vld [vmem:[%s212] sm:$0xf]
          %v1717 = vld [vmem:[%s212 + $0x4] sm:$0xf]
          %v1718 = vld [vmem:[%s212 + $0x8] sm:$0xf]
          %v1719 = vld [vmem:[%s212 + $0xc] sm:$0xf]
          %v1720 = vld [vmem:[%s212 + $0x10] sm:$0xf]
          %v1721 = vld [vmem:[%s212 + $0x14] sm:$0xf]
          %v1722 = vld [vmem:[%s212 + $0x18] sm:$0xf]
          %v1723 = vld [vmem:[%s212 + $0x1c] sm:$0xf]
          %v1724 = vld [vmem:[%s212 + $0x20] sm:$0xf]
          %v1725 = vld [vmem:[%s212 + $0x24] sm:$0xf]
          %v1726 = vld [vmem:[%s212 + $0x28] sm:$0xf]
          %v1727 = vld [vmem:[%s212 + $0x2c] sm:$0xf]
          %v1728 = vld [vmem:[%s212 + $0x30] sm:$0xf]
          %v1729 = vld [vmem:[%s212 + $0x34] sm:$0xf]
          %v1730 = vld [vmem:[%s212 + $0x38] sm:$0xf]
          %v1731 = vld [vmem:[%s212 + $0x3c] sm:$0xf]
          %v1732 = vld [vmem:[%s212 + $0x40] sm:$0xf]
          %v1733 = vld [vmem:[%s212 + $0x44] sm:$0xf]
          %v1734 = vld [vmem:[%s212 + $0x48] sm:$0xf]
          %v1735 = vld [vmem:[%s212 + $0x4c] sm:$0xf]
          %v1736 = vld [vmem:[%s212 + $0x50] sm:$0xf]
          %v1737 = vld [vmem:[%s212 + $0x54] sm:$0xf]
          %v1738 = vld [vmem:[%s212 + $0x58] sm:$0xf]
          %v1739 = vld [vmem:[%s212 + $0x5c] sm:$0xf]
          %v1740 = vld [vmem:[%s212 + $0x60] sm:$0xf]
          %v1741 = vld [vmem:[%s212 + $0x64] sm:$0xf]
          %v1742 = vld [vmem:[%s212 + $0x68] sm:$0xf]
          %v1743 = vld [vmem:[%s212 + $0x6c] sm:$0xf]
          %v1744 = vld [vmem:[%s212 + $0x70] sm:$0xf]
          %v1745 = vld [vmem:[%s212 + $0x74] sm:$0xf]
          %v1746 = vld [vmem:[%s212 + $0x78] sm:$0xf]
          %v1747 = vld [vmem:[%s212 + $0x7c] sm:$0xf]
          %v1748 = vld [vmem:[%s212 + $0x80] sm:$0xf]
          %v1749 = vld [vmem:[%s212 + $0x84] sm:$0xf]
          %v1750 = vld [vmem:[%s212 + $0x88] sm:$0xf]
          %v1751 = vld [vmem:[%s212 + $0x8c] sm:$0xf]
          %v1752 = vld [vmem:[%s212 + $0x90] sm:$0xf]
          %v1753 = vld [vmem:[%s212 + $0x94] sm:$0xf]
          %v1754 = vld [vmem:[%s212 + $0x98] sm:$0xf]
          %v1755 = vld [vmem:[%s212 + $0x9c] sm:$0xf]
          %v1756 = vld [vmem:[%s212 + $0xa0] sm:$0xf]
          %v1757 = vld [vmem:[%s212 + $0xa4] sm:$0xf]
          %v1758 = vld [vmem:[%s212 + $0xa8] sm:$0xf]
          %v1759 = vld [vmem:[%s212 + $0xac] sm:$0xf]
          %v1760 = vld [vmem:[%s212 + $0xb0] sm:$0xf]
          %v1761 = vld [vmem:[%s212 + $0xb4] sm:$0xf]
          %v1762 = vld [vmem:[%s212 + $0xb8] sm:$0xf]
          %v1763 = vld [vmem:[%s212 + $0xbc] sm:$0xf]
          %v1764 = vld [vmem:[%s212 + $0xc0] sm:$0xf]
          %v1765 = vld [vmem:[%s212 + $0xc4] sm:$0xf]
          %v1766 = vld [vmem:[%s212 + $0xc8] sm:$0xf]
          %v1767 = vld [vmem:[%s212 + $0xcc] sm:$0xf]
          %v1768 = vld [vmem:[%s212 + $0xd0] sm:$0xf]
          %v1769 = vld [vmem:[%s212 + $0xd4] sm:$0xf]
          %v1770 = vld [vmem:[%s212 + $0xd8] sm:$0xf]
          %v1771 = vld [vmem:[%s212 + $0xdc] sm:$0xf]
          %v1772 = vld [vmem:[%s212 + $0xe0] sm:$0xf]
          %v1773 = vld [vmem:[%s212 + $0xe4] sm:$0xf]
          %v1774 = vld [vmem:[%s212 + $0xe8] sm:$0xf]
          %v1775 = vld [vmem:[%s212 + $0xec] sm:$0xf]
          %v1776 = vld [vmem:[%s212 + $0xf0] sm:$0xf]
          %v1777 = vld [vmem:[%s212 + $0xf4] sm:$0xf]
          %v1778 = vld [vmem:[%s212 + $0xf8] sm:$0xf]
          %v1779 = vld [vmem:[%s212 + $0xfc] sm:$0xf]
          %v1780 = vld [vmem:[%s212 + $0x100] sm:$0xf]
          %v1781 = vld [vmem:[%s212 + $0x104] sm:$0xf]
          %v1782 = vld [vmem:[%s212 + $0x108] sm:$0xf]
          %v1783 = vld [vmem:[%s212 + $0x10c] sm:$0xf]
          %v1784 = vld [vmem:[%s212 + $0x110] sm:$0xf]
          %v1785 = vld [vmem:[%s212 + $0x114] sm:$0xf]
          %v1786 = vld [vmem:[%s212 + $0x118] sm:$0xf]
          %v1787 = vld [vmem:[%s212 + $0x11c] sm:$0xf]
          %v1788 = vld [vmem:[%s212 + $0x120] sm:$0xf]
          %v1789 = vld [vmem:[%s212 + $0x124] sm:$0xf]
          %v1790 = vld [vmem:[%s212 + $0x128] sm:$0xf]
          %v1791 = vld [vmem:[%s212 + $0x12c] sm:$0xf]
          %v1792 = vld [vmem:[%s212 + $0x130] sm:$0xf]
          %v1793 = vld [vmem:[%s212 + $0x134] sm:$0xf]
          %v1794 = vld [vmem:[%s212 + $0x138] sm:$0xf]
          %v1795 = vld [vmem:[%s212 + $0x13c] sm:$0xf]
          %v1796 = vld [vmem:[%s212 + $0x140] sm:$0xf]
          %v1797 = vld [vmem:[%s212 + $0x144] sm:$0xf]
          %v1798 = vld [vmem:[%s212 + $0x148] sm:$0xf]
          %v1799 = vld [vmem:[%s212 + $0x14c] sm:$0xf]
          %v1800 = vld [vmem:[%s212 + $0x150] sm:$0xf]
          %v1801 = vld [vmem:[%s212 + $0x154] sm:$0xf]
          %v1802 = vld [vmem:[%s212 + $0x158] sm:$0xf]
          %v1803 = vld [vmem:[%s212 + $0x15c] sm:$0xf]
          %v1804 = vld [vmem:[%s212 + $0x160] sm:$0xf]
          %v1805 = vld [vmem:[%s212 + $0x164] sm:$0xf]
          %v1806 = vld [vmem:[%s212 + $0x168] sm:$0xf]
          %v1807 = vld [vmem:[%s212 + $0x16c] sm:$0xf]
          %v1808 = vld [vmem:[%s212 + $0x170] sm:$0xf]
          %v1809 = vld [vmem:[%s212 + $0x174] sm:$0xf]
          %v1810 = vld [vmem:[%s212 + $0x178] sm:$0xf]
          %v1811 = vld [vmem:[%s212 + $0x17c] sm:$0xf]
          %v1812 = vld [vmem:[%s212 + $0x180] sm:$0xf]
          %v1813 = vld [vmem:[%s212 + $0x184] sm:$0xf]
          %v1814 = vld [vmem:[%s212 + $0x188] sm:$0xf]
          %v1815 = vld [vmem:[%s212 + $0x18c] sm:$0xf]
          %v1816 = vld [vmem:[%s212 + $0x190] sm:$0xf]
          %v1817 = vld [vmem:[%s212 + $0x194] sm:$0xf]
          %v1818 = vld [vmem:[%s212 + $0x198] sm:$0xf]
          %v1819 = vld [vmem:[%s212 + $0x19c] sm:$0xf]
          %v1820 = vld [vmem:[%s212 + $0x1a0] sm:$0xf]
          %v1821 = vld [vmem:[%s212 + $0x1a4] sm:$0xf]
          %v1822 = vld [vmem:[%s212 + $0x1a8] sm:$0xf]
          %v1823 = vld [vmem:[%s212 + $0x1ac] sm:$0xf]
          %v1824 = vld [vmem:[%s212 + $0x1b0] sm:$0xf]
          %v1825 = vld [vmem:[%s212 + $0x1b4] sm:$0xf]
          %v1826 = vld [vmem:[%s212 + $0x1b8] sm:$0xf]
          %v1827 = vld [vmem:[%s212 + $0x1bc] sm:$0xf]
          %v1828 = vld [vmem:[%s212 + $0x1c0] sm:$0xf]
          %v1829 = vld [vmem:[%s212 + $0x1c4] sm:$0xf]
          %v1830 = vld [vmem:[%s212 + $0x1c8] sm:$0xf]
          %v1831 = vld [vmem:[%s212 + $0x1cc] sm:$0xf]
          %v1832 = vld [vmem:[%s212 + $0x1d0] sm:$0xf]
          %v1833 = vld [vmem:[%s212 + $0x1d4] sm:$0xf]
          %v1834 = vld [vmem:[%s212 + $0x1d8] sm:$0xf]
          %v1835 = vld [vmem:[%s212 + $0x1dc] sm:$0xf]
          %v1836 = vld [vmem:[%s212 + $0x1e0] sm:$0xf]
          %v1837 = vld [vmem:[%s212 + $0x1e4] sm:$0xf]
          %v1838 = vld [vmem:[%s212 + $0x1e8] sm:$0xf]
          %v1839 = vld [vmem:[%s212 + $0x1ec] sm:$0xf]
          %v1840 = vld [vmem:[%s212 + $0x1f0] sm:$0xf]
          %v1841 = vld [vmem:[%s212 + $0x1f4] sm:$0xf]
          %v1842 = vld [vmem:[%s212 + $0x1f8] sm:$0xf]
          %v1843 = vld [vmem:[%s212 + $0x1fc] sm:$0xf]
          %v1844 = vld [vmem:[%s212 + $0x200] sm:$0xf]
          %v1845 = vld [vmem:[%s212 + $0x204] sm:$0xf]
          %v1846 = vld [vmem:[%s212 + $0x208] sm:$0xf]
          %v1847 = vld [vmem:[%s212 + $0x20c] sm:$0xf]
          %v1848 = vld [vmem:[%s212 + $0x210] sm:$0xf]
          %v1849 = vld [vmem:[%s212 + $0x214] sm:$0xf]
          %v1850 = vld [vmem:[%s212 + $0x218] sm:$0xf]
          %v1851 = vld [vmem:[%s212 + $0x21c] sm:$0xf]
          %v1852 = vld [vmem:[%s212 + $0x220] sm:$0xf]
          %v1853 = vld [vmem:[%s212 + $0x224] sm:$0xf]
          %v1854 = vld [vmem:[%s212 + $0x228] sm:$0xf]
          %v1855 = vld [vmem:[%s212 + $0x22c] sm:$0xf]
          %v1856 = vld [vmem:[%s212 + $0x230] sm:$0xf]
          %v1857 = vld [vmem:[%s212 + $0x234] sm:$0xf]
          %v1858 = vld [vmem:[%s212 + $0x238] sm:$0xf]
          %v1859 = vld [vmem:[%s212 + $0x23c] sm:$0xf]
          %v1860 = vld [vmem:[%s212 + $0x240] sm:$0xf]
          %v1861 = vld [vmem:[%s212 + $0x244] sm:$0xf]
          %v1862 = vld [vmem:[%s212 + $0x248] sm:$0xf]
          %v1863 = vld [vmem:[%s212 + $0x24c] sm:$0xf]
          %v1864 = vld [vmem:[%s212 + $0x250] sm:$0xf]
          %v1865 = vld [vmem:[%s212 + $0x254] sm:$0xf]
          %v1866 = vld [vmem:[%s212 + $0x258] sm:$0xf]
          %v1867 = vld [vmem:[%s212 + $0x25c] sm:$0xf]
          %v1868 = vld [vmem:[%s212 + $0x260] sm:$0xf]
          %v1869 = vld [vmem:[%s212 + $0x264] sm:$0xf]
          %v1870 = vld [vmem:[%s212 + $0x268] sm:$0xf]
          %v1871 = vld [vmem:[%s212 + $0x26c] sm:$0xf]
          %v1872 = vld [vmem:[%s212 + $0x270] sm:$0xf]
          %v1873 = vld [vmem:[%s212 + $0x274] sm:$0xf]
          %v1874 = vld [vmem:[%s212 + $0x278] sm:$0xf]
          %v1875 = vld [vmem:[%s212 + $0x27c] sm:$0xf]
          %v1876 = vld [vmem:[%s212 + $0x280] sm:$0xf]
          %v1877 = vld [vmem:[%s212 + $0x284] sm:$0xf]
          %v1878 = vld [vmem:[%s212 + $0x288] sm:$0xf]
          %v1879 = vld [vmem:[%s212 + $0x28c] sm:$0xf]
          %v1880 = vld [vmem:[%s212 + $0x290] sm:$0xf]
          %v1881 = vld [vmem:[%s212 + $0x294] sm:$0xf]
          %v1882 = vld [vmem:[%s212 + $0x298] sm:$0xf]
          %v1883 = vld [vmem:[%s212 + $0x29c] sm:$0xf]
          %v1884 = vld [vmem:[%s212 + $0x2a0] sm:$0xf]
          %v1885 = vld [vmem:[%s212 + $0x2a4] sm:$0xf]
          %v1886 = vld [vmem:[%s212 + $0x2a8] sm:$0xf]
          %v1887 = vld [vmem:[%s212 + $0x2ac] sm:$0xf]
          %v1888 = vld [vmem:[%s212 + $0x2b0] sm:$0xf]
          %v1889 = vld [vmem:[%s212 + $0x2b4] sm:$0xf]
          %v1890 = vld [vmem:[%s212 + $0x2b8] sm:$0xf]
          %v1891 = vld [vmem:[%s212 + $0x2bc] sm:$0xf]
          %v1892 = vld [vmem:[%s212 + $0x2c0] sm:$0xf]
          %v1893 = vld [vmem:[%s212 + $0x2c4] sm:$0xf]
          %v1894 = vld [vmem:[%s212 + $0x2c8] sm:$0xf]
          %v1895 = vld [vmem:[%s212 + $0x2cc] sm:$0xf]
          %v1896 = vld [vmem:[%s212 + $0x2d0] sm:$0xf]
          %v1897 = vld [vmem:[%s212 + $0x2d4] sm:$0xf]
          %v1898 = vld [vmem:[%s212 + $0x2d8] sm:$0xf]
          %v1899 = vld [vmem:[%s212 + $0x2dc] sm:$0xf]
          %v1900 = vld [vmem:[%s212 + $0x2e0] sm:$0xf]
          %v1901 = vld [vmem:[%s212 + $0x2e4] sm:$0xf]
          %v1902 = vld [vmem:[%s212 + $0x2e8] sm:$0xf]
          %v1903 = vld [vmem:[%s212 + $0x2ec] sm:$0xf]
          %v1904 = vld [vmem:[%s212 + $0x2f0] sm:$0xf]
          %v1905 = vld [vmem:[%s212 + $0x2f4] sm:$0xf]
          %v1906 = vld [vmem:[%s212 + $0x2f8] sm:$0xf]
          %v1907 = vld [vmem:[%s212 + $0x2fc] sm:$0xf]
          %v1908 = vld [vmem:[%s212 + $0x300] sm:$0xf]
          %v1909 = vld [vmem:[%s212 + $0x304] sm:$0xf]
          %v1910 = vld [vmem:[%s212 + $0x308] sm:$0xf]
          %v1911 = vld [vmem:[%s212 + $0x30c] sm:$0xf]
          %v1912 = vld [vmem:[%s212 + $0x310] sm:$0xf]
          %v1913 = vld [vmem:[%s212 + $0x314] sm:$0xf]
          %v1914 = vld [vmem:[%s212 + $0x318] sm:$0xf]
          %v1915 = vld [vmem:[%s212 + $0x31c] sm:$0xf]
          %v1916 = vld [vmem:[%s212 + $0x320] sm:$0xf]
          %v1917 = vld [vmem:[%s212 + $0x324] sm:$0xf]
          %v1918 = vld [vmem:[%s212 + $0x328] sm:$0xf]
          %v1919 = vld [vmem:[%s212 + $0x32c] sm:$0xf]
          %v1920 = vld [vmem:[%s212 + $0x330] sm:$0xf]
          %v1921 = vld [vmem:[%s212 + $0x334] sm:$0xf]
          %v1922 = vld [vmem:[%s212 + $0x338] sm:$0xf]
          %v1923 = vld [vmem:[%s212 + $0x33c] sm:$0xf]
          %v1924 = vld [vmem:[%s212 + $0x340] sm:$0xf]
          %v1925 = vld [vmem:[%s212 + $0x344] sm:$0xf]
          %v1926 = vld [vmem:[%s212 + $0x348] sm:$0xf]
          %v1927 = vld [vmem:[%s212 + $0x34c] sm:$0xf]
          %v1928 = vld [vmem:[%s212 + $0x350] sm:$0xf]
          %v1929 = vld [vmem:[%s212 + $0x354] sm:$0xf]
          %v1930 = vld [vmem:[%s212 + $0x358] sm:$0xf]
          %v1931 = vld [vmem:[%s212 + $0x35c] sm:$0xf]
          %v1932 = vld [vmem:[%s212 + $0x360] sm:$0xf]
          %v1933 = vld [vmem:[%s212 + $0x364] sm:$0xf]
          %v1934 = vld [vmem:[%s212 + $0x368] sm:$0xf]
          %v1935 = vld [vmem:[%s212 + $0x36c] sm:$0xf]
          %v1936 = vld [vmem:[%s212 + $0x370] sm:$0xf]
          %v1937 = vld [vmem:[%s212 + $0x374] sm:$0xf]
          %v1938 = vld [vmem:[%s212 + $0x378] sm:$0xf]
          %v1939 = vld [vmem:[%s212 + $0x37c] sm:$0xf]
          %v1940 = vld [vmem:[%s212 + $0x380] sm:$0xf]
          %v1941 = vld [vmem:[%s212 + $0x384] sm:$0xf]
          %v1942 = vld [vmem:[%s212 + $0x388] sm:$0xf]
          %v1943 = vld [vmem:[%s212 + $0x38c] sm:$0xf]
          %v1944 = vld [vmem:[%s212 + $0x390] sm:$0xf]
          %v1945 = vld [vmem:[%s212 + $0x394] sm:$0xf]
          %v1946 = vld [vmem:[%s212 + $0x398] sm:$0xf]
          %v1947 = vld [vmem:[%s212 + $0x39c] sm:$0xf]
          %v1948 = vld [vmem:[%s212 + $0x3a0] sm:$0xf]
          %v1949 = vld [vmem:[%s212 + $0x3a4] sm:$0xf]
          %v1950 = vld [vmem:[%s212 + $0x3a8] sm:$0xf]
          %v1951 = vld [vmem:[%s212 + $0x3ac] sm:$0xf]
          %v1952 = vld [vmem:[%s212 + $0x3b0] sm:$0xf]
          %v1953 = vld [vmem:[%s212 + $0x3b4] sm:$0xf]
          %v1954 = vld [vmem:[%s212 + $0x3b8] sm:$0xf]
          %v1955 = vld [vmem:[%s212 + $0x3bc] sm:$0xf]
          %v1956 = vld [vmem:[%s212 + $0x3c0] sm:$0xf]
          %v1957 = vld [vmem:[%s212 + $0x3c4] sm:$0xf]
          %v1958 = vld [vmem:[%s212 + $0x3c8] sm:$0xf]
          %v1959 = vld [vmem:[%s212 + $0x3cc] sm:$0xf]
          %v1960 = vld [vmem:[%s212 + $0x3d0] sm:$0xf]
          %v1961 = vld [vmem:[%s212 + $0x3d4] sm:$0xf]
          %v1962 = vld [vmem:[%s212 + $0x3d8] sm:$0xf]
          %v1963 = vld [vmem:[%s212 + $0x3dc] sm:$0xf]
          %v1964 = vld [vmem:[%s212 + $0x3e0] sm:$0xf]
          %v1965 = vld [vmem:[%s212 + $0x3e4] sm:$0xf]
          %v1966 = vld [vmem:[%s212 + $0x3e8] sm:$0xf]
          %v1967 = vld [vmem:[%s212 + $0x3ec] sm:$0xf]
          %v1968 = vld [vmem:[%s212 + $0x3f0] sm:$0xf]
          %v1969 = vld [vmem:[%s212 + $0x3f4] sm:$0xf]
          %v1970 = vld [vmem:[%s212 + $0x3f8] sm:$0xf]
          %v1971 = vld [vmem:[%s212 + $0x3fc] sm:$0xf]
          %v1988 = vunpack.c.l.b16 %v1700
          %v1989 = vunpack.c.h.b16 %v1700
          %v1990 = vunpack.c.l.b16 %v1701
          %v1991 = vunpack.c.h.b16 %v1701
          %v1992 = vunpack.c.l.b16 %v1702
          %v1993 = vunpack.c.h.b16 %v1702
          %v1994 = vunpack.c.l.b16 %v1703
          %v1995 = vunpack.c.h.b16 %v1703
          %v1996 = vunpack.c.l.b16 %v1704
          %v1997 = vunpack.c.h.b16 %v1704
          %v1998 = vunpack.c.l.b16 %v1705
          %v1999 = vunpack.c.h.b16 %v1705
          %v2000 = vunpack.c.l.b16 %v1706
          %v2001 = vunpack.c.h.b16 %v1706
          %v2002 = vunpack.c.l.b16 %v1707
          %v2003 = vunpack.c.h.b16 %v1707
          %v2004 = vunpack.c.l.b16 %v1708
          %v2005 = vunpack.c.h.b16 %v1708
          %v2006 = vunpack.c.l.b16 %v1709
          %v2007 = vunpack.c.h.b16 %v1709
          %v2008 = vunpack.c.l.b16 %v1710
          %v2009 = vunpack.c.h.b16 %v1710
          %v2010 = vunpack.c.l.b16 %v1711
          %v2011 = vunpack.c.h.b16 %v1711
          %v2012 = vunpack.c.l.b16 %v1712
          %v2013 = vunpack.c.h.b16 %v1712
          %v2014 = vunpack.c.l.b16 %v1713
          %v2015 = vunpack.c.h.b16 %v1713
          %v2016 = vunpack.c.l.b16 %v1714
          %v2017 = vunpack.c.h.b16 %v1714
          %v2018 = vunpack.c.l.b16 %v1715
          %v2019 = vunpack.c.h.b16 %v1715
          %v2020 = vpack.c.b16 %v2004, %v1988
          %v2021 = vpack.c.b16 %v2005, %v1989
          %v2022 = vpack.c.b16 %v2006, %v1990
          %v2023 = vpack.c.b16 %v2007, %v1991
          %v2024 = vpack.c.b16 %v2008, %v1992
          %v2025 = vpack.c.b16 %v2009, %v1993
          %v2026 = vpack.c.b16 %v2010, %v1994
          %v2027 = vpack.c.b16 %v2011, %v1995
          %v2028 = vpack.c.b16 %v2012, %v1996
          %v2029 = vpack.c.b16 %v2013, %v1997
          %v2030 = vpack.c.b16 %v2014, %v1998
          %v2031 = vpack.c.b16 %v2015, %v1999
          %v2032 = vpack.c.b16 %v2016, %v2000
          %v2033 = vpack.c.b16 %v2017, %v2001
          %v2034 = vpack.c.b16 %v2018, %v2002
          %v2035 = vpack.c.b16 %v2019, %v2003
          %v2308 = vunpack.c.l.b16 %v1716
          %v2309 = vunpack.c.l.b16 %v1717
          %v2310 = vunpack.c.l.b16 %v1718
          %v2311 = vunpack.c.l.b16 %v1719
          %v2312 = vunpack.c.l.b16 %v1720
          %v2313 = vunpack.c.l.b16 %v1721
          %v2314 = vunpack.c.l.b16 %v1722
          %v2315 = vunpack.c.l.b16 %v1723
          %v2316 = vunpack.c.l.b16 %v1724
          %v2317 = vunpack.c.l.b16 %v1725
          %v2318 = vunpack.c.l.b16 %v1726
          %v2319 = vunpack.c.l.b16 %v1727
          %v2320 = vunpack.c.l.b16 %v1728
          %v2321 = vunpack.c.l.b16 %v1729
          %v2322 = vunpack.c.l.b16 %v1730
          %v2323 = vunpack.c.l.b16 %v1731
          %v2324 = vunpack.c.l.b16 %v1732
          %v2325 = vunpack.c.l.b16 %v1733
          %v2326 = vunpack.c.l.b16 %v1734
          %v2327 = vunpack.c.l.b16 %v1735
          %v2328 = vunpack.c.l.b16 %v1736
          %v2329 = vunpack.c.l.b16 %v1737
          %v2330 = vunpack.c.l.b16 %v1738
          %v2331 = vunpack.c.l.b16 %v1739
          %v2332 = vunpack.c.l.b16 %v1740
          %v2333 = vunpack.c.l.b16 %v1741
          %v2334 = vunpack.c.l.b16 %v1742
          %v2335 = vunpack.c.l.b16 %v1743
          %v2336 = vunpack.c.l.b16 %v1744
          %v2337 = vunpack.c.l.b16 %v1745
          %v2338 = vunpack.c.l.b16 %v1746
          %v2339 = vunpack.c.l.b16 %v1747
          %v2340 = vunpack.c.l.b16 %v1748
          %v2341 = vunpack.c.l.b16 %v1749
          %v2342 = vunpack.c.l.b16 %v1750
          %v2343 = vunpack.c.l.b16 %v1751
          %v2344 = vunpack.c.l.b16 %v1752
          %v2345 = vunpack.c.l.b16 %v1753
          %v2346 = vunpack.c.l.b16 %v1754
          %v2347 = vunpack.c.l.b16 %v1755
          %v2348 = vunpack.c.l.b16 %v1756
          %v2349 = vunpack.c.l.b16 %v1757
          %v2350 = vunpack.c.l.b16 %v1758
          %v2351 = vunpack.c.l.b16 %v1759
          %v2352 = vunpack.c.l.b16 %v1760
          %v2353 = vunpack.c.l.b16 %v1761
          %v2354 = vunpack.c.l.b16 %v1762
          %v2355 = vunpack.c.l.b16 %v1763
          %v2356 = vunpack.c.l.b16 %v1764
          %v2357 = vunpack.c.l.b16 %v1765
          %v2358 = vunpack.c.l.b16 %v1766
          %v2359 = vunpack.c.l.b16 %v1767
          %v2360 = vunpack.c.l.b16 %v1768
          %v2361 = vunpack.c.l.b16 %v1769
          %v2362 = vunpack.c.l.b16 %v1770
          %v2363 = vunpack.c.l.b16 %v1771
          %v2364 = vunpack.c.l.b16 %v1772
          %v2365 = vunpack.c.l.b16 %v1773
          %v2366 = vunpack.c.l.b16 %v1774
          %v2367 = vunpack.c.l.b16 %v1775
          %v2368 = vunpack.c.l.b16 %v1776
          %v2369 = vunpack.c.l.b16 %v1777
          %v2370 = vunpack.c.l.b16 %v1778
          %v2371 = vunpack.c.l.b16 %v1779
          %v2372 = vunpack.c.l.b16 %v1780
          %v2373 = vunpack.c.l.b16 %v1781
          %v2374 = vunpack.c.l.b16 %v1782
          %v2375 = vunpack.c.l.b16 %v1783
          %v2376 = vunpack.c.l.b16 %v1784
          %v2377 = vunpack.c.l.b16 %v1785
          %v2378 = vunpack.c.l.b16 %v1786
          %v2379 = vunpack.c.l.b16 %v1787
          %v2380 = vunpack.c.l.b16 %v1788
          %v2381 = vunpack.c.l.b16 %v1789
          %v2382 = vunpack.c.l.b16 %v1790
          %v2383 = vunpack.c.l.b16 %v1791
          %v2384 = vunpack.c.l.b16 %v1792
          %v2385 = vunpack.c.l.b16 %v1793
          %v2386 = vunpack.c.l.b16 %v1794
          %v2387 = vunpack.c.l.b16 %v1795
          %v2388 = vunpack.c.l.b16 %v1796
          %v2389 = vunpack.c.l.b16 %v1797
          %v2390 = vunpack.c.l.b16 %v1798
          %v2391 = vunpack.c.l.b16 %v1799
          %v2392 = vunpack.c.l.b16 %v1800
          %v2393 = vunpack.c.l.b16 %v1801
          %v2394 = vunpack.c.l.b16 %v1802
          %v2395 = vunpack.c.l.b16 %v1803
          %v2396 = vunpack.c.l.b16 %v1804
          %v2397 = vunpack.c.l.b16 %v1805
          %v2398 = vunpack.c.l.b16 %v1806
          %v2399 = vunpack.c.l.b16 %v1807
          %v2400 = vunpack.c.l.b16 %v1808
          %v2401 = vunpack.c.l.b16 %v1809
          %v2402 = vunpack.c.l.b16 %v1810
          %v2403 = vunpack.c.l.b16 %v1811
          %v2404 = vunpack.c.l.b16 %v1812
          %v2405 = vunpack.c.l.b16 %v1813
          %v2406 = vunpack.c.l.b16 %v1814
          %v2407 = vunpack.c.l.b16 %v1815
          %v2408 = vunpack.c.l.b16 %v1816
          %v2409 = vunpack.c.l.b16 %v1817
          %v2410 = vunpack.c.l.b16 %v1818
          %v2411 = vunpack.c.l.b16 %v1819
          %v2412 = vunpack.c.l.b16 %v1820
          %v2413 = vunpack.c.l.b16 %v1821
          %v2414 = vunpack.c.l.b16 %v1822
          %v2415 = vunpack.c.l.b16 %v1823
          %v2416 = vunpack.c.l.b16 %v1824
          %v2417 = vunpack.c.l.b16 %v1825
          %v2418 = vunpack.c.l.b16 %v1826
          %v2419 = vunpack.c.l.b16 %v1827
          %v2420 = vunpack.c.l.b16 %v1828
          %v2421 = vunpack.c.l.b16 %v1829
          %v2422 = vunpack.c.l.b16 %v1830
          %v2423 = vunpack.c.l.b16 %v1831
          %v2424 = vunpack.c.l.b16 %v1832
          %v2425 = vunpack.c.l.b16 %v1833
          %v2426 = vunpack.c.l.b16 %v1834
          %v2427 = vunpack.c.l.b16 %v1835
          %v2428 = vunpack.c.l.b16 %v1836
          %v2429 = vunpack.c.l.b16 %v1837
          %v2430 = vunpack.c.l.b16 %v1838
          %v2431 = vunpack.c.l.b16 %v1839
          %v2432 = vunpack.c.l.b16 %v1840
          %v2433 = vunpack.c.l.b16 %v1841
          %v2434 = vunpack.c.l.b16 %v1842
          %v2435 = vunpack.c.l.b16 %v1843
          %v2436 = vunpack.c.l.b16 %v1844
          %v2437 = vunpack.c.l.b16 %v1845
          %v2438 = vunpack.c.l.b16 %v1846
          %v2439 = vunpack.c.l.b16 %v1847
          %v2440 = vunpack.c.l.b16 %v1848
          %v2441 = vunpack.c.l.b16 %v1849
          %v2442 = vunpack.c.l.b16 %v1850
          %v2443 = vunpack.c.l.b16 %v1851
          %v2444 = vunpack.c.l.b16 %v1852
          %v2445 = vunpack.c.l.b16 %v1853
          %v2446 = vunpack.c.l.b16 %v1854
          %v2447 = vunpack.c.l.b16 %v1855
          %v2448 = vunpack.c.l.b16 %v1856
          %v2449 = vunpack.c.l.b16 %v1857
          %v2450 = vunpack.c.l.b16 %v1858
          %v2451 = vunpack.c.l.b16 %v1859
          %v2452 = vunpack.c.l.b16 %v1860
          %v2453 = vunpack.c.l.b16 %v1861
          %v2454 = vunpack.c.l.b16 %v1862
          %v2455 = vunpack.c.l.b16 %v1863
          %v2456 = vunpack.c.l.b16 %v1864
          %v2457 = vunpack.c.l.b16 %v1865
          %v2458 = vunpack.c.l.b16 %v1866
          %v2459 = vunpack.c.l.b16 %v1867
          %v2460 = vunpack.c.l.b16 %v1868
          %v2461 = vunpack.c.l.b16 %v1869
          %v2462 = vunpack.c.l.b16 %v1870
          %v2463 = vunpack.c.l.b16 %v1871
          %v2464 = vunpack.c.l.b16 %v1872
          %v2465 = vunpack.c.l.b16 %v1873
          %v2466 = vunpack.c.l.b16 %v1874
          %v2467 = vunpack.c.l.b16 %v1875
          %v2468 = vunpack.c.l.b16 %v1876
          %v2469 = vunpack.c.l.b16 %v1877
          %v2470 = vunpack.c.l.b16 %v1878
          %v2471 = vunpack.c.l.b16 %v1879
          %v2472 = vunpack.c.l.b16 %v1880
          %v2473 = vunpack.c.l.b16 %v1881
          %v2474 = vunpack.c.l.b16 %v1882
          %v2475 = vunpack.c.l.b16 %v1883
          %v2476 = vunpack.c.l.b16 %v1884
          %v2477 = vunpack.c.l.b16 %v1885
          %v2478 = vunpack.c.l.b16 %v1886
          %v2479 = vunpack.c.l.b16 %v1887
          %v2480 = vunpack.c.l.b16 %v1888
          %v2481 = vunpack.c.l.b16 %v1889
          %v2482 = vunpack.c.l.b16 %v1890
          %v2483 = vunpack.c.l.b16 %v1891
          %v2484 = vunpack.c.l.b16 %v1892
          %v2485 = vunpack.c.l.b16 %v1893
          %v2486 = vunpack.c.l.b16 %v1894
          %v2487 = vunpack.c.l.b16 %v1895
          %v2488 = vunpack.c.l.b16 %v1896
          %v2489 = vunpack.c.l.b16 %v1897
          %v2490 = vunpack.c.l.b16 %v1898
          %v2491 = vunpack.c.l.b16 %v1899
          %v2492 = vunpack.c.l.b16 %v1900
          %v2493 = vunpack.c.l.b16 %v1901
          %v2494 = vunpack.c.l.b16 %v1902
          %v2495 = vunpack.c.l.b16 %v1903
          %v2496 = vunpack.c.l.b16 %v1904
          %v2497 = vunpack.c.l.b16 %v1905
          %v2498 = vunpack.c.l.b16 %v1906
          %v2499 = vunpack.c.l.b16 %v1907
          %v2500 = vunpack.c.l.b16 %v1908
          %v2501 = vunpack.c.l.b16 %v1909
          %v2502 = vunpack.c.l.b16 %v1910
          %v2503 = vunpack.c.l.b16 %v1911
          %v2504 = vunpack.c.l.b16 %v1912
          %v2505 = vunpack.c.l.b16 %v1913
          %v2506 = vunpack.c.l.b16 %v1914
          %v2507 = vunpack.c.l.b16 %v1915
          %v2508 = vunpack.c.l.b16 %v1916
          %v2509 = vunpack.c.l.b16 %v1917
          %v2510 = vunpack.c.l.b16 %v1918
          %v2511 = vunpack.c.l.b16 %v1919
          %v2512 = vunpack.c.l.b16 %v1920
          %v2513 = vunpack.c.l.b16 %v1921
          %v2514 = vunpack.c.l.b16 %v1922
          %v2515 = vunpack.c.l.b16 %v1923
          %v2516 = vunpack.c.l.b16 %v1924
          %v2517 = vunpack.c.l.b16 %v1925
          %v2518 = vunpack.c.l.b16 %v1926
          %v2519 = vunpack.c.l.b16 %v1927
          %v2520 = vunpack.c.l.b16 %v1928
          %v2521 = vunpack.c.l.b16 %v1929
          %v2522 = vunpack.c.l.b16 %v1930
          %v2523 = vunpack.c.l.b16 %v1931
          %v2524 = vunpack.c.l.b16 %v1932
          %v2525 = vunpack.c.l.b16 %v1933
          %v2526 = vunpack.c.l.b16 %v1934
          %v2527 = vunpack.c.l.b16 %v1935
          %v2528 = vunpack.c.l.b16 %v1936
          %v2529 = vunpack.c.l.b16 %v1937
          %v2530 = vunpack.c.l.b16 %v1938
          %v2531 = vunpack.c.l.b16 %v1939
          %v2532 = vunpack.c.l.b16 %v1940
          %v2533 = vunpack.c.l.b16 %v1941
          %v2534 = vunpack.c.l.b16 %v1942
          %v2535 = vunpack.c.l.b16 %v1943
          %v2536 = vunpack.c.l.b16 %v1944
          %v2537 = vunpack.c.l.b16 %v1945
          %v2538 = vunpack.c.l.b16 %v1946
          %v2539 = vunpack.c.l.b16 %v1947
          %v2540 = vunpack.c.l.b16 %v1948
          %v2541 = vunpack.c.l.b16 %v1949
          %v2542 = vunpack.c.l.b16 %v1950
          %v2543 = vunpack.c.l.b16 %v1951
          %v2544 = vunpack.c.l.b16 %v1952
          %v2545 = vunpack.c.l.b16 %v1953
          %v2546 = vunpack.c.l.b16 %v1954
          %v2547 = vunpack.c.l.b16 %v1955
          %v2548 = vunpack.c.l.b16 %v1956
          %v2549 = vunpack.c.l.b16 %v1957
          %v2550 = vunpack.c.l.b16 %v1958
          %v2551 = vunpack.c.l.b16 %v1959
          %v2552 = vunpack.c.l.b16 %v1960
          %v2553 = vunpack.c.l.b16 %v1961
          %v2554 = vunpack.c.l.b16 %v1962
          %v2555 = vunpack.c.l.b16 %v1963
          %v2556 = vunpack.c.l.b16 %v1964
          %v2557 = vunpack.c.l.b16 %v1965
          %v2558 = vunpack.c.l.b16 %v1966
          %v2559 = vunpack.c.l.b16 %v1967
          %v2560 = vunpack.c.l.b16 %v1968
          %v2561 = vunpack.c.l.b16 %v1969
          %v2562 = vunpack.c.l.b16 %v1970
          %v2563 = vunpack.c.l.b16 %v1971
          %v2564 = vpack.c.b16 %v2309, %v2308
          %v2565 = vpack.c.b16 %v2311, %v2310
          %v2566 = vpack.c.b16 %v2313, %v2312
          %v2567 = vpack.c.b16 %v2315, %v2314
          %v2568 = vpack.c.b16 %v2317, %v2316
          %v2569 = vpack.c.b16 %v2319, %v2318
          %v2570 = vpack.c.b16 %v2321, %v2320
          %v2571 = vpack.c.b16 %v2323, %v2322
          %v2572 = vpack.c.b16 %v2325, %v2324
          %v2573 = vpack.c.b16 %v2327, %v2326
          %v2574 = vpack.c.b16 %v2329, %v2328
          %v2575 = vpack.c.b16 %v2331, %v2330
          %v2576 = vpack.c.b16 %v2333, %v2332
          %v2577 = vpack.c.b16 %v2335, %v2334
          %v2578 = vpack.c.b16 %v2337, %v2336
          %v2579 = vpack.c.b16 %v2339, %v2338
          %v2580 = vpack.c.b16 %v2341, %v2340
          %v2581 = vpack.c.b16 %v2343, %v2342
          %v2582 = vpack.c.b16 %v2345, %v2344
          %v2583 = vpack.c.b16 %v2347, %v2346
          %v2584 = vpack.c.b16 %v2349, %v2348
          %v2585 = vpack.c.b16 %v2351, %v2350
          %v2586 = vpack.c.b16 %v2353, %v2352
          %v2587 = vpack.c.b16 %v2355, %v2354
          %v2588 = vpack.c.b16 %v2357, %v2356
          %v2589 = vpack.c.b16 %v2359, %v2358
          %v2590 = vpack.c.b16 %v2361, %v2360
          %v2591 = vpack.c.b16 %v2363, %v2362
          %v2592 = vpack.c.b16 %v2365, %v2364
          %v2593 = vpack.c.b16 %v2367, %v2366
          %v2594 = vpack.c.b16 %v2369, %v2368
          %v2595 = vpack.c.b16 %v2371, %v2370
          %v2596 = vpack.c.b16 %v2373, %v2372
          %v2597 = vpack.c.b16 %v2375, %v2374
          %v2598 = vpack.c.b16 %v2377, %v2376
          %v2599 = vpack.c.b16 %v2379, %v2378
          %v2600 = vpack.c.b16 %v2381, %v2380
          %v2601 = vpack.c.b16 %v2383, %v2382
          %v2602 = vpack.c.b16 %v2385, %v2384
          %v2603 = vpack.c.b16 %v2387, %v2386
          %v2604 = vpack.c.b16 %v2389, %v2388
          %v2605 = vpack.c.b16 %v2391, %v2390
          %v2606 = vpack.c.b16 %v2393, %v2392
          %v2607 = vpack.c.b16 %v2395, %v2394
          %v2608 = vpack.c.b16 %v2397, %v2396
          %v2609 = vpack.c.b16 %v2399, %v2398
          %v2610 = vpack.c.b16 %v2401, %v2400
          %v2611 = vpack.c.b16 %v2403, %v2402
          %v2612 = vpack.c.b16 %v2405, %v2404
          %v2613 = vpack.c.b16 %v2407, %v2406
          %v2614 = vpack.c.b16 %v2409, %v2408
          %v2615 = vpack.c.b16 %v2411, %v2410
          %v2616 = vpack.c.b16 %v2413, %v2412
          %v2617 = vpack.c.b16 %v2415, %v2414
          %v2618 = vpack.c.b16 %v2417, %v2416
          %v2619 = vpack.c.b16 %v2419, %v2418
          %v2620 = vpack.c.b16 %v2421, %v2420
          %v2621 = vpack.c.b16 %v2423, %v2422
          %v2622 = vpack.c.b16 %v2425, %v2424
          %v2623 = vpack.c.b16 %v2427, %v2426
          %v2624 = vpack.c.b16 %v2429, %v2428
          %v2625 = vpack.c.b16 %v2431, %v2430
          %v2626 = vpack.c.b16 %v2433, %v2432
          %v2627 = vpack.c.b16 %v2435, %v2434
          %v2628 = vpack.c.b16 %v2437, %v2436
          %v2629 = vpack.c.b16 %v2439, %v2438
          %v2630 = vpack.c.b16 %v2441, %v2440
          %v2631 = vpack.c.b16 %v2443, %v2442
          %v2632 = vpack.c.b16 %v2445, %v2444
          %v2633 = vpack.c.b16 %v2447, %v2446
          %v2634 = vpack.c.b16 %v2449, %v2448
          %v2635 = vpack.c.b16 %v2451, %v2450
          %v2636 = vpack.c.b16 %v2453, %v2452
          %v2637 = vpack.c.b16 %v2455, %v2454
          %v2638 = vpack.c.b16 %v2457, %v2456
          %v2639 = vpack.c.b16 %v2459, %v2458
          %v2640 = vpack.c.b16 %v2461, %v2460
          %v2641 = vpack.c.b16 %v2463, %v2462
          %v2642 = vpack.c.b16 %v2465, %v2464
          %v2643 = vpack.c.b16 %v2467, %v2466
          %v2644 = vpack.c.b16 %v2469, %v2468
          %v2645 = vpack.c.b16 %v2471, %v2470
          %v2646 = vpack.c.b16 %v2473, %v2472
          %v2647 = vpack.c.b16 %v2475, %v2474
          %v2648 = vpack.c.b16 %v2477, %v2476
          %v2649 = vpack.c.b16 %v2479, %v2478
          %v2650 = vpack.c.b16 %v2481, %v2480
          %v2651 = vpack.c.b16 %v2483, %v2482
          %v2652 = vpack.c.b16 %v2485, %v2484
          %v2653 = vpack.c.b16 %v2487, %v2486
          %v2654 = vpack.c.b16 %v2489, %v2488
          %v2655 = vpack.c.b16 %v2491, %v2490
          %v2656 = vpack.c.b16 %v2493, %v2492
          %v2657 = vpack.c.b16 %v2495, %v2494
          %v2658 = vpack.c.b16 %v2497, %v2496
          %v2659 = vpack.c.b16 %v2499, %v2498
          %v2660 = vpack.c.b16 %v2501, %v2500
          %v2661 = vpack.c.b16 %v2503, %v2502
          %v2662 = vpack.c.b16 %v2505, %v2504
          %v2663 = vpack.c.b16 %v2507, %v2506
          %v2664 = vpack.c.b16 %v2509, %v2508
          %v2665 = vpack.c.b16 %v2511, %v2510
          %v2666 = vpack.c.b16 %v2513, %v2512
          %v2667 = vpack.c.b16 %v2515, %v2514
          %v2668 = vpack.c.b16 %v2517, %v2516
          %v2669 = vpack.c.b16 %v2519, %v2518
          %v2670 = vpack.c.b16 %v2521, %v2520
          %v2671 = vpack.c.b16 %v2523, %v2522
          %v2672 = vpack.c.b16 %v2525, %v2524
          %v2673 = vpack.c.b16 %v2527, %v2526
          %v2674 = vpack.c.b16 %v2529, %v2528
          %v2675 = vpack.c.b16 %v2531, %v2530
          %v2676 = vpack.c.b16 %v2533, %v2532
          %v2677 = vpack.c.b16 %v2535, %v2534
          %v2678 = vpack.c.b16 %v2537, %v2536
          %v2679 = vpack.c.b16 %v2539, %v2538
          %v2680 = vpack.c.b16 %v2541, %v2540
          %v2681 = vpack.c.b16 %v2543, %v2542
          %v2682 = vpack.c.b16 %v2545, %v2544
          %v2683 = vpack.c.b16 %v2547, %v2546
          %v2684 = vpack.c.b16 %v2549, %v2548
          %v2685 = vpack.c.b16 %v2551, %v2550
          %v2686 = vpack.c.b16 %v2553, %v2552
          %v2687 = vpack.c.b16 %v2555, %v2554
          %v2688 = vpack.c.b16 %v2557, %v2556
          %v2689 = vpack.c.b16 %v2559, %v2558
          %v2690 = vpack.c.b16 %v2561, %v2560
          %v2691 = vpack.c.b16 %v2563, %v2562
          %2820 = vmatprep.subr.bf16.mxu0 0
          %2821 = vmatpush1.bf16.msra.mxu0 %v2571
          %2822 = vmatprep.subr.bf16.mxu0 0
          %2823 = vmatpush1.bf16.msra.mxu0 %v2570
          %2824 = vmatprep.subr.bf16.mxu0 0
          %2825 = vmatpush1.bf16.msra.mxu0 %v2569
          %2826 = vmatprep.subr.bf16.mxu0 0
          %2827 = vmatpush1.bf16.msra.mxu0 %v2568
          %2828 = vmatprep.subr.bf16.mxu0 0
          %2829 = vmatpush1.bf16.msra.mxu0 %v2567
          %2830 = vmatprep.subr.bf16.mxu0 0
          %2831 = vmatpush1.bf16.msra.mxu0 %v2566
          %2832 = vmatprep.subr.bf16.mxu0 0
          %2833 = vmatpush1.bf16.msra.mxu0 %v2565
          %2834 = vmatprep.subr.bf16.mxu0 0
          %2835 = vmatpush1.bf16.msra.mxu0 %v2564
          %2836 = vmatprep.subr.bf16.mxu0 0
          %2837 = vmatpush2.bf16.msra.mxu0 %v2579
          %2838 = vmatprep.subr.bf16.mxu0 0
          %2839 = vmatpush2.bf16.msra.mxu0 %v2578
          %2840 = vmatprep.subr.bf16.mxu0 0
          %2841 = vmatpush2.bf16.msra.mxu0 %v2577
          %2842 = vmatprep.subr.bf16.mxu0 0
          %2843 = vmatpush2.bf16.msra.mxu0 %v2576
          %2844 = vmatprep.subr.bf16.mxu0 0
          %2845 = vmatpush2.bf16.msra.mxu0 %v2575
          %2846 = vmatprep.subr.bf16.mxu0 0
          %2847 = vmatpush2.bf16.msra.mxu0 %v2574
          %2848 = vmatprep.subr.bf16.mxu0 0
          %2849 = vmatpush2.bf16.msra.mxu0 %v2573
          %2850 = vmatprep.subr.bf16.mxu0 0
          %2851 = vmatpush2.bf16.msra.mxu0 %v2572
          %2852 = vmatprep.mubr.bf16.mxu0 %v2021
          %2853 = vmatmul.mubr.bf16.gmra.mxu0 %v2020
          %v2854 = vpop.f32.mrf.mxu0
          %v2855 = vadd.f32 0.0, %v2854
          %v2856 = vpop.f32.mrf.mxu0
          %v2857 = vpop.f32.mrf.mxu0
          %v2858 = vadd.f32 0.0, %v2857
          %v2859 = vpop.f32.mrf.mxu0
          %2860 = vdwg.mxu0
          %2861 = vmatprep.subr.bf16.mxu0 0
          %2862 = vmatpush1.bf16.msra.mxu0 %v2587
          %2863 = vmatprep.subr.bf16.mxu0 0
          %2864 = vmatpush1.bf16.msra.mxu0 %v2586
          %2865 = vmatprep.subr.bf16.mxu0 0
          %2866 = vmatpush1.bf16.msra.mxu0 %v2585
          %2867 = vmatprep.subr.bf16.mxu0 0
          %2868 = vmatpush1.bf16.msra.mxu0 %v2584
          %2869 = vmatprep.subr.bf16.mxu0 0
          %2870 = vmatpush1.bf16.msra.mxu0 %v2583
          %2871 = vmatprep.subr.bf16.mxu0 0
          %2872 = vmatpush1.bf16.msra.mxu0 %v2582
          %2873 = vmatprep.subr.bf16.mxu0 0
          %2874 = vmatpush1.bf16.msra.mxu0 %v2581
          %2875 = vmatprep.subr.bf16.mxu0 0
          %2876 = vmatpush1.bf16.msra.mxu0 %v2580
          %2877 = vmatprep.subr.bf16.mxu0 0
          %2878 = vmatpush2.bf16.msra.mxu0 %v2595
          %2879 = vmatprep.subr.bf16.mxu0 0
          %2880 = vmatpush2.bf16.msra.mxu0 %v2594
          %2881 = vmatprep.subr.bf16.mxu0 0
          %2882 = vmatpush2.bf16.msra.mxu0 %v2593
          %2883 = vmatprep.subr.bf16.mxu0 0
          %2884 = vmatpush2.bf16.msra.mxu0 %v2592
          %2885 = vmatprep.subr.bf16.mxu0 0
          %2886 = vmatpush2.bf16.msra.mxu0 %v2591
          %2887 = vmatprep.subr.bf16.mxu0 0
          %2888 = vmatpush2.bf16.msra.mxu0 %v2590
          %2889 = vmatprep.subr.bf16.mxu0 0
          %2890 = vmatpush2.bf16.msra.mxu0 %v2589
          %2891 = vmatprep.subr.bf16.mxu0 0
          %2892 = vmatpush2.bf16.msra.mxu0 %v2588
          %2893 = vmatprep.mubr.bf16.mxu0 %v2023
          %2894 = vmatmul.mubr.bf16.gmra.mxu0 %v2022
          %v2895 = vpop.f32.mrf.mxu0
          %v2896 = vadd.f32 %v2855, %v2895
          %v2897 = vpop.f32.mrf.mxu0
          %v2898 = vpop.f32.mrf.mxu0
          %v2899 = vadd.f32 %v2858, %v2898
          %v2900 = vpop.f32.mrf.mxu0
          %2901 = vdwg.mxu0
          %2902 = vmatprep.subr.bf16.mxu0 0
          %2903 = vmatpush1.bf16.msra.mxu0 %v2603
          %2904 = vmatprep.subr.bf16.mxu0 0
          %2905 = vmatpush1.bf16.msra.mxu0 %v2602
          %2906 = vmatprep.subr.bf16.mxu0 0
          %2907 = vmatpush1.bf16.msra.mxu0 %v2601
          %2908 = vmatprep.subr.bf16.mxu0 0
          %2909 = vmatpush1.bf16.msra.mxu0 %v2600
          %2910 = vmatprep.subr.bf16.mxu0 0
          %2911 = vmatpush1.bf16.msra.mxu0 %v2599
          %2912 = vmatprep.subr.bf16.mxu0 0
          %2913 = vmatpush1.bf16.msra.mxu0 %v2598
          %2914 = vmatprep.subr.bf16.mxu0 0
          %2915 = vmatpush1.bf16.msra.mxu0 %v2597
          %2916 = vmatprep.subr.bf16.mxu0 0
          %2917 = vmatpush1.bf16.msra.mxu0 %v2596
          %2918 = vmatprep.subr.bf16.mxu0 0
          %2919 = vmatpush2.bf16.msra.mxu0 %v2611
          %2920 = vmatprep.subr.bf16.mxu0 0
          %2921 = vmatpush2.bf16.msra.mxu0 %v2610
          %2922 = vmatprep.subr.bf16.mxu0 0
          %2923 = vmatpush2.bf16.msra.mxu0 %v2609
          %2924 = vmatprep.subr.bf16.mxu0 0
          %2925 = vmatpush2.bf16.msra.mxu0 %v2608
          %2926 = vmatprep.subr.bf16.mxu0 0
          %2927 = vmatpush2.bf16.msra.mxu0 %v2607
          %2928 = vmatprep.subr.bf16.mxu0 0
          %2929 = vmatpush2.bf16.msra.mxu0 %v2606
          %2930 = vmatprep.subr.bf16.mxu0 0
          %2931 = vmatpush2.bf16.msra.mxu0 %v2605
          %2932 = vmatprep.subr.bf16.mxu0 0
          %2933 = vmatpush2.bf16.msra.mxu0 %v2604
          %2934 = vmatprep.mubr.bf16.mxu0 %v2025
          %2935 = vmatmul.mubr.bf16.gmra.mxu0 %v2024
          %v2936 = vpop.f32.mrf.mxu0
          %v2937 = vadd.f32 %v2896, %v2936
          %v2938 = vpop.f32.mrf.mxu0
          %v2939 = vpop.f32.mrf.mxu0
          %v2940 = vadd.f32 %v2899, %v2939
          %v2941 = vpop.f32.mrf.mxu0
          %2942 = vdwg.mxu0
          %2943 = vmatprep.subr.bf16.mxu0 0
          %2944 = vmatpush1.bf16.msra.mxu0 %v2619
          %2945 = vmatprep.subr.bf16.mxu0 0
          %2946 = vmatpush1.bf16.msra.mxu0 %v2618
          %2947 = vmatprep.subr.bf16.mxu0 0
          %2948 = vmatpush1.bf16.msra.mxu0 %v2617
          %2949 = vmatprep.subr.bf16.mxu0 0
          %2950 = vmatpush1.bf16.msra.mxu0 %v2616
          %2951 = vmatprep.subr.bf16.mxu0 0
          %2952 = vmatpush1.bf16.msra.mxu0 %v2615
          %2953 = vmatprep.subr.bf16.mxu0 0
          %2954 = vmatpush1.bf16.msra.mxu0 %v2614
          %2955 = vmatprep.subr.bf16.mxu0 0
          %2956 = vmatpush1.bf16.msra.mxu0 %v2613
          %2957 = vmatprep.subr.bf16.mxu0 0
          %2958 = vmatpush1.bf16.msra.mxu0 %v2612
          %2959 = vmatprep.subr.bf16.mxu0 0
          %2960 = vmatpush2.bf16.msra.mxu0 %v2627
          %2961 = vmatprep.subr.bf16.mxu0 0
          %2962 = vmatpush2.bf16.msra.mxu0 %v2626
          %2963 = vmatprep.subr.bf16.mxu0 0
          %2964 = vmatpush2.bf16.msra.mxu0 %v2625
          %2965 = vmatprep.subr.bf16.mxu0 0
          %2966 = vmatpush2.bf16.msra.mxu0 %v2624
          %2967 = vmatprep.subr.bf16.mxu0 0
          %2968 = vmatpush2.bf16.msra.mxu0 %v2623
          %2969 = vmatprep.subr.bf16.mxu0 0
          %2970 = vmatpush2.bf16.msra.mxu0 %v2622
          %2971 = vmatprep.subr.bf16.mxu0 0
          %2972 = vmatpush2.bf16.msra.mxu0 %v2621
          %2973 = vmatprep.subr.bf16.mxu0 0
          %2974 = vmatpush2.bf16.msra.mxu0 %v2620
          %2975 = vmatprep.mubr.bf16.mxu0 %v2027
          %2976 = vmatmul.mubr.bf16.gmra.mxu0 %v2026
          %v2977 = vpop.f32.mrf.mxu0
          %v2978 = vadd.f32 %v2937, %v2977
          %v2979 = vpop.f32.mrf.mxu0
          %v2980 = vpop.f32.mrf.mxu0
          %v2981 = vadd.f32 %v2940, %v2980
          %v2982 = vpop.f32.mrf.mxu0
          %2983 = vdwg.mxu0
          %2984 = vmatprep.subr.bf16.mxu0 0
          %2985 = vmatpush1.bf16.msra.mxu0 %v2635
          %2986 = vmatprep.subr.bf16.mxu0 0
          %2987 = vmatpush1.bf16.msra.mxu0 %v2634
          %2988 = vmatprep.subr.bf16.mxu0 0
          %2989 = vmatpush1.bf16.msra.mxu0 %v2633
          %2990 = vmatprep.subr.bf16.mxu0 0
          %2991 = vmatpush1.bf16.msra.mxu0 %v2632
          %2992 = vmatprep.subr.bf16.mxu0 0
          %2993 = vmatpush1.bf16.msra.mxu0 %v2631
          %2994 = vmatprep.subr.bf16.mxu0 0
          %2995 = vmatpush1.bf16.msra.mxu0 %v2630
          %2996 = vmatprep.subr.bf16.mxu0 0
          %2997 = vmatpush1.bf16.msra.mxu0 %v2629
          %2998 = vmatprep.subr.bf16.mxu0 0
          %2999 = vmatpush1.bf16.msra.mxu0 %v2628
          %3000 = vmatprep.subr.bf16.mxu0 0
          %3001 = vmatpush2.bf16.msra.mxu0 %v2643
          %3002 = vmatprep.subr.bf16.mxu0 0
          %3003 = vmatpush2.bf16.msra.mxu0 %v2642
          %3004 = vmatprep.subr.bf16.mxu0 0
          %3005 = vmatpush2.bf16.msra.mxu0 %v2641
          %3006 = vmatprep.subr.bf16.mxu0 0
          %3007 = vmatpush2.bf16.msra.mxu0 %v2640
          %3008 = vmatprep.subr.bf16.mxu0 0
          %3009 = vmatpush2.bf16.msra.mxu0 %v2639
          %3010 = vmatprep.subr.bf16.mxu0 0
          %3011 = vmatpush2.bf16.msra.mxu0 %v2638
          %3012 = vmatprep.subr.bf16.mxu0 0
          %3013 = vmatpush2.bf16.msra.mxu0 %v2637
          %3014 = vmatprep.subr.bf16.mxu0 0
          %3015 = vmatpush2.bf16.msra.mxu0 %v2636
          %3016 = vmatprep.mubr.bf16.mxu0 %v2029
          %3017 = vmatmul.mubr.bf16.gmra.mxu0 %v2028
          %v3018 = vpop.f32.mrf.mxu0
          %v3019 = vadd.f32 %v2978, %v3018
          %v3020 = vpop.f32.mrf.mxu0
          %v3021 = vpop.f32.mrf.mxu0
          %v3022 = vadd.f32 %v2981, %v3021
          %v3023 = vpop.f32.mrf.mxu0
          %3024 = vdwg.mxu0
          %3025 = vmatprep.subr.bf16.mxu0 0
          %3026 = vmatpush1.bf16.msra.mxu0 %v2651
          %3027 = vmatprep.subr.bf16.mxu0 0
          %3028 = vmatpush1.bf16.msra.mxu0 %v2650
          %3029 = vmatprep.subr.bf16.mxu0 0
          %3030 = vmatpush1.bf16.msra.mxu0 %v2649
          %3031 = vmatprep.subr.bf16.mxu0 0
          %3032 = vmatpush1.bf16.msra.mxu0 %v2648
          %3033 = vmatprep.subr.bf16.mxu0 0
          %3034 = vmatpush1.bf16.msra.mxu0 %v2647
          %3035 = vmatprep.subr.bf16.mxu0 0
          %3036 = vmatpush1.bf16.msra.mxu0 %v2646
          %3037 = vmatprep.subr.bf16.mxu0 0
          %3038 = vmatpush1.bf16.msra.mxu0 %v2645
          %3039 = vmatprep.subr.bf16.mxu0 0
          %3040 = vmatpush1.bf16.msra.mxu0 %v2644
          %3041 = vmatprep.subr.bf16.mxu0 0
          %3042 = vmatpush2.bf16.msra.mxu0 %v2659
          %3043 = vmatprep.subr.bf16.mxu0 0
          %3044 = vmatpush2.bf16.msra.mxu0 %v2658
          %3045 = vmatprep.subr.bf16.mxu0 0
          %3046 = vmatpush2.bf16.msra.mxu0 %v2657
          %3047 = vmatprep.subr.bf16.mxu0 0
          %3048 = vmatpush2.bf16.msra.mxu0 %v2656
          %3049 = vmatprep.subr.bf16.mxu0 0
          %3050 = vmatpush2.bf16.msra.mxu0 %v2655
          %3051 = vmatprep.subr.bf16.mxu0 0
          %3052 = vmatpush2.bf16.msra.mxu0 %v2654
          %3053 = vmatprep.subr.bf16.mxu0 0
          %3054 = vmatpush2.bf16.msra.mxu0 %v2653
          %3055 = vmatprep.subr.bf16.mxu0 0
          %3056 = vmatpush2.bf16.msra.mxu0 %v2652
          %3057 = vmatprep.mubr.bf16.mxu0 %v2031
          %3058 = vmatmul.mubr.bf16.gmra.mxu0 %v2030
          %v3059 = vpop.f32.mrf.mxu0
          %v3060 = vadd.f32 %v3019, %v3059
          %v3061 = vpop.f32.mrf.mxu0
          %v3062 = vpop.f32.mrf.mxu0
          %v3063 = vadd.f32 %v3022, %v3062
          %v3064 = vpop.f32.mrf.mxu0
          %3065 = vdwg.mxu0
          %3066 = vmatprep.subr.bf16.mxu0 0
          %3067 = vmatpush1.bf16.msra.mxu0 %v2667
          %3068 = vmatprep.subr.bf16.mxu0 0
          %3069 = vmatpush1.bf16.msra.mxu0 %v2666
          %3070 = vmatprep.subr.bf16.mxu0 0
          %3071 = vmatpush1.bf16.msra.mxu0 %v2665
          %3072 = vmatprep.subr.bf16.mxu0 0
          %3073 = vmatpush1.bf16.msra.mxu0 %v2664
          %3074 = vmatprep.subr.bf16.mxu0 0
          %3075 = vmatpush1.bf16.msra.mxu0 %v2663
          %3076 = vmatprep.subr.bf16.mxu0 0
          %3077 = vmatpush1.bf16.msra.mxu0 %v2662
          %3078 = vmatprep.subr.bf16.mxu0 0
          %3079 = vmatpush1.bf16.msra.mxu0 %v2661
          %3080 = vmatprep.subr.bf16.mxu0 0
          %3081 = vmatpush1.bf16.msra.mxu0 %v2660
          %3082 = vmatprep.subr.bf16.mxu0 0
          %3083 = vmatpush2.bf16.msra.mxu0 %v2675
          %3084 = vmatprep.subr.bf16.mxu0 0
          %3085 = vmatpush2.bf16.msra.mxu0 %v2674
          %3086 = vmatprep.subr.bf16.mxu0 0
          %3087 = vmatpush2.bf16.msra.mxu0 %v2673
          %3088 = vmatprep.subr.bf16.mxu0 0
          %3089 = vmatpush2.bf16.msra.mxu0 %v2672
          %3090 = vmatprep.subr.bf16.mxu0 0
          %3091 = vmatpush2.bf16.msra.mxu0 %v2671
          %3092 = vmatprep.subr.bf16.mxu0 0
          %3093 = vmatpush2.bf16.msra.mxu0 %v2670
          %3094 = vmatprep.subr.bf16.mxu0 0
          %3095 = vmatpush2.bf16.msra.mxu0 %v2669
          %3096 = vmatprep.subr.bf16.mxu0 0
          %3097 = vmatpush2.bf16.msra.mxu0 %v2668
          %3098 = vmatprep.mubr.bf16.mxu0 %v2033
          %3099 = vmatmul.mubr.bf16.gmra.mxu0 %v2032
          %v3100 = vpop.f32.mrf.mxu0
          %v3101 = vadd.f32 %v3060, %v3100
          %v3102 = vpop.f32.mrf.mxu0
          %v3103 = vpop.f32.mrf.mxu0
          %v3104 = vadd.f32 %v3063, %v3103
          %v3105 = vpop.f32.mrf.mxu0
          %3106 = vdwg.mxu0
          %3107 = vmatprep.subr.bf16.mxu0 0
          %3108 = vmatpush1.bf16.msra.mxu0 %v2683
          %3109 = vmatprep.subr.bf16.mxu0 0
          %3110 = vmatpush1.bf16.msra.mxu0 %v2682
          %3111 = vmatprep.subr.bf16.mxu0 0
          %3112 = vmatpush1.bf16.msra.mxu0 %v2681
          %3113 = vmatprep.subr.bf16.mxu0 0
          %3114 = vmatpush1.bf16.msra.mxu0 %v2680
          %3115 = vmatprep.subr.bf16.mxu0 0
          %3116 = vmatpush1.bf16.msra.mxu0 %v2679
          %3117 = vmatprep.subr.bf16.mxu0 0
          %3118 = vmatpush1.bf16.msra.mxu0 %v2678
          %3119 = vmatprep.subr.bf16.mxu0 0
          %3120 = vmatpush1.bf16.msra.mxu0 %v2677
          %3121 = vmatprep.subr.bf16.mxu0 0
          %3122 = vmatpush1.bf16.msra.mxu0 %v2676
          %3123 = vmatprep.subr.bf16.mxu0 0
          %3124 = vmatpush2.bf16.msra.mxu0 %v2691
          %3125 = vmatprep.subr.bf16.mxu0 0
          %3126 = vmatpush2.bf16.msra.mxu0 %v2690
          %3127 = vmatprep.subr.bf16.mxu0 0
          %3128 = vmatpush2.bf16.msra.mxu0 %v2689
          %3129 = vmatprep.subr.bf16.mxu0 0
          %3130 = vmatpush2.bf16.msra.mxu0 %v2688
          %3131 = vmatprep.subr.bf16.mxu0 0
          %3132 = vmatpush2.bf16.msra.mxu0 %v2687
          %3133 = vmatprep.subr.bf16.mxu0 0
          %3134 = vmatpush2.bf16.msra.mxu0 %v2686
          %3135 = vmatprep.subr.bf16.mxu0 0
          %3136 = vmatpush2.bf16.msra.mxu0 %v2685
          %3137 = vmatprep.subr.bf16.mxu0 0
          %3138 = vmatpush2.bf16.msra.mxu0 %v2684
          %3139 = vmatprep.mubr.bf16.mxu0 %v2035
          %3140 = vmatmul.mubr.bf16.gmra.mxu0 %v2034
          %v3141 = vpop.f32.mrf.mxu0
          %v3142 = vadd.f32 %v3101, %v3141
          %v3143 = vpop.f32.mrf.mxu0
          %v3144 = vpop.f32.mrf.mxu0
          %v3145 = vadd.f32 %v3104, %v3144
          %v3146 = vpop.f32.mrf.mxu0
          %3147 = vdwg.mxu0
          %v3148 = vlaneseq
          %v3149 = vand.u32 %v3148, 127
          %v3150 = vstv %s1697
          %vm3151 = vcmp.lt.s32.totalorder %v3149, %v3150
          %v3152 = vsel %vm3151, %v3142, -1e+30
          %v3153 = vsel %vm3151, %v3145, -1e+30
          %3154 = vmax.xlane.f32.xlu0 %v3152
          %v3155 = vpop.xlane.xlu0 %3154
          %3156 = vmax.xlane.f32.xlu0 %v3153
          %v3157 = vpop.xlane.xlu0 %3156
          %v3158 = vsub.f32 %v3152, %v3155
          %v3159 = vsub.f32 %v3153, %v3157
          %v3160 = vmul.f32 %v3158, 1.442695
          %v3161 = vpow.pop %v3160
          %v3162 = vmul.f32 %v3159, 1.442695
          %v3163 = vpow.pop %v3162
          %3164 = vadd.xlane.f32.xlu0 %v3161
          %v3165 = vpop.xlane.xlu0 %3164
          %3166 = vadd.xlane.f32.xlu0 %v3163
          %v3167 = vpop.xlane.xlu0 %3166
          %v3168 = vlog2.pop %v3165
          %v3169 = vmul.f32 %v3168, 0.6931472
          %v3170 = vlog2.pop %v3167
          %v3171 = vmul.f32 %v3170, 0.6931472
          %v3172 = vadd.f32 %v3155, %v3169
          %v3173 = vadd.f32 %v3157, %v3171
          %v3174 = vld [vmem:[%s5] sm:$0xff]
          %v3175 = vld [vmem:[%s5 + $0x8] sm:$0xff]
          %3176 = vset.pattern.permute.xlu0 0
          %3177 = vperm.xlu0 %3176, %v3174
          %v3178 = vpop.permute.xlu0 %3177
          %3179 = vset.pattern.permute.xlu0 0
          %3180 = vperm.xlu0 %3179, %v3175
          %v3181 = vpop.permute.xlu0 %3180
          %vm3182 = vcmp.eq.s32.totalorder %v3149, %v3178
          %vm3183 = vcmp.eq.s32.totalorder %v3149, %v3181
          %v3184 = vsel %vm3182, 1, 0
          %v3185 = vsel %vm3183, 1, 0
          %v3186 = vcvt.s32.f32 %v3184
          %v3187 = vcvt.s32.f32 %v3185
          %v3188 = vmul.f32 %v3186, %v3152
          %v3189 = vmul.f32 %v3187, %v3153
          %3190 = vadd.xlane.f32.xlu0 %v3188
          %v3191 = vpop.xlane.xlu0 %3190
          %3192 = vadd.xlane.f32.xlu0 %v3189
          %v3193 = vpop.xlane.xlu0 %3192
          %v3194 = vsub.f32 %v3172, %v3191
          %v3195 = vsub.f32 %v3173, %v3193
          %v3196 = vld [vmem:[%s4] sm:$0xff]
          %v3197 = vld [vmem:[%s4 + $0x8] sm:$0xff]
          %v3198 = vstv %s1696
          %vm3199 = vcmp.eq.s32.totalorder %v3196, %v3198
          %vm3200 = vcmp.eq.s32.totalorder %v3197, %v3198
          %v3201 = vsel %vm3199, 1, 0
          %v3202 = vsel %vm3200, 1, 0
          %v3203 = vcvt.s32.f32 %v3201
          %v3204 = vcvt.s32.f32 %v3202
          %v3205 = vmul.f32 %v3203, %v3194
          %v3206 = vmul.f32 %v3204, %v3195
          %vm3207 = vcmask 7168
          %v3208 = vsel %vm3207, %v3205, 0.0
          %v3209 = vsel %vm3207, %v3206, 0.0
          %v3210 = vadd.f32 %v3208, %v3209
          %3211 = vadd.xlane.f32.xlu0 %v3210
          %v3212 = vpop.xlane.xlu0 %3211
          %v3213 = vrot.slane %v3212, 4
          %v3214 = vadd.f32 %v3212, %v3213
          %v3215 = vrot.slane %v3214, 2
          %v3216 = vadd.f32 %v3214, %v3215
          %v3217 = vrot.slane %v3216, 1
          %v3218 = vadd.f32 %v3216, %v3217
          %s3219 = vtos %v3218
          %v3220 = vstv %s3219
          %v3221 = vstv %s1699
          %v3222 = vrcp.pop %v3221
          %v3223 = vmul.f32 %v3220, %v3222
          %3224 = vst [vmem:[%s235] sm:$0xff] %v3223
          %3225 = vst [vmem:[%s235 + $0x8] sm:$0xff] %v3223
        $region48: #{ft_net_both_forward.3} parent=35 // pred_fallthru
          _
        %s3226 = sand.u32 %s139, 1
        %s3227 = sand.u32 %s139, 1
        %s3228 = smul.addr %s3227, 16
        %s3229 = scalar_lea.vmem [#allocation9], %s3228
        // Predicated region
        $region49: #{ft_net_both_forward.3} parent=35 // pred_check
          %p3230 = pneg %p149
        $region50: #{ft_net_both_forward.3} parent=35 // pred_check_branch
          %3232 = sbr.rel (%p3230) target = $region52
        $region51: #{ft_net_both_forward.3} parent=35 // pred_region
          %s3233 = smul.addr %s40, 8
          %s3234 = scalar_lea.vmem %s8, %s3233
          // Predicated region
          $region53: #{ft_net_both_forward.3} parent=51 // pred_check
            _
          $region54: #{ft_net_both_forward.3} parent=51 // pred_check_branch
            %3236 = sbr.rel (0) target = $region56
          $region55: #{ft_net_both_forward.3} parent=51 // pred_region
            // Predicated region
            $region57: #{ft_net_both_forward.3} parent=55 // pred_check
              _
            $region58: #{ft_net_both_forward.3} parent=55 // pred_check_branch
              %3238 = sbr.rel (0) target = $region60
            $region59: #{ft_net_both_forward.3} parent=55 // pred_region
              // Predicated region
              $region72: #{ft_net_both_forward.3} parent=59 // pred_check
                _
              $region73: #{ft_net_both_forward.3} parent=59 // pred_check_branch
                %3256 = sbr.rel (0) target = $region75
              $region74: #{ft_net_both_forward.3} parent=59 // pred_region
                loop: start=0, step=1, limit=1
                $region76: #{ft_net_both_forward.3} parent=74 // loop_pre_header
                  _
                $region77: #{ft_net_both_forward.3} parent=74 // loop_header
                  %s3258 = sphi 0, %s3262
                  %p3259 = scmp.ge.s32.totalorder %s3258, 1
                  %s3263 = sphi %s3229, %s3229
                  %s3264 = sphi %s3234, %s3234
                $region78: #{ft_net_both_forward.3} parent=74 // loop_header_branch
                  %3261 = sbr.rel (%p3259) target = $region82
                $region79: #{ft_net_both_forward.3} parent=74 // loop_body
                  %v3265 = vld [vmem:[%s3263] sm:$0xff]
                  %3266 = vst [vmem:[%s3264] sm:$0xff] %v3265
                  %v3267 = vld [vmem:[%s3263 + $0x8] sm:$0xff]
                  %3268 = vst [vmem:[%s3264 + $0x20] sm:$0xff] %v3267
                $region80: #{ft_net_both_forward.3} parent=74 // loop_footer
                  %s3262 = sadd.s32 1, %s3258
                $region81: #{ft_net_both_forward.3} parent=74 // loop_footer_branch
                  %3257 = sbr.rel target = $region77
                $region82: #{ft_net_both_forward.3} parent=74 // loop_exit
                  _
              $region75: #{ft_net_both_forward.3} parent=59 // pred_fallthru
                _
              // Predicated region
              $region83: #{ft_net_both_forward.3} parent=59 // pred_check
                _
              $region84: #{ft_net_both_forward.3} parent=59 // pred_check_branch
                %3270 = sbr.rel target = $region86
              $region85: #{ft_net_both_forward.3} parent=59 // pred_region
                _
              $region86: #{ft_net_both_forward.3} parent=59 // pred_fallthru
                _
            $region60: #{ft_net_both_forward.3} parent=55 // pred_fallthru
              _
            // Predicated region
            $region61: #{ft_net_both_forward.3} parent=55 // pred_check
              _
            $region62: #{ft_net_both_forward.3} parent=55 // pred_check_branch
              %3240 = sbr.rel target = $region64
            $region63: #{ft_net_both_forward.3} parent=55 // pred_region
              %s3242 = ssub.s32 256, 1
              loop: start=0, step=1, limit=1
              $region65: #{ft_net_both_forward.3} parent=63 // loop_pre_header
                _
              $region66: #{ft_net_both_forward.3} parent=63 // loop_header
                %s3244 = sphi 0, %s3248
                %p3245 = scmp.ge.s32.totalorder %s3244, 1
                %s3249 = sphi %s3229, %s3229
                %s3250 = sphi %s3234, %s3234
              $region67: #{ft_net_both_forward.3} parent=63 // loop_header_branch
                %3247 = sbr.rel (%p3245) target = $region71
              $region68: #{ft_net_both_forward.3} parent=63 // loop_body
                %v3251 = vld [vmem:[%s3249] sm:%s3242]
                %3252 = vst [vmem:[%s3250] sm:%s3242] %v3251
                %v3253 = vld [vmem:[%s3249 + $0x8] sm:%s3242]
                %3254 = vst [vmem:[%s3250 + $0x20] sm:%s3242] %v3253
              $region69: #{ft_net_both_forward.3} parent=63 // loop_footer
                %s3248 = sadd.s32 1, %s3244
              $region70: #{ft_net_both_forward.3} parent=63 // loop_footer_branch
                %3243 = sbr.rel target = $region66
              $region71: #{ft_net_both_forward.3} parent=63 // loop_exit
                _
            $region64: #{ft_net_both_forward.3} parent=55 // pred_fallthru
              _
          $region56: #{ft_net_both_forward.3} parent=51 // pred_fallthru
            _
          %3271 = vnop
        $region52: #{ft_net_both_forward.3} parent=35 // pred_fallthru
          _
      $region36: #{ft_net_both_forward.3} parent=5 // pred_fallthru
        _
      %p3272 = scmp.le.s32.totalorder 2, %s35
      // Predicated region
      $region87: #{ft_net_both_forward.3} parent=5 // pred_check
        %p3273 = pneg %p3272
      $region88: #{ft_net_both_forward.3} parent=5 // pred_check_branch
        %3275 = sbr.rel (%p3273) target = $region90
      $region89: #{ft_net_both_forward.3} parent=5 // pred_region
        %s3276 = ssub.s32 %s35, 2
        // Predicated region
        $region91: #{ft_net_both_forward.3} parent=89 // pred_check
          %p3277 = pneg %p155
        $region92: #{ft_net_both_forward.3} parent=89 // pred_check_branch
          %3279 = sbr.rel (%p3277) target = $region94
        $region93: #{ft_net_both_forward.3} parent=89 // pred_region
          %s3280 = sand.u32 %s140, 1
          %s3281 = sand.u32 %s140, 1
          %s3282 = smul.addr %s3281, 16
          %s3283 = scalar_lea.vmem [#allocation9], %s3282
        $region94: #{ft_net_both_forward.3} parent=89 // pred_fallthru
          _
      $region90: #{ft_net_both_forward.3} parent=5 // pred_fallthru
        _
    $region6: #{ft_net_both_forward.3} parent=1 // loop_footer
      %s39 = sadd.s32 1, %s35
    $region7: #{ft_net_both_forward.3} parent=1 // loop_footer_branch
      %34 = sbr.rel target = $region3
    $region8: #{ft_net_both_forward.3} parent=1 // loop_exit
      _
    %3284 = vsyncpa [#allocation8], 1
    %s3285 = scalar_lea.sflag [#allocation8], 1
    %3286 = vsyncpa %s3285, 1

</llo_original>
